<compile_context>
chip_gen: v7x
topology: tpu7x:2x2x1
jax: 0.10.0
libtpu: 0.0.40
codegen_flags: <defaults>
</compile_context>

<pallas_src>
import jax
import jax.numpy as jnp
from jax.experimental import pallas as pl
from jax.experimental.pallas import tpu as pltpu


LANES = 128


def _round_up(x, m):
    return (x + m - 1) // m * m


# --------------------------------------------------------------------------
# Pallas kernels
# --------------------------------------------------------------------------
def _conv_pool_kernel(p_ref, w_ref, b_ref, o_ref):
    """Fused conv(+bias)+ReLU+2x2-maxpool via im2col matmul.

    p_ref : (4, TM, K)  im2col patches, leading axis = pooling-window corner
    w_ref : (K, 128)    weights, Cout zero-padded to 128 lanes (resident)
    b_ref : (1, 128)    bias, zero-padded (resident)
    o_ref : (TM, 128)   pooled activations (lane-dense store)
    """
    a0 = jnp.dot(p_ref[0], w_ref[...], preferred_element_type=jnp.float32)
    a1 = jnp.dot(p_ref[1], w_ref[...], preferred_element_type=jnp.float32)
    a2 = jnp.dot(p_ref[2], w_ref[...], preferred_element_type=jnp.float32)
    a3 = jnp.dot(p_ref[3], w_ref[...], preferred_element_type=jnp.float32)
    m = jnp.maximum(jnp.maximum(a0, a1), jnp.maximum(a2, a3))
    o_ref[...] = jnp.maximum(m + b_ref[...], 0.0).astype(o_ref.dtype)


def conv_pool(patches, wmat, bias, *, tm=512):
    """patches: (4, M, K); wmat: (K, 128); bias: (1, 128) -> (M, 128)."""
    _, M, K = patches.shape
    N = wmat.shape[1]
    TM = min(tm, _round_up(M, 8))          # sublane-aligned M tile, capped for VMEM
    Mp = _round_up(M, TM)
    if Mp != M:
        patches = jnp.pad(patches, ((0, 0), (0, Mp - M), (0, 0)))
    out = pl.pallas_call(
        _conv_pool_kernel,
        grid=(Mp // TM,),
        in_specs=[
            pl.BlockSpec((4, TM, K), lambda m: (0, m, 0)),
            pl.BlockSpec((K, N), lambda m: (0, 0)),   # weight stays resident
            pl.BlockSpec((1, N), lambda m: (0, 0)),   # bias stays resident
        ],
        out_specs=pl.BlockSpec((TM, N), lambda m: (m, 0)),
        out_shape=jax.ShapeDtypeStruct((Mp, N), jnp.float32),
        compiler_params=pltpu.CompilerParams(
            dimension_semantics=("parallel",)),
    )(patches, wmat, bias)
    return out[:M] if Mp != M else out


def _fc_head_kernel(x_ref, w1_ref, b1_ref, w2_ref, b2_ref, w3_ref, b3_ref, o_ref):
    """fc1+ReLU -> fc2+ReLU -> fc3; intermediates stay in VMEM/vregs."""
    h = jnp.dot(x_ref[...], w1_ref[...], preferred_element_type=jnp.float32)
    h = jnp.maximum(h + b1_ref[...], 0.0)
    h = jnp.dot(h, w2_ref[...], preferred_element_type=jnp.float32)
    h = jnp.maximum(h + b2_ref[...], 0.0)
    o = jnp.dot(h, w3_ref[...], preferred_element_type=jnp.float32) + b3_ref[...]
    o_ref[...] = o.astype(o_ref.dtype)


def fc_head(x, w1, b1, w2, b2, w3, b3):
    B = x.shape[0]
    N = w3.shape[1]
    args = (x, w1, b1, w2, b2, w3, b3)
    return pl.pallas_call(
        _fc_head_kernel,
        grid=(1,),
        in_specs=[pl.BlockSpec(a.shape, lambda i: (0, 0)) for a in args],
        out_specs=pl.BlockSpec((B, N), lambda i: (0, 0)),
        out_shape=jax.ShapeDtypeStruct((B, N), jnp.float32),
    )(*args)


# --------------------------------------------------------------------------
# XLA glue: corner-major im2col (pure gather/copy, fused by XLA)
# --------------------------------------------------------------------------
def _conv1_patches(x):
    """x: (B,1,28,28) -> (4, B*196, 25); corner axis = 2x2 pool window position."""
    B = x.shape[0]
    xp = jnp.pad(x[:, 0], ((0, 0), (2, 2), (2, 2)))              # (B,32,32)
    cols = [xp[:, i:i + 28, j:j + 28] for i in range(5) for j in range(5)]
    pat = jnp.stack(cols, axis=-1)                               # (B,28,28,25)
    pat = pat.reshape(B, 14, 2, 14, 2, 25).transpose(2, 4, 0, 1, 3, 5)
    return pat.reshape(4, B * 14 * 14, 25)


def _conv2_patches(y):
    """y: (B,14,14,6) NHWC -> (4, B*25, 150); K order (cin, kh, kw) = torch order."""
    B = y.shape[0]
    cols = [y[:, i:i + 10, j:j + 10, :] for i in range(5) for j in range(5)]
    pat = jnp.stack(cols, axis=3)                                # (B,10,10,25,6)
    pat = jnp.transpose(pat, (0, 1, 2, 4, 3))                    # (B,10,10,6,25)
    pat = pat.reshape(B, 5, 2, 5, 2, 150).transpose(2, 4, 0, 1, 3, 5)
    return pat.reshape(4, B * 5 * 5, 150)


# --------------------------------------------------------------------------
# Forward pass (matches Model_MNIST.forward)
# --------------------------------------------------------------------------
def model_forward(x, kp):
    B = x.shape[0]
    # conv1 + ReLU + maxpool -> (B,14,14,6) NHWC (stored lane-padded to 128)
    y1 = conv_pool(_conv1_patches(x), kp["conv1_w"], kp["conv1_b"])
    y1 = y1.reshape(B, 14, 14, LANES)[..., :6]
    # conv2 + ReLU + maxpool -> rows (b,p,q) x 128 channels (16 real + 112 zero)
    y2 = conv_pool(_conv2_patches(y1), kp["conv2_w"], kp["conv2_b"])
    # Flatten: the fc1 weight was permuted/zero-padded at init to consume the
    # NHWC (p, q, c_pad128) order directly -> no runtime transpose needed.
    yflat = y2.reshape(B, 25 * LANES)
    return fc_head(yflat, kp["fc1_w"], kp["fc1_b"],
                   kp["fc2_w"], kp["fc2_b"], kp["fc3_w"], kp["fc3_b"])


# --------------------------------------------------------------------------
# Parameters: torch-layout init + one-time layout preparation (hoisted)
# --------------------------------------------------------------------------
def init_torch_params(key):
    ks = jax.random.split(key, 10)

    def unif(k, shape, fan_in):
        bound = 1.0 / float(fan_in) ** 0.5
        return jax.random.uniform(k, shape, jnp.float32, -bound, bound)

    return {
        "conv1_w": unif(ks[0], (6, 1, 5, 5), 25),
        "conv1_b": unif(ks[1], (6,), 25),
        "conv2_w": unif(ks[2], (16, 6, 5, 5), 150),
        "conv2_b": unif(ks[3], (16,), 150),
        "fc1_w": unif(ks[4], (120, 400), 400),   # torch Linear layout: (out, in)
        "fc1_b": unif(ks[5], (120,), 400),
        "fc2_w": unif(ks[6], (64, 120), 120),
        "fc2_b": unif(ks[7], (64,), 120),
        "fc3_w": unif(ks[8], (10, 64), 64),
        "fc3_b": unif(ks[9], (10,), 64),
    }


def prepare_params(tp):
    """One-time prep: (K, Cout) conv weights, lane-pad widths to 128, and fold
    the NCHW-flatten permutation into fc1.  Hot path does no weight reshapes."""
    f32 = jnp.float32
    # conv1: (6,1,5,5) -> (25, 128)
    w1 = jnp.zeros((25, LANES), f32).at[:, :6].set(tp["conv1_w"].reshape(6, 25).T)
    b1 = jnp.zeros((1, LANES), f32).at[0, :6].set(tp["conv1_b"])
    # conv2: (16,6,5,5) -> (150, 128), K order (cin, kh, kw)
    w2 = jnp.zeros((150, LANES), f32).at[:, :16].set(tp["conv2_w"].reshape(16, 150).T)
    b2 = jnp.zeros((1, LANES), f32).at[0, :16].set(tp["conv2_b"])
    # fc1: torch (120, 400) over input index (c*25 + h*5 + w); kernel feeds it
    # (h, w, c_pad128) flattened -> permute + zero-pad rows to (3200, 128).
    f1 = tp["fc1_w"].reshape(120, 16, 5, 5).transpose(2, 3, 1, 0)   # (5,5,16,120)
    f1 = jnp.zeros((5, 5, LANES, 120), f32).at[:, :, :16, :].set(f1)
    fc1_w = jnp.zeros((25 * LANES, LANES), f32).at[:, :120].set(f1.reshape(25 * LANES, 120))
    fc1_b = jnp.zeros((1, LANES), f32).at[0, :120].set(tp["fc1_b"])
    # fc2: (64,120) -> (128,128)
    fc2_w = jnp.zeros((LANES, LANES), f32).at[:120, :64].set(tp["fc2_w"].T)
    fc2_b = jnp.zeros((1, LANES), f32).at[0, :64].set(tp["fc2_b"])
    # fc3: (10,64) -> (128,10)
    fc3_w = jnp.zeros((LANES, 10), f32).at[:64, :].set(tp["fc3_w"].T)
    fc3_b = tp["fc3_b"].reshape(1, 10)
    return {
        "conv1_w": w1, "conv1_b": b1,
        "conv2_w": w2, "conv2_b": b2,
        "fc1_w": fc1_w, "fc1_b": fc1_b,
        "fc2_w": fc2_w, "fc2_b": fc2_b,
        "fc3_w": fc3_w, "fc3_b": fc3_b,
    }


# --------------------------------------------------------------------------
# Plain-XLA reference (validation only, uses torch-layout params)
# --------------------------------------------------------------------------
def _reference_forward(x, tp):
    def conv(xc, w, b, pad):
        if pad:
            xc = jnp.pad(xc, ((0, 0), (0, 0), (pad, pad), (pad, pad)))
        Co, Ci, KH, KW = w.shape
        OH = xc.shape[2] - KH + 1
        OW = xc.shape[3] - KW + 1
        out = jnp.broadcast_to(b[None, :, None, None], (xc.shape[0], Co, OH, OW))
        for i in range(KH):
            for j in range(KW):
                out = out + jnp.einsum("bchw,oc->bohw",
                                       xc[:, :, i:i + OH, j:j + OW], w[:, :, i, j])
        return out

    def pool(z):
        B, C, H, W = z.shape
        return z.reshape(B, C, H // 2, 2, W // 2, 2).max(axis=(3, 5))

    y = pool(jax.nn.relu(conv(x, tp["conv1_w"], tp["conv1_b"], 2)))
    y = pool(jax.nn.relu(conv(y, tp["conv2_w"], tp["conv2_b"], 0)))
    y = y.reshape(y.shape[0], -1)
    y = jax.nn.relu(y @ tp["fc1_w"].T + tp["fc1_b"])
    y = jax.nn.relu(y @ tp["fc2_w"].T + tp["fc2_b"])
    return y @ tp["fc3_w"].T + tp["fc3_b"]


if __name__ == "__main__":
    torch_params = init_torch_params(jax.random.PRNGKey(42))
    kernel_params = prepare_params(torch_params)

    # Model_MNIST structurally requires 28x28 single-channel input
    # (16*5*5 == 400 feeding fc1).  Batch kept small.
    x = jax.random.normal(jax.random.PRNGKey(0), (2, 1, 28, 28), jnp.float32)

    out = jax.block_until_ready(jax.jit(model_forward)(x, kernel_params))
    assert out.shape == (2, 10) and out.dtype == jnp.float32

    ref = _reference_forward(x, torch_params)
    err = float(jnp.max(jnp.abs(out - ref)))
    assert err < 2e-3, f"kernel/reference mismatch: max abs err = {err}"
    print("KERNEL_OK")
</pallas_src>

<mosaic_0001>
module attributes {stable_mosaic.version = 11 : i64} {
  func.func @_conv_pool_kernel(%arg0: i32, %arg1: memref<4x392x25xf32, #tpu.memory_space<vmem>>, %arg2: memref<25x128xf32, #tpu.memory_space<vmem>>, %arg3: memref<1x128xf32, #tpu.memory_space<vmem>>, %arg4: memref<392x128xf32, #tpu.memory_space<vmem>>) attributes {dimension_semantics = [#tpu.dimension_semantics<parallel>], iteration_bounds = array<i64: 1>, scalar_prefetch = 0 : i64, scratch_operands = 0 : i64, tpu.core_type = #tpu.core_type<tc>, window_params = [{transform_indices = @transform_0, window_bounds = array<i64: 4, 392, 25>}, {pipeline_mode = #tpu.pipeline_mode<synchronous>, transform_indices = @transform_1, window_bounds = array<i64: 25, 128>}, {pipeline_mode = #tpu.pipeline_mode<synchronous>, transform_indices = @transform_2, window_bounds = array<i64: 1, 128>}, {transform_indices = @transform_3, window_bounds = array<i64: 392, 128>}]} {
    %c0 = arith.constant 0 : index
    %c0_0 = arith.constant 0 : index
    %c0_1 = arith.constant 0 : index
    %0 = vector.load %arg1[%c0, %c0_0, %c0_1] : memref<4x392x25xf32, #tpu.memory_space<vmem>>, vector<1x392x25xf32>
    %1 = vector.shape_cast %0 : vector<1x392x25xf32> to vector<392x25xf32>
    %c0_2 = arith.constant 0 : index
    %c0_3 = arith.constant 0 : index
    %2 = vector.load %arg2[%c0_2, %c0_3] : memref<25x128xf32, #tpu.memory_space<vmem>>, vector<25x128xf32>
    %cst = arith.constant dense<0.000000e+00> : vector<392x128xf32>
    %3 = tpu.matmul %1, %2, %cst {dimension_numbers = #tpu.dot_dimension_numbers<[1], [0], [0], [1], [0, 0, 1, 1], [], []>} : vector<392x25xf32>, vector<25x128xf32>, vector<392x128xf32> -> vector<392x128xf32>
    %c1 = arith.constant 1 : index
    %c0_4 = arith.constant 0 : index
    %c0_5 = arith.constant 0 : index
    %4 = vector.load %arg1[%c1, %c0_4, %c0_5] : memref<4x392x25xf32, #tpu.memory_space<vmem>>, vector<1x392x25xf32>
    %5 = vector.shape_cast %4 : vector<1x392x25xf32> to vector<392x25xf32>
    %c0_6 = arith.constant 0 : index
    %c0_7 = arith.constant 0 : index
    %6 = vector.load %arg2[%c0_6, %c0_7] : memref<25x128xf32, #tpu.memory_space<vmem>>, vector<25x128xf32>
    %cst_8 = arith.constant dense<0.000000e+00> : vector<392x128xf32>
    %7 = tpu.matmul %5, %6, %cst_8 {dimension_numbers = #tpu.dot_dimension_numbers<[1], [0], [0], [1], [0, 0, 1, 1], [], []>} : vector<392x25xf32>, vector<25x128xf32>, vector<392x128xf32> -> vector<392x128xf32>
    %c2 = arith.constant 2 : index
    %c0_9 = arith.constant 0 : index
    %c0_10 = arith.constant 0 : index
    %8 = vector.load %arg1[%c2, %c0_9, %c0_10] : memref<4x392x25xf32, #tpu.memory_space<vmem>>, vector<1x392x25xf32>
    %9 = vector.shape_cast %8 : vector<1x392x25xf32> to vector<392x25xf32>
    %c0_11 = arith.constant 0 : index
    %c0_12 = arith.constant 0 : index
    %10 = vector.load %arg2[%c0_11, %c0_12] : memref<25x128xf32, #tpu.memory_space<vmem>>, vector<25x128xf32>
    %cst_13 = arith.constant dense<0.000000e+00> : vector<392x128xf32>
    %11 = tpu.matmul %9, %10, %cst_13 {dimension_numbers = #tpu.dot_dimension_numbers<[1], [0], [0], [1], [0, 0, 1, 1], [], []>} : vector<392x25xf32>, vector<25x128xf32>, vector<392x128xf32> -> vector<392x128xf32>
    %c3 = arith.constant 3 : index
    %c0_14 = arith.constant 0 : index
    %c0_15 = arith.constant 0 : index
    %12 = vector.load %arg1[%c3, %c0_14, %c0_15] : memref<4x392x25xf32, #tpu.memory_space<vmem>>, vector<1x392x25xf32>
    %13 = vector.shape_cast %12 : vector<1x392x25xf32> to vector<392x25xf32>
    %c0_16 = arith.constant 0 : index
    %c0_17 = arith.constant 0 : index
    %14 = vector.load %arg2[%c0_16, %c0_17] : memref<25x128xf32, #tpu.memory_space<vmem>>, vector<25x128xf32>
    %cst_18 = arith.constant dense<0.000000e+00> : vector<392x128xf32>
    %15 = tpu.matmul %13, %14, %cst_18 {dimension_numbers = #tpu.dot_dimension_numbers<[1], [0], [0], [1], [0, 0, 1, 1], [], []>} : vector<392x25xf32>, vector<25x128xf32>, vector<392x128xf32> -> vector<392x128xf32>
    %16 = arith.maximumf %3, %7 : vector<392x128xf32>
    %17 = arith.maximumf %11, %15 : vector<392x128xf32>
    %18 = arith.maximumf %16, %17 : vector<392x128xf32>
    %c0_19 = arith.constant 0 : index
    %c0_20 = arith.constant 0 : index
    %19 = vector.load %arg3[%c0_19, %c0_20] : memref<1x128xf32, #tpu.memory_space<vmem>>, vector<1x128xf32>
    %20 = vector.broadcast %19 : vector<1x128xf32> to vector<392x128xf32>
    %21 = arith.addf %18, %20 : vector<392x128xf32>
    %cst_21 = arith.constant 0.000000e+00 : f32
    %22 = vector.broadcast %cst_21 : f32 to vector<392x128xf32>
    %23 = arith.maximumf %21, %22 : vector<392x128xf32>
    %c0_22 = arith.constant 0 : index
    %c0_23 = arith.constant 0 : index
    %24 = vector.load %arg4[%c0_22, %c0_23] : memref<392x128xf32, #tpu.memory_space<vmem>>, vector<392x128xf32>
    tpu.vector_store %arg4[%c0_22, %c0_23], %23 {strides = array<i32>} : memref<392x128xf32, #tpu.memory_space<vmem>>, vector<392x128xf32>,
    return
  }
  func.func @transform_0(%arg0: i32) -> (i32, i32, i32) {
    %c0_i32 = arith.constant 0 : i32
    %c0_i32_0 = arith.constant 0 : i32
    %c0_i32_1 = arith.constant 0 : i32
    return %c0_i32, %arg0, %c0_i32_0 : i32, i32, i32
  }
  func.func @transform_1(%arg0: i32) -> (i32, i32) {
    %c0_i32 = arith.constant 0 : i32
    %c0_i32_0 = arith.constant 0 : i32
    %c0_i32_1 = arith.constant 0 : i32
    return %c0_i32, %c0_i32_0 : i32, i32
  }
  func.func @transform_2(%arg0: i32) -> (i32, i32) {
    %c0_i32 = arith.constant 0 : i32
    %c0_i32_0 = arith.constant 0 : i32
    %c0_i32_1 = arith.constant 0 : i32
    return %c0_i32, %c0_i32_0 : i32, i32
  }
  func.func @transform_3(%arg0: i32) -> (i32, i32) {
    %c0_i32 = arith.constant 0 : i32
    %c0_i32_0 = arith.constant 0 : i32
    return %arg0, %c0_i32 : i32, i32
  }
}

module attributes {stable_mosaic.version = 11 : i64} {
  func.func @_conv_pool_kernel(%arg0: i32, %arg1: memref<4x56x150xf32, #tpu.memory_space<vmem>>, %arg2: memref<150x128xf32, #tpu.memory_space<vmem>>, %arg3: memref<1x128xf32, #tpu.memory_space<vmem>>, %arg4: memref<56x128xf32, #tpu.memory_space<vmem>>) attributes {dimension_semantics = [#tpu.dimension_semantics<parallel>], iteration_bounds = array<i64: 1>, scalar_prefetch = 0 : i64, scratch_operands = 0 : i64, tpu.core_type = #tpu.core_type<tc>, window_params = [{transform_indices = @transform_0, window_bounds = array<i64: 4, 56, 150>}, {pipeline_mode = #tpu.pipeline_mode<synchronous>, transform_indices = @transform_1, window_bounds = array<i64: 150, 128>}, {pipeline_mode = #tpu.pipeline_mode<synchronous>, transform_indices = @transform_2, window_bounds = array<i64: 1, 128>}, {transform_indices = @transform_3, window_bounds = array<i64: 56, 128>}]} {
    %c0 = arith.constant 0 : index
    %c0_0 = arith.constant 0 : index
    %c0_1 = arith.constant 0 : index
    %0 = vector.load %arg1[%c0, %c0_0, %c0_1] : memref<4x56x150xf32, #tpu.memory_space<vmem>>, vector<1x56x150xf32>
    %1 = vector.shape_cast %0 : vector<1x56x150xf32> to vector<56x150xf32>
    %c0_2 = arith.constant 0 : index
    %c0_3 = arith.constant 0 : index
    %2 = vector.load %arg2[%c0_2, %c0_3] : memref<150x128xf32, #tpu.memory_space<vmem>>, vector<150x128xf32>
    %cst = arith.constant dense<0.000000e+00> : vector<56x128xf32>
    %3 = tpu.matmul %1, %2, %cst {dimension_numbers = #tpu.dot_dimension_numbers<[1], [0], [0], [1], [0, 0, 1, 1], [], []>} : vector<56x150xf32>, vector<150x128xf32>, vector<56x128xf32> -> vector<56x128xf32>
    %c1 = arith.constant 1 : index
    %c0_4 = arith.constant 0 : index
    %c0_5 = arith.constant 0 : index
    %4 = vector.load %arg1[%c1, %c0_4, %c0_5] : memref<4x56x150xf32, #tpu.memory_space<vmem>>, vector<1x56x150xf32>
    %5 = vector.shape_cast %4 : vector<1x56x150xf32> to vector<56x150xf32>
    %c0_6 = arith.constant 0 : index
    %c0_7 = arith.constant 0 : index
    %6 = vector.load %arg2[%c0_6, %c0_7] : memref<150x128xf32, #tpu.memory_space<vmem>>, vector<150x128xf32>
    %cst_8 = arith.constant dense<0.000000e+00> : vector<56x128xf32>
    %7 = tpu.matmul %5, %6, %cst_8 {dimension_numbers = #tpu.dot_dimension_numbers<[1], [0], [0], [1], [0, 0, 1, 1], [], []>} : vector<56x150xf32>, vector<150x128xf32>, vector<56x128xf32> -> vector<56x128xf32>
    %c2 = arith.constant 2 : index
    %c0_9 = arith.constant 0 : index
    %c0_10 = arith.constant 0 : index
    %8 = vector.load %arg1[%c2, %c0_9, %c0_10] : memref<4x56x150xf32, #tpu.memory_space<vmem>>, vector<1x56x150xf32>
    %9 = vector.shape_cast %8 : vector<1x56x150xf32> to vector<56x150xf32>
    %c0_11 = arith.constant 0 : index
    %c0_12 = arith.constant 0 : index
    %10 = vector.load %arg2[%c0_11, %c0_12] : memref<150x128xf32, #tpu.memory_space<vmem>>, vector<150x128xf32>
    %cst_13 = arith.constant dense<0.000000e+00> : vector<56x128xf32>
    %11 = tpu.matmul %9, %10, %cst_13 {dimension_numbers = #tpu.dot_dimension_numbers<[1], [0], [0], [1], [0, 0, 1, 1], [], []>} : vector<56x150xf32>, vector<150x128xf32>, vector<56x128xf32> -> vector<56x128xf32>
    %c3 = arith.constant 3 : index
    %c0_14 = arith.constant 0 : index
    %c0_15 = arith.constant 0 : index
    %12 = vector.load %arg1[%c3, %c0_14, %c0_15] : memref<4x56x150xf32, #tpu.memory_space<vmem>>, vector<1x56x150xf32>
    %13 = vector.shape_cast %12 : vector<1x56x150xf32> to vector<56x150xf32>
    %c0_16 = arith.constant 0 : index
    %c0_17 = arith.constant 0 : index
    %14 = vector.load %arg2[%c0_16, %c0_17] : memref<150x128xf32, #tpu.memory_space<vmem>>, vector<150x128xf32>
    %cst_18 = arith.constant dense<0.000000e+00> : vector<56x128xf32>
    %15 = tpu.matmul %13, %14, %cst_18 {dimension_numbers = #tpu.dot_dimension_numbers<[1], [0], [0], [1], [0, 0, 1, 1], [], []>} : vector<56x150xf32>, vector<150x128xf32>, vector<56x128xf32> -> vector<56x128xf32>
    %16 = arith.maximumf %3, %7 : vector<56x128xf32>
    %17 = arith.maximumf %11, %15 : vector<56x128xf32>
    %18 = arith.maximumf %16, %17 : vector<56x128xf32>
    %c0_19 = arith.constant 0 : index
    %c0_20 = arith.constant 0 : index
    %19 = vector.load %arg3[%c0_19, %c0_20] : memref<1x128xf32, #tpu.memory_space<vmem>>, vector<1x128xf32>
    %20 = vector.broadcast %19 : vector<1x128xf32> to vector<56x128xf32>
    %21 = arith.addf %18, %20 : vector<56x128xf32>
    %cst_21 = arith.constant 0.000000e+00 : f32
    %22 = vector.broadcast %cst_21 : f32 to vector<56x128xf32>
    %23 = arith.maximumf %21, %22 : vector<56x128xf32>
    %c0_22 = arith.constant 0 : index
    %c0_23 = arith.constant 0 : index
    %24 = vector.load %arg4[%c0_22, %c0_23] : memref<56x128xf32, #tpu.memory_space<vmem>>, vector<56x128xf32>
    tpu.vector_store %arg4[%c0_22, %c0_23], %23 {strides = array<i32>} : memref<56x128xf32, #tpu.memory_space<vmem>>, vector<56x128xf32>,
    return
  }
  func.func @transform_0(%arg0: i32) -> (i32, i32, i32) {
    %c0_i32 = arith.constant 0 : i32
    %c0_i32_0 = arith.constant 0 : i32
    %c0_i32_1 = arith.constant 0 : i32
    return %c0_i32, %arg0, %c0_i32_0 : i32, i32, i32
  }
  func.func @transform_1(%arg0: i32) -> (i32, i32) {
    %c0_i32 = arith.constant 0 : i32
    %c0_i32_0 = arith.constant 0 : i32
    %c0_i32_1 = arith.constant 0 : i32
    return %c0_i32, %c0_i32_0 : i32, i32
  }
  func.func @transform_2(%arg0: i32) -> (i32, i32) {
    %c0_i32 = arith.constant 0 : i32
    %c0_i32_0 = arith.constant 0 : i32
    %c0_i32_1 = arith.constant 0 : i32
    return %c0_i32, %c0_i32_0 : i32, i32
  }
  func.func @transform_3(%arg0: i32) -> (i32, i32) {
    %c0_i32 = arith.constant 0 : i32
    %c0_i32_0 = arith.constant 0 : i32
    return %arg0, %c0_i32 : i32, i32
  }
}

module attributes {stable_mosaic.version = 11 : i64} {
  func.func @_fc_head_kernel(%arg0: i32, %arg1: memref<2x3200xf32, #tpu.memory_space<vmem>>, %arg2: memref<3200x128xf32, #tpu.memory_space<vmem>>, %arg3: memref<1x128xf32, #tpu.memory_space<vmem>>, %arg4: memref<128x128xf32, #tpu.memory_space<vmem>>, %arg5: memref<1x128xf32, #tpu.memory_space<vmem>>, %arg6: memref<128x10xf32, #tpu.memory_space<vmem>>, %arg7: memref<1x10xf32, #tpu.memory_space<vmem>>, %arg8: memref<2x10xf32, #tpu.memory_space<vmem>>) attributes {dimension_semantics = [#tpu.dimension_semantics<arbitrary>], iteration_bounds = array<i64: 1>, scalar_prefetch = 0 : i64, scratch_operands = 0 : i64, tpu.core_type = #tpu.core_type<tc>, window_params = [{pipeline_mode = #tpu.pipeline_mode<synchronous>, transform_indices = @transform_0, window_bounds = array<i64: 2, 3200>}, {pipeline_mode = #tpu.pipeline_mode<synchronous>, transform_indices = @transform_1, window_bounds = array<i64: 3200, 128>}, {pipeline_mode = #tpu.pipeline_mode<synchronous>, transform_indices = @transform_2, window_bounds = array<i64: 1, 128>}, {pipeline_mode = #tpu.pipeline_mode<synchronous>, transform_indices = @transform_3, window_bounds = array<i64: 128, 128>}, {pipeline_mode = #tpu.pipeline_mode<synchronous>, transform_indices = @transform_4, window_bounds = array<i64: 1, 128>}, {pipeline_mode = #tpu.pipeline_mode<synchronous>, transform_indices = @transform_5, window_bounds = array<i64: 128, 10>}, {pipeline_mode = #tpu.pipeline_mode<synchronous>, transform_indices = @transform_6, window_bounds = array<i64: 1, 10>}, {pipeline_mode = #tpu.pipeline_mode<synchronous>, transform_indices = @transform_7, window_bounds = array<i64: 2, 10>}]} {
    %c0 = arith.constant 0 : index
    %c0_0 = arith.constant 0 : index
    %0 = vector.load %arg1[%c0, %c0_0] : memref<2x3200xf32, #tpu.memory_space<vmem>>, vector<2x3200xf32>
    %c0_1 = arith.constant 0 : index
    %c0_2 = arith.constant 0 : index
    %1 = vector.load %arg2[%c0_1, %c0_2] : memref<3200x128xf32, #tpu.memory_space<vmem>>, vector<3200x128xf32>
    %cst = arith.constant dense<0.000000e+00> : vector<2x128xf32>
    %2 = tpu.matmul %0, %1, %cst {dimension_numbers = #tpu.dot_dimension_numbers<[1], [0], [0], [1], [0, 0, 1, 1], [], []>} : vector<2x3200xf32>, vector<3200x128xf32>, vector<2x128xf32> -> vector<2x128xf32>
    %c0_3 = arith.constant 0 : index
    %c0_4 = arith.constant 0 : index
    %3 = vector.load %arg3[%c0_3, %c0_4] : memref<1x128xf32, #tpu.memory_space<vmem>>, vector<1x128xf32>
    %4 = vector.broadcast %3 : vector<1x128xf32> to vector<2x128xf32>
    %5 = arith.addf %2, %4 : vector<2x128xf32>
    %cst_5 = arith.constant 0.000000e+00 : f32
    %6 = vector.broadcast %cst_5 : f32 to vector<2x128xf32>
    %7 = arith.maximumf %5, %6 : vector<2x128xf32>
    %c0_6 = arith.constant 0 : index
    %c0_7 = arith.constant 0 : index
    %8 = vector.load %arg4[%c0_6, %c0_7] : memref<128x128xf32, #tpu.memory_space<vmem>>, vector<128x128xf32>
    %cst_8 = arith.constant dense<0.000000e+00> : vector<2x128xf32>
    %9 = tpu.matmul %7, %8, %cst_8 {dimension_numbers = #tpu.dot_dimension_numbers<[1], [0], [0], [1], [0, 0, 1, 1], [], []>} : vector<2x128xf32>, vector<128x128xf32>, vector<2x128xf32> -> vector<2x128xf32>
    %c0_9 = arith.constant 0 : index
    %c0_10 = arith.constant 0 : index
    %10 = vector.load %arg5[%c0_9, %c0_10] : memref<1x128xf32, #tpu.memory_space<vmem>>, vector<1x128xf32>
    %11 = vector.broadcast %10 : vector<1x128xf32> to vector<2x128xf32>
    %12 = arith.addf %9, %11 : vector<2x128xf32>
    %cst_11 = arith.constant 0.000000e+00 : f32
    %13 = vector.broadcast %cst_11 : f32 to vector<2x128xf32>
    %14 = arith.maximumf %12, %13 : vector<2x128xf32>
    %c0_12 = arith.constant 0 : index
    %c0_13 = arith.constant 0 : index
    %15 = vector.load %arg6[%c0_12, %c0_13] : memref<128x10xf32, #tpu.memory_space<vmem>>, vector<128x10xf32>
    %cst_14 = arith.constant dense<0.000000e+00> : vector<2x10xf32>
    %16 = tpu.matmul %14, %15, %cst_14 {dimension_numbers = #tpu.dot_dimension_numbers<[1], [0], [0], [1], [0, 0, 1, 1], [], []>} : vector<2x128xf32>, vector<128x10xf32>, vector<2x10xf32> -> vector<2x10xf32>
    %c0_15 = arith.constant 0 : index
    %c0_16 = arith.constant 0 : index
    %17 = vector.load %arg7[%c0_15, %c0_16] : memref<1x10xf32, #tpu.memory_space<vmem>>, vector<1x10xf32>
    %18 = vector.broadcast %17 : vector<1x10xf32> to vector<2x10xf32>
    %19 = arith.addf %16, %18 : vector<2x10xf32>
    %c0_17 = arith.constant 0 : index
    %c0_18 = arith.constant 0 : index
    %20 = vector.load %arg8[%c0_17, %c0_18] : memref<2x10xf32, #tpu.memory_space<vmem>>, vector<2x10xf32>
    tpu.vector_store %arg8[%c0_17, %c0_18], %19 {strides = array<i32>} : memref<2x10xf32, #tpu.memory_space<vmem>>, vector<2x10xf32>,
    return
  }
  func.func @transform_0(%arg0: i32) -> (i32, i32) {
    %c0_i32 = arith.constant 0 : i32
    %c0_i32_0 = arith.constant 0 : i32
    %c0_i32_1 = arith.constant 0 : i32
    return %c0_i32, %c0_i32_0 : i32, i32
  }
  func.func @transform_1(%arg0: i32) -> (i32, i32) {
    %c0_i32 = arith.constant 0 : i32
    %c0_i32_0 = arith.constant 0 : i32
    %c0_i32_1 = arith.constant 0 : i32
    return %c0_i32, %c0_i32_0 : i32, i32
  }
  func.func @transform_2(%arg0: i32) -> (i32, i32) {
    %c0_i32 = arith.constant 0 : i32
    %c0_i32_0 = arith.constant 0 : i32
    %c0_i32_1 = arith.constant 0 : i32
    return %c0_i32, %c0_i32_0 : i32, i32
  }
  func.func @transform_3(%arg0: i32) -> (i32, i32) {
    %c0_i32 = arith.constant 0 : i32
    %c0_i32_0 = arith.constant 0 : i32
    %c0_i32_1 = arith.constant 0 : i32
    return %c0_i32, %c0_i32_0 : i32, i32
  }
  func.func @transform_4(%arg0: i32) -> (i32, i32) {
    %c0_i32 = arith.constant 0 : i32
    %c0_i32_0 = arith.constant 0 : i32
    %c0_i32_1 = arith.constant 0 : i32
    return %c0_i32, %c0_i32_0 : i32, i32
  }
  func.func @transform_5(%arg0: i32) -> (i32, i32) {
    %c0_i32 = arith.constant 0 : i32
    %c0_i32_0 = arith.constant 0 : i32
    %c0_i32_1 = arith.constant 0 : i32
    return %c0_i32, %c0_i32_0 : i32, i32
  }
  func.func @transform_6(%arg0: i32) -> (i32, i32) {
    %c0_i32 = arith.constant 0 : i32
    %c0_i32_0 = arith.constant 0 : i32
    %c0_i32_1 = arith.constant 0 : i32
    return %c0_i32, %c0_i32_0 : i32, i32
  }
  func.func @transform_7(%arg0: i32) -> (i32, i32) {
    %c0_i32 = arith.constant 0 : i32
    %c0_i32_0 = arith.constant 0 : i32
    %c0_i32_1 = arith.constant 0 : i32
    return %c0_i32, %c0_i32_0 : i32, i32
  }
}

</mosaic_0001>

<llo_original>
// kernel: model_forward.3
$region0: #{model_forward.3}
  #allocation0 [shape = 'u32[]', space=smem, size = 0x4, offset = 0x4, fixed_abs, tag = 'smem constant byte address 0x4 - core index']
  #allocation1 [shape = 'u32[144,128]{1,0:T(1,128)}', space=vmem, size = 0x12000, scoped, tag = 'internal scratch']
  %s0 = inlined_call_operand.vmem [shape: f32[4,392,25], index: 0, kind: input, shape index: {}]
  %s1 = inlined_call_operand.vmem [shape: f32[25,128], index: 1, kind: input, shape index: {}]
  %s2 = inlined_call_operand.vmem [shape: f32[1,128], index: 2, kind: input, shape index: {}]
  %s3 = inlined_call_operand.vmem [shape: f32[392,128], index: 3, kind: output, shape index: {}]
  %s4 = sld [smem:[#allocation0]]
  $region22: #{model_forward.3} parent=0
    _
  %s6 = ssub.s32 1, %s4
  %s7 = scalar_select 0, %s6, %s4
  // Predicated region
  $region2: #{model_forward.3} parent=0 // pred_check
    _
  $region3: #{model_forward.3} parent=0 // pred_check_branch
    %9 = sbr.rel (0) target = $region5
  $region4: #{model_forward.3} parent=0 // pred_region
    _
  $region5: #{model_forward.3} parent=0 // pred_fallthru
    _
  // Predicated region
  $region6: #{model_forward.3} parent=0 // pred_check
    _
  $region7: #{model_forward.3} parent=0 // pred_check_branch
    %11 = sbr.rel (0) target = $region9
  $region8: #{model_forward.3} parent=0 // pred_region
    _
  $region9: #{model_forward.3} parent=0 // pred_fallthru
    _
  // Predicated region
  $region10: #{model_forward.3} parent=0 // pred_check
    _
  $region11: #{model_forward.3} parent=0 // pred_check_branch
    %13 = sbr.rel (0) target = $region13
  $region12: #{model_forward.3} parent=0 // pred_region
    _
  $region13: #{model_forward.3} parent=0 // pred_fallthru
    _
  %v14 = vld [vmem:[%s0] sm:$0xff]
  %v15 = vld [vmem:[%s0 + $0x8] sm:$0xff]
  %v16 = vld [vmem:[%s0 + $0x10] sm:$0xff]
  %v17 = vld [vmem:[%s0 + $0x18] sm:$0xff]
  %v18 = vld [vmem:[%s0 + $0x20] sm:$0xff]
  %v19 = vld [vmem:[%s0 + $0x28] sm:$0xff]
  %v20 = vld [vmem:[%s0 + $0x30] sm:$0xff]
  %v21 = vld [vmem:[%s0 + $0x38] sm:$0xff]
  %v22 = vld [vmem:[%s0 + $0x40] sm:$0xff]
  %v23 = vld [vmem:[%s0 + $0x48] sm:$0xff]
  %v24 = vld [vmem:[%s0 + $0x50] sm:$0xff]
  %v25 = vld [vmem:[%s0 + $0x58] sm:$0xff]
  %v26 = vld [vmem:[%s0 + $0x60] sm:$0xff]
  %v27 = vld [vmem:[%s0 + $0x68] sm:$0xff]
  %v28 = vld [vmem:[%s0 + $0x70] sm:$0xff]
  %v29 = vld [vmem:[%s0 + $0x78] sm:$0xff]
  %v30 = vld [vmem:[%s0 + $0x80] sm:$0xff]
  %v31 = vld [vmem:[%s0 + $0x88] sm:$0xff]
  %v32 = vld [vmem:[%s0 + $0x90] sm:$0xff]
  %v33 = vld [vmem:[%s0 + $0x98] sm:$0xff]
  %v34 = vld [vmem:[%s0 + $0xa0] sm:$0xff]
  %v35 = vld [vmem:[%s0 + $0xa8] sm:$0xff]
  %v36 = vld [vmem:[%s0 + $0xb0] sm:$0xff]
  %v37 = vld [vmem:[%s0 + $0xb8] sm:$0xff]
  %v38 = vld [vmem:[%s0 + $0xc0] sm:$0xff]
  %v39 = vld [vmem:[%s0 + $0xc8] sm:$0xff]
  %v40 = vld [vmem:[%s0 + $0xd0] sm:$0xff]
  %v41 = vld [vmem:[%s0 + $0xd8] sm:$0xff]
  %v42 = vld [vmem:[%s0 + $0xe0] sm:$0xff]
  %v43 = vld [vmem:[%s0 + $0xe8] sm:$0xff]
  %v44 = vld [vmem:[%s0 + $0xf0] sm:$0xff]
  %v45 = vld [vmem:[%s0 + $0xf8] sm:$0xff]
  %v46 = vld [vmem:[%s0 + $0x100] sm:$0xff]
  %v47 = vld [vmem:[%s0 + $0x108] sm:$0xff]
  %v48 = vld [vmem:[%s0 + $0x110] sm:$0xff]
  %v49 = vld [vmem:[%s0 + $0x118] sm:$0xff]
  %v50 = vld [vmem:[%s0 + $0x120] sm:$0xff]
  %v51 = vld [vmem:[%s0 + $0x128] sm:$0xff]
  %v52 = vld [vmem:[%s0 + $0x130] sm:$0xff]
  %v53 = vld [vmem:[%s0 + $0x138] sm:$0xff]
  %v54 = vld [vmem:[%s0 + $0x140] sm:$0xff]
  %v55 = vld [vmem:[%s0 + $0x148] sm:$0xff]
  %v56 = vld [vmem:[%s0 + $0x150] sm:$0xff]
  %v57 = vld [vmem:[%s0 + $0x158] sm:$0xff]
  %v58 = vld [vmem:[%s0 + $0x160] sm:$0xff]
  %v59 = vld [vmem:[%s0 + $0x168] sm:$0xff]
  %v60 = vld [vmem:[%s0 + $0x170] sm:$0xff]
  %v61 = vld [vmem:[%s0 + $0x178] sm:$0xff]
  %v62 = vld [vmem:[%s0 + $0x180] sm:$0xff]
  %v63 = vld [vmem:[%s1] sm:$0xff]
  %v64 = vld [vmem:[%s1 + $0x8] sm:$0xff]
  %v65 = vld [vmem:[%s1 + $0x10] sm:$0xff]
  %v66 = vld [vmem:[%s1 + $0x18] sm:$0x1]
  %vm67 = vcmask 203776
  %v69 = vsel %vm67, %v14, 0
  %v72 = vsel %vm67, %v15, 0
  %v75 = vsel %vm67, %v16, 0
  %v78 = vsel %vm67, %v17, 0
  %v81 = vsel %vm67, %v18, 0
  %v84 = vsel %vm67, %v19, 0
  %v87 = vsel %vm67, %v20, 0
  %v90 = vsel %vm67, %v21, 0
  %v93 = vsel %vm67, %v22, 0
  %v96 = vsel %vm67, %v23, 0
  %v99 = vsel %vm67, %v24, 0
  %v102 = vsel %vm67, %v25, 0
  %v105 = vsel %vm67, %v26, 0
  %v108 = vsel %vm67, %v27, 0
  %v111 = vsel %vm67, %v28, 0
  %v114 = vsel %vm67, %v29, 0
  %v117 = vsel %vm67, %v30, 0
  %v120 = vsel %vm67, %v31, 0
  %v123 = vsel %vm67, %v32, 0
  %v126 = vsel %vm67, %v33, 0
  %v129 = vsel %vm67, %v34, 0
  %v132 = vsel %vm67, %v35, 0
  %v135 = vsel %vm67, %v36, 0
  %v138 = vsel %vm67, %v37, 0
  %v141 = vsel %vm67, %v38, 0
  %v144 = vsel %vm67, %v39, 0
  %v147 = vsel %vm67, %v40, 0
  %v150 = vsel %vm67, %v41, 0
  %v153 = vsel %vm67, %v42, 0
  %v156 = vsel %vm67, %v43, 0
  %v159 = vsel %vm67, %v44, 0
  %v162 = vsel %vm67, %v45, 0
  %v165 = vsel %vm67, %v46, 0
  %v168 = vsel %vm67, %v47, 0
  %v171 = vsel %vm67, %v48, 0
  %v174 = vsel %vm67, %v49, 0
  %v177 = vsel %vm67, %v50, 0
  %v180 = vsel %vm67, %v51, 0
  %v183 = vsel %vm67, %v52, 0
  %v186 = vsel %vm67, %v53, 0
  %v189 = vsel %vm67, %v54, 0
  %v192 = vsel %vm67, %v55, 0
  %v195 = vsel %vm67, %v56, 0
  %v198 = vsel %vm67, %v57, 0
  %v201 = vsel %vm67, %v58, 0
  %v204 = vsel %vm67, %v59, 0
  %v207 = vsel %vm67, %v60, 0
  %v210 = vsel %vm67, %v61, 0
  %v213 = vsel %vm67, %v62, 0
  %vm215 = vcmask 1040384
  %v217 = vsel %vm215, %v66, 0
  %219 = vmatprep.subr.mxu0 0.0
  %220 = vmatpush1.msra.mxu0 %v63
  %221 = vmatprep.subr.mxu0 0.0
  %222 = vmatpush1.msra.mxu0 %v64
  %223 = vmatprep.subr.mxu0 0.0
  %224 = vmatpush1.msra.mxu0 %v65
  %225 = vmatprep.subr.mxu0 0.0
  %226 = vmatpush1.msra.mxu0 %v217
  %227 = vmatprep.subr.mxu0 0.0
  %228 = vmatpush1.msra.mxu0 0.0
  %229 = vmatprep.subr.mxu0 0.0
  %230 = vmatpush1.msra.mxu0 0.0
  %231 = vmatprep.subr.mxu0 0.0
  %232 = vmatpush1.msra.mxu0 0.0
  %233 = vmatprep.subr.mxu0 0.0
  %234 = vmatpush1.msra.mxu0 0.0
  %235 = vmatprep.subr.mxu0 0.0
  %236 = vmatpush1.msra.mxu0 0.0
  %237 = vmatprep.subr.mxu0 0.0
  %238 = vmatpush1.msra.mxu0 0.0
  %239 = vmatprep.subr.mxu0 0.0
  %240 = vmatpush1.msra.mxu0 0.0
  %241 = vmatprep.subr.mxu0 0.0
  %242 = vmatpush1.msra.mxu0 0.0
  %243 = vmatprep.subr.mxu0 0.0
  %244 = vmatpush1.msra.mxu0 0.0
  %245 = vmatprep.subr.mxu0 0.0
  %246 = vmatpush1.msra.mxu0 0.0
  %247 = vmatprep.subr.mxu0 0.0
  %248 = vmatpush1.msra.mxu0 0.0
  %249 = vmatprep.subr.mxu0 0.0
  %250 = vmatpush1.msra.mxu0 0.0
  %251 = vmatprep.subr.mxu0 0.0
  %252 = vmatpush1.msra.mxu0 0.0
  %253 = vmatprep.subr.mxu0 0.0
  %254 = vmatpush1.msra.mxu0 0.0
  %255 = vmatprep.subr.mxu0 0.0
  %256 = vmatpush1.msra.mxu0 0.0
  %257 = vmatprep.subr.mxu0 0.0
  %258 = vmatpush1.msra.mxu0 0.0
  %259 = vmatprep.subr.mxu0 0.0
  %260 = vmatpush1.msra.mxu0 0.0
  %261 = vmatprep.subr.mxu0 0.0
  %262 = vmatpush1.msra.mxu0 0.0
  %263 = vmatprep.subr.mxu0 0.0
  %264 = vmatpush1.msra.mxu0 0.0
  %265 = vmatprep.subr.mxu0 0.0
  %266 = vmatpush1.msra.mxu0 0.0
  %267 = vmatprep.subr.mxu0 0.0
  %268 = vmatpush1.msra.mxu0 0.0
  %269 = vmatprep.subr.mxu0 0.0
  %270 = vmatpush1.msra.mxu0 0.0
  %271 = vmatprep.subr.mxu0 0.0
  %272 = vmatpush1.msra.mxu0 0.0
  %273 = vmatprep.subr.mxu0 0.0
  %274 = vmatpush1.msra.mxu0 0.0
  %275 = vmatprep.subr.mxu0 0.0
  %276 = vmatpush1.msra.mxu0 0.0
  %277 = vmatprep.subr.mxu0 0.0
  %278 = vmatpush1.msra.mxu0 0.0
  %279 = vmatprep.subr.mxu0 0.0
  %280 = vmatpush1.msra.mxu0 0.0
  %281 = vmatprep.subr.mxu0 0.0
  %282 = vmatpush1.msra.mxu0 0.0
  %283 = vmatprep.mubr.f32.mxu0 0.0
  %284 = vmatmul.mubr.f32.gmra.mrb[0].mxu0 %v69
  %v285 = vpop.f32.mrb[0].mxu0
  %v286 = vadd.f32 0.0, %v285
  %v287 = vpop.f32.mrb[0].mxu0
  %288 = vmatprep.mubr.f32.mxu0 0.0
  %289 = vmatmul.mubr.f32.gmra.mrb[0].mxu0 %v72
  %v290 = vpop.f32.mrb[0].mxu0
  %v291 = vadd.f32 0.0, %v290
  %v292 = vpop.f32.mrb[0].mxu0
  %293 = vmatprep.mubr.f32.mxu0 0.0
  %294 = vmatmul.mubr.f32.gmra.mrb[0].mxu0 %v75
  %v295 = vpop.f32.mrb[0].mxu0
  %v296 = vadd.f32 0.0, %v295
  %v297 = vpop.f32.mrb[0].mxu0
  %298 = vmatprep.mubr.f32.mxu0 0.0
  %299 = vmatmul.mubr.f32.gmra.mrb[0].mxu0 %v78
  %v300 = vpop.f32.mrb[0].mxu0
  %v301 = vadd.f32 0.0, %v300
  %v302 = vpop.f32.mrb[0].mxu0
  %303 = vmatprep.mubr.f32.mxu0 0.0
  %304 = vmatmul.mubr.f32.gmra.mrb[0].mxu0 %v81
  %v305 = vpop.f32.mrb[0].mxu0
  %v306 = vadd.f32 0.0, %v305
  %v307 = vpop.f32.mrb[0].mxu0
  %308 = vmatprep.mubr.f32.mxu0 0.0
  %309 = vmatmul.mubr.f32.gmra.mrb[0].mxu0 %v84
  %v310 = vpop.f32.mrb[0].mxu0
  %v311 = vadd.f32 0.0, %v310
  %v312 = vpop.f32.mrb[0].mxu0
  %313 = vmatprep.mubr.f32.mxu0 0.0
  %314 = vmatmul.mubr.f32.gmra.mrb[0].mxu0 %v87
  %v315 = vpop.f32.mrb[0].mxu0
  %v316 = vadd.f32 0.0, %v315
  %v317 = vpop.f32.mrb[0].mxu0
  %318 = vmatprep.mubr.f32.mxu0 0.0
  %319 = vmatmul.mubr.f32.gmra.mrb[0].mxu0 %v90
  %v320 = vpop.f32.mrb[0].mxu0
  %v321 = vadd.f32 0.0, %v320
  %v322 = vpop.f32.mrb[0].mxu0
  %323 = vmatprep.mubr.f32.mxu0 0.0
  %324 = vmatmul.mubr.f32.gmra.mrb[0].mxu0 %v93
  %v325 = vpop.f32.mrb[0].mxu0
  %v326 = vadd.f32 0.0, %v325
  %v327 = vpop.f32.mrb[0].mxu0
  %328 = vmatprep.mubr.f32.mxu0 0.0
  %329 = vmatmul.mubr.f32.gmra.mrb[0].mxu0 %v96
  %v330 = vpop.f32.mrb[0].mxu0
  %v331 = vadd.f32 0.0, %v330
  %v332 = vpop.f32.mrb[0].mxu0
  %333 = vmatprep.mubr.f32.mxu0 0.0
  %334 = vmatmul.mubr.f32.gmra.mrb[0].mxu0 %v99
  %v335 = vpop.f32.mrb[0].mxu0
  %v336 = vadd.f32 0.0, %v335
  %v337 = vpop.f32.mrb[0].mxu0
  %338 = vmatprep.mubr.f32.mxu0 0.0
  %339 = vmatmul.mubr.f32.gmra.mrb[0].mxu0 %v102
  %v340 = vpop.f32.mrb[0].mxu0
  %v341 = vadd.f32 0.0, %v340
  %v342 = vpop.f32.mrb[0].mxu0
  %343 = vmatprep.mubr.f32.mxu0 0.0
  %344 = vmatmul.mubr.f32.gmra.mrb[0].mxu0 %v105
  %v345 = vpop.f32.mrb[0].mxu0
  %v346 = vadd.f32 0.0, %v345
  %v347 = vpop.f32.mrb[0].mxu0
  %348 = vmatprep.mubr.f32.mxu0 0.0
  %349 = vmatmul.mubr.f32.gmra.mrb[0].mxu0 %v108
  %v350 = vpop.f32.mrb[0].mxu0
  %v351 = vadd.f32 0.0, %v350
  %v352 = vpop.f32.mrb[0].mxu0
  %353 = vmatprep.mubr.f32.mxu0 0.0
  %354 = vmatmul.mubr.f32.gmra.mrb[0].mxu0 %v111
  %v355 = vpop.f32.mrb[0].mxu0
  %v356 = vadd.f32 0.0, %v355
  %v357 = vpop.f32.mrb[0].mxu0
  %358 = vmatprep.mubr.f32.mxu0 0.0
  %359 = vmatmul.mubr.f32.gmra.mrb[0].mxu0 %v114
  %v360 = vpop.f32.mrb[0].mxu0
  %v361 = vadd.f32 0.0, %v360
  %v362 = vpop.f32.mrb[0].mxu0
  %363 = vmatprep.mubr.f32.mxu0 0.0
  %364 = vmatmul.mubr.f32.gmra.mrb[0].mxu0 %v117
  %v365 = vpop.f32.mrb[0].mxu0
  %v366 = vadd.f32 0.0, %v365
  %v367 = vpop.f32.mrb[0].mxu0
  %368 = vmatprep.mubr.f32.mxu0 0.0
  %369 = vmatmul.mubr.f32.gmra.mrb[0].mxu0 %v120
  %v370 = vpop.f32.mrb[0].mxu0
  %v371 = vadd.f32 0.0, %v370
  %v372 = vpop.f32.mrb[0].mxu0
  %373 = vmatprep.mubr.f32.mxu0 0.0
  %374 = vmatmul.mubr.f32.gmra.mrb[0].mxu0 %v123
  %v375 = vpop.f32.mrb[0].mxu0
  %v376 = vadd.f32 0.0, %v375
  %v377 = vpop.f32.mrb[0].mxu0
  %378 = vmatprep.mubr.f32.mxu0 0.0
  %379 = vmatmul.mubr.f32.gmra.mrb[0].mxu0 %v126
  %v380 = vpop.f32.mrb[0].mxu0
  %v381 = vadd.f32 0.0, %v380
  %v382 = vpop.f32.mrb[0].mxu0
  %383 = vmatprep.mubr.f32.mxu0 0.0
  %384 = vmatmul.mubr.f32.gmra.mrb[0].mxu0 %v129
  %v385 = vpop.f32.mrb[0].mxu0
  %v386 = vadd.f32 0.0, %v385
  %v387 = vpop.f32.mrb[0].mxu0
  %388 = vmatprep.mubr.f32.mxu0 0.0
  %389 = vmatmul.mubr.f32.gmra.mrb[0].mxu0 %v132
  %v390 = vpop.f32.mrb[0].mxu0
  %v391 = vadd.f32 0.0, %v390
  %v392 = vpop.f32.mrb[0].mxu0
  %393 = vmatprep.mubr.f32.mxu0 0.0
  %394 = vmatmul.mubr.f32.gmra.mrb[0].mxu0 %v135
  %v395 = vpop.f32.mrb[0].mxu0
  %v396 = vadd.f32 0.0, %v395
  %v397 = vpop.f32.mrb[0].mxu0
  %398 = vmatprep.mubr.f32.mxu0 0.0
  %399 = vmatmul.mubr.f32.gmra.mrb[0].mxu0 %v138
  %v400 = vpop.f32.mrb[0].mxu0
  %v401 = vadd.f32 0.0, %v400
  %v402 = vpop.f32.mrb[0].mxu0
  %403 = vmatprep.mubr.f32.mxu0 0.0
  %404 = vmatmul.mubr.f32.gmra.mrb[0].mxu0 %v141
  %v405 = vpop.f32.mrb[0].mxu0
  %v406 = vadd.f32 0.0, %v405
  %v407 = vpop.f32.mrb[0].mxu0
  %408 = vmatprep.mubr.f32.mxu0 0.0
  %409 = vmatmul.mubr.f32.gmra.mrb[0].mxu0 %v144
  %v410 = vpop.f32.mrb[0].mxu0
  %v411 = vadd.f32 0.0, %v410
  %v412 = vpop.f32.mrb[0].mxu0
  %413 = vmatprep.mubr.f32.mxu0 0.0
  %414 = vmatmul.mubr.f32.gmra.mrb[0].mxu0 %v147
  %v415 = vpop.f32.mrb[0].mxu0
  %v416 = vadd.f32 0.0, %v415
  %v417 = vpop.f32.mrb[0].mxu0
  %418 = vmatprep.mubr.f32.mxu0 0.0
  %419 = vmatmul.mubr.f32.gmra.mrb[0].mxu0 %v150
  %v420 = vpop.f32.mrb[0].mxu0
  %v421 = vadd.f32 0.0, %v420
  %v422 = vpop.f32.mrb[0].mxu0
  %423 = vmatprep.mubr.f32.mxu0 0.0
  %424 = vmatmul.mubr.f32.gmra.mrb[0].mxu0 %v153
  %v425 = vpop.f32.mrb[0].mxu0
  %v426 = vadd.f32 0.0, %v425
  %v427 = vpop.f32.mrb[0].mxu0
  %428 = vmatprep.mubr.f32.mxu0 0.0
  %429 = vmatmul.mubr.f32.gmra.mrb[0].mxu0 %v156
  %v430 = vpop.f32.mrb[0].mxu0
  %v431 = vadd.f32 0.0, %v430
  %v432 = vpop.f32.mrb[0].mxu0
  %433 = vmatprep.mubr.f32.mxu0 0.0
  %434 = vmatmul.mubr.f32.gmra.mrb[0].mxu0 %v159
  %v435 = vpop.f32.mrb[0].mxu0
  %v436 = vadd.f32 0.0, %v435
  %v437 = vpop.f32.mrb[0].mxu0
  %438 = vmatprep.mubr.f32.mxu0 0.0
  %439 = vmatmul.mubr.f32.gmra.mrb[0].mxu0 %v162
  %v440 = vpop.f32.mrb[0].mxu0
  %v441 = vadd.f32 0.0, %v440
  %v442 = vpop.f32.mrb[0].mxu0
  %443 = vmatprep.mubr.f32.mxu0 0.0
  %444 = vmatmul.mubr.f32.gmra.mrb[0].mxu0 %v165
  %v445 = vpop.f32.mrb[0].mxu0
  %v446 = vadd.f32 0.0, %v445
  %v447 = vpop.f32.mrb[0].mxu0
  %448 = vmatprep.mubr.f32.mxu0 0.0
  %449 = vmatmul.mubr.f32.gmra.mrb[0].mxu0 %v168
  %v450 = vpop.f32.mrb[0].mxu0
  %v451 = vadd.f32 0.0, %v450
  %v452 = vpop.f32.mrb[0].mxu0
  %453 = vmatprep.mubr.f32.mxu0 0.0
  %454 = vmatmul.mubr.f32.gmra.mrb[0].mxu0 %v171
  %v455 = vpop.f32.mrb[0].mxu0
  %v456 = vadd.f32 0.0, %v455
  %v457 = vpop.f32.mrb[0].mxu0
  %458 = vmatprep.mubr.f32.mxu0 0.0
  %459 = vmatmul.mubr.f32.gmra.mrb[0].mxu0 %v174
  %v460 = vpop.f32.mrb[0].mxu0
  %v461 = vadd.f32 0.0, %v460
  %v462 = vpop.f32.mrb[0].mxu0
  %463 = vmatprep.mubr.f32.mxu0 0.0
  %464 = vmatmul.mubr.f32.gmra.mrb[0].mxu0 %v177
  %v465 = vpop.f32.mrb[0].mxu0
  %v466 = vadd.f32 0.0, %v465
  %v467 = vpop.f32.mrb[0].mxu0
  %468 = vmatprep.mubr.f32.mxu0 0.0
  %469 = vmatmul.mubr.f32.gmra.mrb[0].mxu0 %v180
  %v470 = vpop.f32.mrb[0].mxu0
  %v471 = vadd.f32 0.0, %v470
  %v472 = vpop.f32.mrb[0].mxu0
  %473 = vmatprep.mubr.f32.mxu0 0.0
  %474 = vmatmul.mubr.f32.gmra.mrb[0].mxu0 %v183
  %v475 = vpop.f32.mrb[0].mxu0
  %v476 = vadd.f32 0.0, %v475
  %v477 = vpop.f32.mrb[0].mxu0
  %478 = vmatprep.mubr.f32.mxu0 0.0
  %479 = vmatmul.mubr.f32.gmra.mrb[0].mxu0 %v186
  %v480 = vpop.f32.mrb[0].mxu0
  %v481 = vadd.f32 0.0, %v480
  %v482 = vpop.f32.mrb[0].mxu0
  %483 = vmatprep.mubr.f32.mxu0 0.0
  %484 = vmatmul.mubr.f32.gmra.mrb[0].mxu0 %v189
  %v485 = vpop.f32.mrb[0].mxu0
  %v486 = vadd.f32 0.0, %v485
  %v487 = vpop.f32.mrb[0].mxu0
  %488 = vmatprep.mubr.f32.mxu0 0.0
  %489 = vmatmul.mubr.f32.gmra.mrb[0].mxu0 %v192
  %v490 = vpop.f32.mrb[0].mxu0
  %v491 = vadd.f32 0.0, %v490
  %v492 = vpop.f32.mrb[0].mxu0
  %493 = vmatprep.mubr.f32.mxu0 0.0
  %494 = vmatmul.mubr.f32.gmra.mrb[0].mxu0 %v195
  %v495 = vpop.f32.mrb[0].mxu0
  %v496 = vadd.f32 0.0, %v495
  %v497 = vpop.f32.mrb[0].mxu0
  %498 = vmatprep.mubr.f32.mxu0 0.0
  %499 = vmatmul.mubr.f32.gmra.mrb[0].mxu0 %v198
  %v500 = vpop.f32.mrb[0].mxu0
  %v501 = vadd.f32 0.0, %v500
  %v502 = vpop.f32.mrb[0].mxu0
  %503 = vmatprep.mubr.f32.mxu0 0.0
  %504 = vmatmul.mubr.f32.gmra.mrb[0].mxu0 %v201
  %v505 = vpop.f32.mrb[0].mxu0
  %v506 = vadd.f32 0.0, %v505
  %v507 = vpop.f32.mrb[0].mxu0
  %508 = vmatprep.mubr.f32.mxu0 0.0
  %509 = vmatmul.mubr.f32.gmra.mrb[0].mxu0 %v204
  %v510 = vpop.f32.mrb[0].mxu0
  %v511 = vadd.f32 0.0, %v510
  %v512 = vpop.f32.mrb[0].mxu0
  %513 = vmatprep.mubr.f32.mxu0 0.0
  %514 = vmatmul.mubr.f32.gmra.mrb[0].mxu0 %v207
  %v515 = vpop.f32.mrb[0].mxu0
  %v516 = vadd.f32 0.0, %v515
  %v517 = vpop.f32.mrb[0].mxu0
  %518 = vmatprep.mubr.f32.mxu0 0.0
  %519 = vmatmul.mubr.f32.gmra.mrb[0].mxu0 %v210
  %v520 = vpop.f32.mrb[0].mxu0
  %v521 = vadd.f32 0.0, %v520
  %v522 = vpop.f32.mrb[0].mxu0
  %523 = vmatprep.mubr.f32.mxu0 0.0
  %524 = vmatmul.mubr.f32.gmra.mrb[0].mxu0 %v213
  %v525 = vpop.f32.mrb[0].mxu0
  %v526 = vadd.f32 0.0, %v525
  %v527 = vpop.f32.mrb[0].mxu0
  %528 = vdwg.mxu0
  %s529 = scalar_lea.vmem %s0, 392
  %v530 = vld [vmem:[%s529] sm:$0xff]
  %v531 = vld [vmem:[%s529 + $0x8] sm:$0xff]
  %v532 = vld [vmem:[%s529 + $0x10] sm:$0xff]
  %v533 = vld [vmem:[%s529 + $0x18] sm:$0xff]
  %v534 = vld [vmem:[%s529 + $0x20] sm:$0xff]
  %v535 = vld [vmem:[%s529 + $0x28] sm:$0xff]
  %v536 = vld [vmem:[%s529 + $0x30] sm:$0xff]
  %v537 = vld [vmem:[%s529 + $0x38] sm:$0xff]
  %v538 = vld [vmem:[%s529 + $0x40] sm:$0xff]
  %v539 = vld [vmem:[%s529 + $0x48] sm:$0xff]
  %v540 = vld [vmem:[%s529 + $0x50] sm:$0xff]
  %v541 = vld [vmem:[%s529 + $0x58] sm:$0xff]
  %v542 = vld [vmem:[%s529 + $0x60] sm:$0xff]
  %v543 = vld [vmem:[%s529 + $0x68] sm:$0xff]
  %v544 = vld [vmem:[%s529 + $0x70] sm:$0xff]
  %v545 = vld [vmem:[%s529 + $0x78] sm:$0xff]
  %v546 = vld [vmem:[%s529 + $0x80] sm:$0xff]
  %v547 = vld [vmem:[%s529 + $0x88] sm:$0xff]
  %v548 = vld [vmem:[%s529 + $0x90] sm:$0xff]
  %v549 = vld [vmem:[%s529 + $0x98] sm:$0xff]
  %v550 = vld [vmem:[%s529 + $0xa0] sm:$0xff]
  %v551 = vld [vmem:[%s529 + $0xa8] sm:$0xff]
  %v552 = vld [vmem:[%s529 + $0xb0] sm:$0xff]
  %v553 = vld [vmem:[%s529 + $0xb8] sm:$0xff]
  %v554 = vld [vmem:[%s529 + $0xc0] sm:$0xff]
  %v555 = vld [vmem:[%s529 + $0xc8] sm:$0xff]
  %v556 = vld [vmem:[%s529 + $0xd0] sm:$0xff]
  %v557 = vld [vmem:[%s529 + $0xd8] sm:$0xff]
  %v558 = vld [vmem:[%s529 + $0xe0] sm:$0xff]
  %v559 = vld [vmem:[%s529 + $0xe8] sm:$0xff]
  %v560 = vld [vmem:[%s529 + $0xf0] sm:$0xff]
  %v561 = vld [vmem:[%s529 + $0xf8] sm:$0xff]
  %v562 = vld [vmem:[%s529 + $0x100] sm:$0xff]
  %v563 = vld [vmem:[%s529 + $0x108] sm:$0xff]
  %v564 = vld [vmem:[%s529 + $0x110] sm:$0xff]
  %v565 = vld [vmem:[%s529 + $0x118] sm:$0xff]
  %v566 = vld [vmem:[%s529 + $0x120] sm:$0xff]
  %v567 = vld [vmem:[%s529 + $0x128] sm:$0xff]
  %v568 = vld [vmem:[%s529 + $0x130] sm:$0xff]
  %v569 = vld [vmem:[%s529 + $0x138] sm:$0xff]
  %v570 = vld [vmem:[%s529 + $0x140] sm:$0xff]
  %v571 = vld [vmem:[%s529 + $0x148] sm:$0xff]
  %v572 = vld [vmem:[%s529 + $0x150] sm:$0xff]
  %v573 = vld [vmem:[%s529 + $0x158] sm:$0xff]
  %v574 = vld [vmem:[%s529 + $0x160] sm:$0xff]
  %v575 = vld [vmem:[%s529 + $0x168] sm:$0xff]
  %v576 = vld [vmem:[%s529 + $0x170] sm:$0xff]
  %v577 = vld [vmem:[%s529 + $0x178] sm:$0xff]
  %v578 = vld [vmem:[%s529 + $0x180] sm:$0xff]
  %v580 = vsel %vm67, %v530, 0
  %v583 = vsel %vm67, %v531, 0
  %v586 = vsel %vm67, %v532, 0
  %v589 = vsel %vm67, %v533, 0
  %v592 = vsel %vm67, %v534, 0
  %v595 = vsel %vm67, %v535, 0
  %v598 = vsel %vm67, %v536, 0
  %v601 = vsel %vm67, %v537, 0
  %v604 = vsel %vm67, %v538, 0
  %v607 = vsel %vm67, %v539, 0
  %v610 = vsel %vm67, %v540, 0
  %v613 = vsel %vm67, %v541, 0
  %v616 = vsel %vm67, %v542, 0
  %v619 = vsel %vm67, %v543, 0
  %v622 = vsel %vm67, %v544, 0
  %v625 = vsel %vm67, %v545, 0
  %v628 = vsel %vm67, %v546, 0
  %v631 = vsel %vm67, %v547, 0
  %v634 = vsel %vm67, %v548, 0
  %v637 = vsel %vm67, %v549, 0
  %v640 = vsel %vm67, %v550, 0
  %v643 = vsel %vm67, %v551, 0
  %v646 = vsel %vm67, %v552, 0
  %v649 = vsel %vm67, %v553, 0
  %v652 = vsel %vm67, %v554, 0
  %v655 = vsel %vm67, %v555, 0
  %v658 = vsel %vm67, %v556, 0
  %v661 = vsel %vm67, %v557, 0
  %v664 = vsel %vm67, %v558, 0
  %v667 = vsel %vm67, %v559, 0
  %v670 = vsel %vm67, %v560, 0
  %v673 = vsel %vm67, %v561, 0
  %v676 = vsel %vm67, %v562, 0
  %v679 = vsel %vm67, %v563, 0
  %v682 = vsel %vm67, %v564, 0
  %v685 = vsel %vm67, %v565, 0
  %v688 = vsel %vm67, %v566, 0
  %v691 = vsel %vm67, %v567, 0
  %v694 = vsel %vm67, %v568, 0
  %v697 = vsel %vm67, %v569, 0
  %v700 = vsel %vm67, %v570, 0
  %v703 = vsel %vm67, %v571, 0
  %v706 = vsel %vm67, %v572, 0
  %v709 = vsel %vm67, %v573, 0
  %v712 = vsel %vm67, %v574, 0
  %v715 = vsel %vm67, %v575, 0
  %v718 = vsel %vm67, %v576, 0
  %v721 = vsel %vm67, %v577, 0
  %v724 = vsel %vm67, %v578, 0
  %726 = vmatprep.subr.mxu0 0.0
  %727 = vmatpush1.msra.mxu0 %v63
  %728 = vmatprep.subr.mxu0 0.0
  %729 = vmatpush1.msra.mxu0 %v64
  %730 = vmatprep.subr.mxu0 0.0
  %731 = vmatpush1.msra.mxu0 %v65
  %732 = vmatprep.subr.mxu0 0.0
  %733 = vmatpush1.msra.mxu0 %v217
  %734 = vmatprep.subr.mxu0 0.0
  %735 = vmatpush1.msra.mxu0 0.0
  %736 = vmatprep.subr.mxu0 0.0
  %737 = vmatpush1.msra.mxu0 0.0
  %738 = vmatprep.subr.mxu0 0.0
  %739 = vmatpush1.msra.mxu0 0.0
  %740 = vmatprep.subr.mxu0 0.0
  %741 = vmatpush1.msra.mxu0 0.0
  %742 = vmatprep.subr.mxu0 0.0
  %743 = vmatpush1.msra.mxu0 0.0
  %744 = vmatprep.subr.mxu0 0.0
  %745 = vmatpush1.msra.mxu0 0.0
  %746 = vmatprep.subr.mxu0 0.0
  %747 = vmatpush1.msra.mxu0 0.0
  %748 = vmatprep.subr.mxu0 0.0
  %749 = vmatpush1.msra.mxu0 0.0
  %750 = vmatprep.subr.mxu0 0.0
  %751 = vmatpush1.msra.mxu0 0.0
  %752 = vmatprep.subr.mxu0 0.0
  %753 = vmatpush1.msra.mxu0 0.0
  %754 = vmatprep.subr.mxu0 0.0
  %755 = vmatpush1.msra.mxu0 0.0
  %756 = vmatprep.subr.mxu0 0.0
  %757 = vmatpush1.msra.mxu0 0.0
  %758 = vmatprep.subr.mxu0 0.0
  %759 = vmatpush1.msra.mxu0 0.0
  %760 = vmatprep.subr.mxu0 0.0
  %761 = vmatpush1.msra.mxu0 0.0
  %762 = vmatprep.subr.mxu0 0.0
  %763 = vmatpush1.msra.mxu0 0.0
  %764 = vmatprep.subr.mxu0 0.0
  %765 = vmatpush1.msra.mxu0 0.0
  %766 = vmatprep.subr.mxu0 0.0
  %767 = vmatpush1.msra.mxu0 0.0
  %768 = vmatprep.subr.mxu0 0.0
  %769 = vmatpush1.msra.mxu0 0.0
  %770 = vmatprep.subr.mxu0 0.0
  %771 = vmatpush1.msra.mxu0 0.0
  %772 = vmatprep.subr.mxu0 0.0
  %773 = vmatpush1.msra.mxu0 0.0
  %774 = vmatprep.subr.mxu0 0.0
  %775 = vmatpush1.msra.mxu0 0.0
  %776 = vmatprep.subr.mxu0 0.0
  %777 = vmatpush1.msra.mxu0 0.0
  %778 = vmatprep.subr.mxu0 0.0
  %779 = vmatpush1.msra.mxu0 0.0
  %780 = vmatprep.subr.mxu0 0.0
  %781 = vmatpush1.msra.mxu0 0.0
  %782 = vmatprep.subr.mxu0 0.0
  %783 = vmatpush1.msra.mxu0 0.0
  %784 = vmatprep.subr.mxu0 0.0
  %785 = vmatpush1.msra.mxu0 0.0
  %786 = vmatprep.subr.mxu0 0.0
  %787 = vmatpush1.msra.mxu0 0.0
  %788 = vmatprep.subr.mxu0 0.0
  %789 = vmatpush1.msra.mxu0 0.0
  %790 = vmatprep.mubr.f32.mxu0 0.0
  %791 = vmatmul.mubr.f32.gmra.mrb[0].mxu0 %v580
  %v792 = vpop.f32.mrb[0].mxu0
  %v793 = vadd.f32 0.0, %v792
  %v794 = vpop.f32.mrb[0].mxu0
  %795 = vmatprep.mubr.f32.mxu0 0.0
  %796 = vmatmul.mubr.f32.gmra.mrb[0].mxu0 %v583
  %v797 = vpop.f32.mrb[0].mxu0
  %v798 = vadd.f32 0.0, %v797
  %v799 = vpop.f32.mrb[0].mxu0
  %800 = vmatprep.mubr.f32.mxu0 0.0
  %801 = vmatmul.mubr.f32.gmra.mrb[0].mxu0 %v586
  %v802 = vpop.f32.mrb[0].mxu0
  %v803 = vadd.f32 0.0, %v802
  %v804 = vpop.f32.mrb[0].mxu0
  %805 = vmatprep.mubr.f32.mxu0 0.0
  %806 = vmatmul.mubr.f32.gmra.mrb[0].mxu0 %v589
  %v807 = vpop.f32.mrb[0].mxu0
  %v808 = vadd.f32 0.0, %v807
  %v809 = vpop.f32.mrb[0].mxu0
  %810 = vmatprep.mubr.f32.mxu0 0.0
  %811 = vmatmul.mubr.f32.gmra.mrb[0].mxu0 %v592
  %v812 = vpop.f32.mrb[0].mxu0
  %v813 = vadd.f32 0.0, %v812
  %v814 = vpop.f32.mrb[0].mxu0
  %815 = vmatprep.mubr.f32.mxu0 0.0
  %816 = vmatmul.mubr.f32.gmra.mrb[0].mxu0 %v595
  %v817 = vpop.f32.mrb[0].mxu0
  %v818 = vadd.f32 0.0, %v817
  %v819 = vpop.f32.mrb[0].mxu0
  %820 = vmatprep.mubr.f32.mxu0 0.0
  %821 = vmatmul.mubr.f32.gmra.mrb[0].mxu0 %v598
  %v822 = vpop.f32.mrb[0].mxu0
  %v823 = vadd.f32 0.0, %v822
  %v824 = vpop.f32.mrb[0].mxu0
  %825 = vmatprep.mubr.f32.mxu0 0.0
  %826 = vmatmul.mubr.f32.gmra.mrb[0].mxu0 %v601
  %v827 = vpop.f32.mrb[0].mxu0
  %v828 = vadd.f32 0.0, %v827
  %v829 = vpop.f32.mrb[0].mxu0
  %830 = vmatprep.mubr.f32.mxu0 0.0
  %831 = vmatmul.mubr.f32.gmra.mrb[0].mxu0 %v604
  %v832 = vpop.f32.mrb[0].mxu0
  %v833 = vadd.f32 0.0, %v832
  %v834 = vpop.f32.mrb[0].mxu0
  %835 = vmatprep.mubr.f32.mxu0 0.0
  %836 = vmatmul.mubr.f32.gmra.mrb[0].mxu0 %v607
  %v837 = vpop.f32.mrb[0].mxu0
  %v838 = vadd.f32 0.0, %v837
  %v839 = vpop.f32.mrb[0].mxu0
  %840 = vmatprep.mubr.f32.mxu0 0.0
  %841 = vmatmul.mubr.f32.gmra.mrb[0].mxu0 %v610
  %v842 = vpop.f32.mrb[0].mxu0
  %v843 = vadd.f32 0.0, %v842
  %v844 = vpop.f32.mrb[0].mxu0
  %845 = vmatprep.mubr.f32.mxu0 0.0
  %846 = vmatmul.mubr.f32.gmra.mrb[0].mxu0 %v613
  %v847 = vpop.f32.mrb[0].mxu0
  %v848 = vadd.f32 0.0, %v847
  %v849 = vpop.f32.mrb[0].mxu0
  %850 = vmatprep.mubr.f32.mxu0 0.0
  %851 = vmatmul.mubr.f32.gmra.mrb[0].mxu0 %v616
  %v852 = vpop.f32.mrb[0].mxu0
  %v853 = vadd.f32 0.0, %v852
  %v854 = vpop.f32.mrb[0].mxu0
  %855 = vmatprep.mubr.f32.mxu0 0.0
  %856 = vmatmul.mubr.f32.gmra.mrb[0].mxu0 %v619
  %v857 = vpop.f32.mrb[0].mxu0
  %v858 = vadd.f32 0.0, %v857
  %v859 = vpop.f32.mrb[0].mxu0
  %860 = vmatprep.mubr.f32.mxu0 0.0
  %861 = vmatmul.mubr.f32.gmra.mrb[0].mxu0 %v622
  %v862 = vpop.f32.mrb[0].mxu0
  %v863 = vadd.f32 0.0, %v862
  %v864 = vpop.f32.mrb[0].mxu0
  %865 = vmatprep.mubr.f32.mxu0 0.0
  %866 = vmatmul.mubr.f32.gmra.mrb[0].mxu0 %v625
  %v867 = vpop.f32.mrb[0].mxu0
  %v868 = vadd.f32 0.0, %v867
  %v869 = vpop.f32.mrb[0].mxu0
  %870 = vmatprep.mubr.f32.mxu0 0.0
  %871 = vmatmul.mubr.f32.gmra.mrb[0].mxu0 %v628
  %v872 = vpop.f32.mrb[0].mxu0
  %v873 = vadd.f32 0.0, %v872
  %v874 = vpop.f32.mrb[0].mxu0
  %875 = vmatprep.mubr.f32.mxu0 0.0
  %876 = vmatmul.mubr.f32.gmra.mrb[0].mxu0 %v631
  %v877 = vpop.f32.mrb[0].mxu0
  %v878 = vadd.f32 0.0, %v877
  %v879 = vpop.f32.mrb[0].mxu0
  %880 = vmatprep.mubr.f32.mxu0 0.0
  %881 = vmatmul.mubr.f32.gmra.mrb[0].mxu0 %v634
  %v882 = vpop.f32.mrb[0].mxu0
  %v883 = vadd.f32 0.0, %v882
  %v884 = vpop.f32.mrb[0].mxu0
  %885 = vmatprep.mubr.f32.mxu0 0.0
  %886 = vmatmul.mubr.f32.gmra.mrb[0].mxu0 %v637
  %v887 = vpop.f32.mrb[0].mxu0
  %v888 = vadd.f32 0.0, %v887
  %v889 = vpop.f32.mrb[0].mxu0
  %890 = vmatprep.mubr.f32.mxu0 0.0
  %891 = vmatmul.mubr.f32.gmra.mrb[0].mxu0 %v640
  %v892 = vpop.f32.mrb[0].mxu0
  %v893 = vadd.f32 0.0, %v892
  %v894 = vpop.f32.mrb[0].mxu0
  %895 = vmatprep.mubr.f32.mxu0 0.0
  %896 = vmatmul.mubr.f32.gmra.mrb[0].mxu0 %v643
  %v897 = vpop.f32.mrb[0].mxu0
  %v898 = vadd.f32 0.0, %v897
  %v899 = vpop.f32.mrb[0].mxu0
  %900 = vmatprep.mubr.f32.mxu0 0.0
  %901 = vmatmul.mubr.f32.gmra.mrb[0].mxu0 %v646
  %v902 = vpop.f32.mrb[0].mxu0
  %v903 = vadd.f32 0.0, %v902
  %v904 = vpop.f32.mrb[0].mxu0
  %905 = vmatprep.mubr.f32.mxu0 0.0
  %906 = vmatmul.mubr.f32.gmra.mrb[0].mxu0 %v649
  %v907 = vpop.f32.mrb[0].mxu0
  %v908 = vadd.f32 0.0, %v907
  %v909 = vpop.f32.mrb[0].mxu0
  %910 = vmatprep.mubr.f32.mxu0 0.0
  %911 = vmatmul.mubr.f32.gmra.mrb[0].mxu0 %v652
  %v912 = vpop.f32.mrb[0].mxu0
  %v913 = vadd.f32 0.0, %v912
  %v914 = vpop.f32.mrb[0].mxu0
  %915 = vmatprep.mubr.f32.mxu0 0.0
  %916 = vmatmul.mubr.f32.gmra.mrb[0].mxu0 %v655
  %v917 = vpop.f32.mrb[0].mxu0
  %v918 = vadd.f32 0.0, %v917
  %v919 = vpop.f32.mrb[0].mxu0
  %920 = vmatprep.mubr.f32.mxu0 0.0
  %921 = vmatmul.mubr.f32.gmra.mrb[0].mxu0 %v658
  %v922 = vpop.f32.mrb[0].mxu0
  %v923 = vadd.f32 0.0, %v922
  %v924 = vpop.f32.mrb[0].mxu0
  %925 = vmatprep.mubr.f32.mxu0 0.0
  %926 = vmatmul.mubr.f32.gmra.mrb[0].mxu0 %v661
  %v927 = vpop.f32.mrb[0].mxu0
  %v928 = vadd.f32 0.0, %v927
  %v929 = vpop.f32.mrb[0].mxu0
  %930 = vmatprep.mubr.f32.mxu0 0.0
  %931 = vmatmul.mubr.f32.gmra.mrb[0].mxu0 %v664
  %v932 = vpop.f32.mrb[0].mxu0
  %v933 = vadd.f32 0.0, %v932
  %v934 = vpop.f32.mrb[0].mxu0
  %935 = vmatprep.mubr.f32.mxu0 0.0
  %936 = vmatmul.mubr.f32.gmra.mrb[0].mxu0 %v667
  %v937 = vpop.f32.mrb[0].mxu0
  %v938 = vadd.f32 0.0, %v937
  %v939 = vpop.f32.mrb[0].mxu0
  %940 = vmatprep.mubr.f32.mxu0 0.0
  %941 = vmatmul.mubr.f32.gmra.mrb[0].mxu0 %v670
  %v942 = vpop.f32.mrb[0].mxu0
  %v943 = vadd.f32 0.0, %v942
  %v944 = vpop.f32.mrb[0].mxu0
  %945 = vmatprep.mubr.f32.mxu0 0.0
  %946 = vmatmul.mubr.f32.gmra.mrb[0].mxu0 %v673
  %v947 = vpop.f32.mrb[0].mxu0
  %v948 = vadd.f32 0.0, %v947
  %v949 = vpop.f32.mrb[0].mxu0
  %950 = vmatprep.mubr.f32.mxu0 0.0
  %951 = vmatmul.mubr.f32.gmra.mrb[0].mxu0 %v676
  %v952 = vpop.f32.mrb[0].mxu0
  %v953 = vadd.f32 0.0, %v952
  %v954 = vpop.f32.mrb[0].mxu0
  %955 = vmatprep.mubr.f32.mxu0 0.0
  %956 = vmatmul.mubr.f32.gmra.mrb[0].mxu0 %v679
  %v957 = vpop.f32.mrb[0].mxu0
  %v958 = vadd.f32 0.0, %v957
  %v959 = vpop.f32.mrb[0].mxu0
  %960 = vmatprep.mubr.f32.mxu0 0.0
  %961 = vmatmul.mubr.f32.gmra.mrb[0].mxu0 %v682
  %v962 = vpop.f32.mrb[0].mxu0
  %v963 = vadd.f32 0.0, %v962
  %v964 = vpop.f32.mrb[0].mxu0
  %965 = vmatprep.mubr.f32.mxu0 0.0
  %966 = vmatmul.mubr.f32.gmra.mrb[0].mxu0 %v685
  %v967 = vpop.f32.mrb[0].mxu0
  %v968 = vadd.f32 0.0, %v967
  %v969 = vpop.f32.mrb[0].mxu0
  %970 = vmatprep.mubr.f32.mxu0 0.0
  %971 = vmatmul.mubr.f32.gmra.mrb[0].mxu0 %v688
  %v972 = vpop.f32.mrb[0].mxu0
  %v973 = vadd.f32 0.0, %v972
  %v974 = vpop.f32.mrb[0].mxu0
  %975 = vmatprep.mubr.f32.mxu0 0.0
  %976 = vmatmul.mubr.f32.gmra.mrb[0].mxu0 %v691
  %v977 = vpop.f32.mrb[0].mxu0
  %v978 = vadd.f32 0.0, %v977
  %v979 = vpop.f32.mrb[0].mxu0
  %980 = vmatprep.mubr.f32.mxu0 0.0
  %981 = vmatmul.mubr.f32.gmra.mrb[0].mxu0 %v694
  %v982 = vpop.f32.mrb[0].mxu0
  %v983 = vadd.f32 0.0, %v982
  %v984 = vpop.f32.mrb[0].mxu0
  %985 = vmatprep.mubr.f32.mxu0 0.0
  %986 = vmatmul.mubr.f32.gmra.mrb[0].mxu0 %v697
  %v987 = vpop.f32.mrb[0].mxu0
  %v988 = vadd.f32 0.0, %v987
  %v989 = vpop.f32.mrb[0].mxu0
  %990 = vmatprep.mubr.f32.mxu0 0.0
  %991 = vmatmul.mubr.f32.gmra.mrb[0].mxu0 %v700
  %v992 = vpop.f32.mrb[0].mxu0
  %v993 = vadd.f32 0.0, %v992
  %v994 = vpop.f32.mrb[0].mxu0
  %995 = vmatprep.mubr.f32.mxu0 0.0
  %996 = vmatmul.mubr.f32.gmra.mrb[0].mxu0 %v703
  %v997 = vpop.f32.mrb[0].mxu0
  %v998 = vadd.f32 0.0, %v997
  %v999 = vpop.f32.mrb[0].mxu0
  %1000 = vmatprep.mubr.f32.mxu0 0.0
  %1001 = vmatmul.mubr.f32.gmra.mrb[0].mxu0 %v706
  %v1002 = vpop.f32.mrb[0].mxu0
  %v1003 = vadd.f32 0.0, %v1002
  %v1004 = vpop.f32.mrb[0].mxu0
  %1005 = vmatprep.mubr.f32.mxu0 0.0
  %1006 = vmatmul.mubr.f32.gmra.mrb[0].mxu0 %v709
  %v1007 = vpop.f32.mrb[0].mxu0
  %v1008 = vadd.f32 0.0, %v1007
  %v1009 = vpop.f32.mrb[0].mxu0
  %1010 = vmatprep.mubr.f32.mxu0 0.0
  %1011 = vmatmul.mubr.f32.gmra.mrb[0].mxu0 %v712
  %v1012 = vpop.f32.mrb[0].mxu0
  %v1013 = vadd.f32 0.0, %v1012
  %v1014 = vpop.f32.mrb[0].mxu0
  %1015 = vmatprep.mubr.f32.mxu0 0.0
  %1016 = vmatmul.mubr.f32.gmra.mrb[0].mxu0 %v715
  %v1017 = vpop.f32.mrb[0].mxu0
  %v1018 = vadd.f32 0.0, %v1017
  %v1019 = vpop.f32.mrb[0].mxu0
  %1020 = vmatprep.mubr.f32.mxu0 0.0
  %1021 = vmatmul.mubr.f32.gmra.mrb[0].mxu0 %v718
  %v1022 = vpop.f32.mrb[0].mxu0
  %v1023 = vadd.f32 0.0, %v1022
  %v1024 = vpop.f32.mrb[0].mxu0
  %1025 = vmatprep.mubr.f32.mxu0 0.0
  %1026 = vmatmul.mubr.f32.gmra.mrb[0].mxu0 %v721
  %v1027 = vpop.f32.mrb[0].mxu0
  %v1028 = vadd.f32 0.0, %v1027
  %v1029 = vpop.f32.mrb[0].mxu0
  %1030 = vmatprep.mubr.f32.mxu0 0.0
  %1031 = vmatmul.mubr.f32.gmra.mrb[0].mxu0 %v724
  %v1032 = vpop.f32.mrb[0].mxu0
  %v1033 = vadd.f32 0.0, %v1032
  %v1034 = vpop.f32.mrb[0].mxu0
  %1035 = vdwg.mxu0
  %s1036 = scalar_lea.vmem %s0, 784
  %v1037 = vld [vmem:[%s1036] sm:$0xff]
  %v1038 = vld [vmem:[%s1036 + $0x8] sm:$0xff]
  %v1039 = vld [vmem:[%s1036 + $0x10] sm:$0xff]
  %v1040 = vld [vmem:[%s1036 + $0x18] sm:$0xff]
  %v1041 = vld [vmem:[%s1036 + $0x20] sm:$0xff]
  %v1042 = vld [vmem:[%s1036 + $0x28] sm:$0xff]
  %v1043 = vld [vmem:[%s1036 + $0x30] sm:$0xff]
  %v1044 = vld [vmem:[%s1036 + $0x38] sm:$0xff]
  %v1045 = vld [vmem:[%s1036 + $0x40] sm:$0xff]
  %v1046 = vld [vmem:[%s1036 + $0x48] sm:$0xff]
  %v1047 = vld [vmem:[%s1036 + $0x50] sm:$0xff]
  %v1048 = vld [vmem:[%s1036 + $0x58] sm:$0xff]
  %v1049 = vld [vmem:[%s1036 + $0x60] sm:$0xff]
  %v1050 = vld [vmem:[%s1036 + $0x68] sm:$0xff]
  %v1051 = vld [vmem:[%s1036 + $0x70] sm:$0xff]
  %v1052 = vld [vmem:[%s1036 + $0x78] sm:$0xff]
  %v1053 = vld [vmem:[%s1036 + $0x80] sm:$0xff]
  %v1054 = vld [vmem:[%s1036 + $0x88] sm:$0xff]
  %v1055 = vld [vmem:[%s1036 + $0x90] sm:$0xff]
  %v1056 = vld [vmem:[%s1036 + $0x98] sm:$0xff]
  %v1057 = vld [vmem:[%s1036 + $0xa0] sm:$0xff]
  %v1058 = vld [vmem:[%s1036 + $0xa8] sm:$0xff]
  %v1059 = vld [vmem:[%s1036 + $0xb0] sm:$0xff]
  %v1060 = vld [vmem:[%s1036 + $0xb8] sm:$0xff]
  %v1061 = vld [vmem:[%s1036 + $0xc0] sm:$0xff]
  %v1062 = vld [vmem:[%s1036 + $0xc8] sm:$0xff]
  %v1063 = vld [vmem:[%s1036 + $0xd0] sm:$0xff]
  %v1064 = vld [vmem:[%s1036 + $0xd8] sm:$0xff]
  %v1065 = vld [vmem:[%s1036 + $0xe0] sm:$0xff]
  %v1066 = vld [vmem:[%s1036 + $0xe8] sm:$0xff]
  %v1067 = vld [vmem:[%s1036 + $0xf0] sm:$0xff]
  %v1068 = vld [vmem:[%s1036 + $0xf8] sm:$0xff]
  %v1069 = vld [vmem:[%s1036 + $0x100] sm:$0xff]
  %v1070 = vld [vmem:[%s1036 + $0x108] sm:$0xff]
  %v1071 = vld [vmem:[%s1036 + $0x110] sm:$0xff]
  %v1072 = vld [vmem:[%s1036 + $0x118] sm:$0xff]
  %v1073 = vld [vmem:[%s1036 + $0x120] sm:$0xff]
  %v1074 = vld [vmem:[%s1036 + $0x128] sm:$0xff]
  %v1075 = vld [vmem:[%s1036 + $0x130] sm:$0xff]
  %v1076 = vld [vmem:[%s1036 + $0x138] sm:$0xff]
  %v1077 = vld [vmem:[%s1036 + $0x140] sm:$0xff]
  %v1078 = vld [vmem:[%s1036 + $0x148] sm:$0xff]
  %v1079 = vld [vmem:[%s1036 + $0x150] sm:$0xff]
  %v1080 = vld [vmem:[%s1036 + $0x158] sm:$0xff]
  %v1081 = vld [vmem:[%s1036 + $0x160] sm:$0xff]
  %v1082 = vld [vmem:[%s1036 + $0x168] sm:$0xff]
  %v1083 = vld [vmem:[%s1036 + $0x170] sm:$0xff]
  %v1084 = vld [vmem:[%s1036 + $0x178] sm:$0xff]
  %v1085 = vld [vmem:[%s1036 + $0x180] sm:$0xff]
  %v1087 = vsel %vm67, %v1037, 0
  %v1090 = vsel %vm67, %v1038, 0
  %v1093 = vsel %vm67, %v1039, 0
  %v1096 = vsel %vm67, %v1040, 0
  %v1099 = vsel %vm67, %v1041, 0
  %v1102 = vsel %vm67, %v1042, 0
  %v1105 = vsel %vm67, %v1043, 0
  %v1108 = vsel %vm67, %v1044, 0
  %v1111 = vsel %vm67, %v1045, 0
  %v1114 = vsel %vm67, %v1046, 0
  %v1117 = vsel %vm67, %v1047, 0
  %v1120 = vsel %vm67, %v1048, 0
  %v1123 = vsel %vm67, %v1049, 0
  %v1126 = vsel %vm67, %v1050, 0
  %v1129 = vsel %vm67, %v1051, 0
  %v1132 = vsel %vm67, %v1052, 0
  %v1135 = vsel %vm67, %v1053, 0
  %v1138 = vsel %vm67, %v1054, 0
  %v1141 = vsel %vm67, %v1055, 0
  %v1144 = vsel %vm67, %v1056, 0
  %v1147 = vsel %vm67, %v1057, 0
  %v1150 = vsel %vm67, %v1058, 0
  %v1153 = vsel %vm67, %v1059, 0
  %v1156 = vsel %vm67, %v1060, 0
  %v1159 = vsel %vm67, %v1061, 0
  %v1162 = vsel %vm67, %v1062, 0
  %v1165 = vsel %vm67, %v1063, 0
  %v1168 = vsel %vm67, %v1064, 0
  %v1171 = vsel %vm67, %v1065, 0
  %v1174 = vsel %vm67, %v1066, 0
  %v1177 = vsel %vm67, %v1067, 0
  %v1180 = vsel %vm67, %v1068, 0
  %v1183 = vsel %vm67, %v1069, 0
  %v1186 = vsel %vm67, %v1070, 0
  %v1189 = vsel %vm67, %v1071, 0
  %v1192 = vsel %vm67, %v1072, 0
  %v1195 = vsel %vm67, %v1073, 0
  %v1198 = vsel %vm67, %v1074, 0
  %v1201 = vsel %vm67, %v1075, 0
  %v1204 = vsel %vm67, %v1076, 0
  %v1207 = vsel %vm67, %v1077, 0
  %v1210 = vsel %vm67, %v1078, 0
  %v1213 = vsel %vm67, %v1079, 0
  %v1216 = vsel %vm67, %v1080, 0
  %v1219 = vsel %vm67, %v1081, 0
  %v1222 = vsel %vm67, %v1082, 0
  %v1225 = vsel %vm67, %v1083, 0
  %v1228 = vsel %vm67, %v1084, 0
  %v1231 = vsel %vm67, %v1085, 0
  %1233 = vmatprep.subr.mxu0 0.0
  %1234 = vmatpush1.msra.mxu0 %v63
  %1235 = vmatprep.subr.mxu0 0.0
  %1236 = vmatpush1.msra.mxu0 %v64
  %1237 = vmatprep.subr.mxu0 0.0
  %1238 = vmatpush1.msra.mxu0 %v65
  %1239 = vmatprep.subr.mxu0 0.0
  %1240 = vmatpush1.msra.mxu0 %v217
  %1241 = vmatprep.subr.mxu0 0.0
  %1242 = vmatpush1.msra.mxu0 0.0
  %1243 = vmatprep.subr.mxu0 0.0
  %1244 = vmatpush1.msra.mxu0 0.0
  %1245 = vmatprep.subr.mxu0 0.0
  %1246 = vmatpush1.msra.mxu0 0.0
  %1247 = vmatprep.subr.mxu0 0.0
  %1248 = vmatpush1.msra.mxu0 0.0
  %1249 = vmatprep.subr.mxu0 0.0
  %1250 = vmatpush1.msra.mxu0 0.0
  %1251 = vmatprep.subr.mxu0 0.0
  %1252 = vmatpush1.msra.mxu0 0.0
  %1253 = vmatprep.subr.mxu0 0.0
  %1254 = vmatpush1.msra.mxu0 0.0
  %1255 = vmatprep.subr.mxu0 0.0
  %1256 = vmatpush1.msra.mxu0 0.0
  %1257 = vmatprep.subr.mxu0 0.0
  %1258 = vmatpush1.msra.mxu0 0.0
  %1259 = vmatprep.subr.mxu0 0.0
  %1260 = vmatpush1.msra.mxu0 0.0
  %1261 = vmatprep.subr.mxu0 0.0
  %1262 = vmatpush1.msra.mxu0 0.0
  %1263 = vmatprep.subr.mxu0 0.0
  %1264 = vmatpush1.msra.mxu0 0.0
  %1265 = vmatprep.subr.mxu0 0.0
  %1266 = vmatpush1.msra.mxu0 0.0
  %1267 = vmatprep.subr.mxu0 0.0
  %1268 = vmatpush1.msra.mxu0 0.0
  %1269 = vmatprep.subr.mxu0 0.0
  %1270 = vmatpush1.msra.mxu0 0.0
  %1271 = vmatprep.subr.mxu0 0.0
  %1272 = vmatpush1.msra.mxu0 0.0
  %1273 = vmatprep.subr.mxu0 0.0
  %1274 = vmatpush1.msra.mxu0 0.0
  %1275 = vmatprep.subr.mxu0 0.0
  %1276 = vmatpush1.msra.mxu0 0.0
  %1277 = vmatprep.subr.mxu0 0.0
  %1278 = vmatpush1.msra.mxu0 0.0
  %1279 = vmatprep.subr.mxu0 0.0
  %1280 = vmatpush1.msra.mxu0 0.0
  %1281 = vmatprep.subr.mxu0 0.0
  %1282 = vmatpush1.msra.mxu0 0.0
  %1283 = vmatprep.subr.mxu0 0.0
  %1284 = vmatpush1.msra.mxu0 0.0
  %1285 = vmatprep.subr.mxu0 0.0
  %1286 = vmatpush1.msra.mxu0 0.0
  %1287 = vmatprep.subr.mxu0 0.0
  %1288 = vmatpush1.msra.mxu0 0.0
  %1289 = vmatprep.subr.mxu0 0.0
  %1290 = vmatpush1.msra.mxu0 0.0
  %1291 = vmatprep.subr.mxu0 0.0
  %1292 = vmatpush1.msra.mxu0 0.0
  %1293 = vmatprep.subr.mxu0 0.0
  %1294 = vmatpush1.msra.mxu0 0.0
  %1295 = vmatprep.subr.mxu0 0.0
  %1296 = vmatpush1.msra.mxu0 0.0
  %1297 = vmatprep.mubr.f32.mxu0 0.0
  %1298 = vmatmul.mubr.f32.gmra.mrb[0].mxu0 %v1087
  %v1299 = vpop.f32.mrb[0].mxu0
  %v1300 = vadd.f32 0.0, %v1299
  %v1301 = vpop.f32.mrb[0].mxu0
  %1302 = vmatprep.mubr.f32.mxu0 0.0
  %1303 = vmatmul.mubr.f32.gmra.mrb[0].mxu0 %v1090
  %v1304 = vpop.f32.mrb[0].mxu0
  %v1305 = vadd.f32 0.0, %v1304
  %v1306 = vpop.f32.mrb[0].mxu0
  %1307 = vmatprep.mubr.f32.mxu0 0.0
  %1308 = vmatmul.mubr.f32.gmra.mrb[0].mxu0 %v1093
  %v1309 = vpop.f32.mrb[0].mxu0
  %v1310 = vadd.f32 0.0, %v1309
  %v1311 = vpop.f32.mrb[0].mxu0
  %1312 = vmatprep.mubr.f32.mxu0 0.0
  %1313 = vmatmul.mubr.f32.gmra.mrb[0].mxu0 %v1096
  %v1314 = vpop.f32.mrb[0].mxu0
  %v1315 = vadd.f32 0.0, %v1314
  %v1316 = vpop.f32.mrb[0].mxu0
  %1317 = vmatprep.mubr.f32.mxu0 0.0
  %1318 = vmatmul.mubr.f32.gmra.mrb[0].mxu0 %v1099
  %v1319 = vpop.f32.mrb[0].mxu0
  %v1320 = vadd.f32 0.0, %v1319
  %v1321 = vpop.f32.mrb[0].mxu0
  %1322 = vmatprep.mubr.f32.mxu0 0.0
  %1323 = vmatmul.mubr.f32.gmra.mrb[0].mxu0 %v1102
  %v1324 = vpop.f32.mrb[0].mxu0
  %v1325 = vadd.f32 0.0, %v1324
  %v1326 = vpop.f32.mrb[0].mxu0
  %1327 = vmatprep.mubr.f32.mxu0 0.0
  %1328 = vmatmul.mubr.f32.gmra.mrb[0].mxu0 %v1105
  %v1329 = vpop.f32.mrb[0].mxu0
  %v1330 = vadd.f32 0.0, %v1329
  %v1331 = vpop.f32.mrb[0].mxu0
  %1332 = vmatprep.mubr.f32.mxu0 0.0
  %1333 = vmatmul.mubr.f32.gmra.mrb[0].mxu0 %v1108
  %v1334 = vpop.f32.mrb[0].mxu0
  %v1335 = vadd.f32 0.0, %v1334
  %v1336 = vpop.f32.mrb[0].mxu0
  %1337 = vmatprep.mubr.f32.mxu0 0.0
  %1338 = vmatmul.mubr.f32.gmra.mrb[0].mxu0 %v1111
  %v1339 = vpop.f32.mrb[0].mxu0
  %v1340 = vadd.f32 0.0, %v1339
  %v1341 = vpop.f32.mrb[0].mxu0
  %1342 = vmatprep.mubr.f32.mxu0 0.0
  %1343 = vmatmul.mubr.f32.gmra.mrb[0].mxu0 %v1114
  %v1344 = vpop.f32.mrb[0].mxu0
  %v1345 = vadd.f32 0.0, %v1344
  %v1346 = vpop.f32.mrb[0].mxu0
  %1347 = vmatprep.mubr.f32.mxu0 0.0
  %1348 = vmatmul.mubr.f32.gmra.mrb[0].mxu0 %v1117
  %v1349 = vpop.f32.mrb[0].mxu0
  %v1350 = vadd.f32 0.0, %v1349
  %v1351 = vpop.f32.mrb[0].mxu0
  %1352 = vmatprep.mubr.f32.mxu0 0.0
  %1353 = vmatmul.mubr.f32.gmra.mrb[0].mxu0 %v1120
  %v1354 = vpop.f32.mrb[0].mxu0
  %v1355 = vadd.f32 0.0, %v1354
  %v1356 = vpop.f32.mrb[0].mxu0
  %1357 = vmatprep.mubr.f32.mxu0 0.0
  %1358 = vmatmul.mubr.f32.gmra.mrb[0].mxu0 %v1123
  %v1359 = vpop.f32.mrb[0].mxu0
  %v1360 = vadd.f32 0.0, %v1359
  %v1361 = vpop.f32.mrb[0].mxu0
  %1362 = vmatprep.mubr.f32.mxu0 0.0
  %1363 = vmatmul.mubr.f32.gmra.mrb[0].mxu0 %v1126
  %v1364 = vpop.f32.mrb[0].mxu0
  %v1365 = vadd.f32 0.0, %v1364
  %v1366 = vpop.f32.mrb[0].mxu0
  %1367 = vmatprep.mubr.f32.mxu0 0.0
  %1368 = vmatmul.mubr.f32.gmra.mrb[0].mxu0 %v1129
  %v1369 = vpop.f32.mrb[0].mxu0
  %v1370 = vadd.f32 0.0, %v1369
  %v1371 = vpop.f32.mrb[0].mxu0
  %1372 = vmatprep.mubr.f32.mxu0 0.0
  %1373 = vmatmul.mubr.f32.gmra.mrb[0].mxu0 %v1132
  %v1374 = vpop.f32.mrb[0].mxu0
  %v1375 = vadd.f32 0.0, %v1374
  %v1376 = vpop.f32.mrb[0].mxu0
  %1377 = vmatprep.mubr.f32.mxu0 0.0
  %1378 = vmatmul.mubr.f32.gmra.mrb[0].mxu0 %v1135
  %v1379 = vpop.f32.mrb[0].mxu0
  %v1380 = vadd.f32 0.0, %v1379
  %v1381 = vpop.f32.mrb[0].mxu0
  %1382 = vmatprep.mubr.f32.mxu0 0.0
  %1383 = vmatmul.mubr.f32.gmra.mrb[0].mxu0 %v1138
  %v1384 = vpop.f32.mrb[0].mxu0
  %v1385 = vadd.f32 0.0, %v1384
  %v1386 = vpop.f32.mrb[0].mxu0
  %1387 = vmatprep.mubr.f32.mxu0 0.0
  %1388 = vmatmul.mubr.f32.gmra.mrb[0].mxu0 %v1141
  %v1389 = vpop.f32.mrb[0].mxu0
  %v1390 = vadd.f32 0.0, %v1389
  %v1391 = vpop.f32.mrb[0].mxu0
  %1392 = vmatprep.mubr.f32.mxu0 0.0
  %1393 = vmatmul.mubr.f32.gmra.mrb[0].mxu0 %v1144
  %v1394 = vpop.f32.mrb[0].mxu0
  %v1395 = vadd.f32 0.0, %v1394
  %v1396 = vpop.f32.mrb[0].mxu0
  %1397 = vmatprep.mubr.f32.mxu0 0.0
  %1398 = vmatmul.mubr.f32.gmra.mrb[0].mxu0 %v1147
  %v1399 = vpop.f32.mrb[0].mxu0
  %v1400 = vadd.f32 0.0, %v1399
  %v1401 = vpop.f32.mrb[0].mxu0
  %1402 = vmatprep.mubr.f32.mxu0 0.0
  %1403 = vmatmul.mubr.f32.gmra.mrb[0].mxu0 %v1150
  %v1404 = vpop.f32.mrb[0].mxu0
  %v1405 = vadd.f32 0.0, %v1404
  %v1406 = vpop.f32.mrb[0].mxu0
  %1407 = vmatprep.mubr.f32.mxu0 0.0
  %1408 = vmatmul.mubr.f32.gmra.mrb[0].mxu0 %v1153
  %v1409 = vpop.f32.mrb[0].mxu0
  %v1410 = vadd.f32 0.0, %v1409
  %v1411 = vpop.f32.mrb[0].mxu0
  %1412 = vmatprep.mubr.f32.mxu0 0.0
  %1413 = vmatmul.mubr.f32.gmra.mrb[0].mxu0 %v1156
  %v1414 = vpop.f32.mrb[0].mxu0
  %v1415 = vadd.f32 0.0, %v1414
  %v1416 = vpop.f32.mrb[0].mxu0
  %1417 = vmatprep.mubr.f32.mxu0 0.0
  %1418 = vmatmul.mubr.f32.gmra.mrb[0].mxu0 %v1159
  %v1419 = vpop.f32.mrb[0].mxu0
  %v1420 = vadd.f32 0.0, %v1419
  %v1421 = vpop.f32.mrb[0].mxu0
  %1422 = vmatprep.mubr.f32.mxu0 0.0
  %1423 = vmatmul.mubr.f32.gmra.mrb[0].mxu0 %v1162
  %v1424 = vpop.f32.mrb[0].mxu0
  %v1425 = vadd.f32 0.0, %v1424
  %v1426 = vpop.f32.mrb[0].mxu0
  %1427 = vmatprep.mubr.f32.mxu0 0.0
  %1428 = vmatmul.mubr.f32.gmra.mrb[0].mxu0 %v1165
  %v1429 = vpop.f32.mrb[0].mxu0
  %v1430 = vadd.f32 0.0, %v1429
  %v1431 = vpop.f32.mrb[0].mxu0
  %1432 = vmatprep.mubr.f32.mxu0 0.0
  %1433 = vmatmul.mubr.f32.gmra.mrb[0].mxu0 %v1168
  %v1434 = vpop.f32.mrb[0].mxu0
  %v1435 = vadd.f32 0.0, %v1434
  %v1436 = vpop.f32.mrb[0].mxu0
  %1437 = vmatprep.mubr.f32.mxu0 0.0
  %1438 = vmatmul.mubr.f32.gmra.mrb[0].mxu0 %v1171
  %v1439 = vpop.f32.mrb[0].mxu0
  %v1440 = vadd.f32 0.0, %v1439
  %v1441 = vpop.f32.mrb[0].mxu0
  %1442 = vmatprep.mubr.f32.mxu0 0.0
  %1443 = vmatmul.mubr.f32.gmra.mrb[0].mxu0 %v1174
  %v1444 = vpop.f32.mrb[0].mxu0
  %v1445 = vadd.f32 0.0, %v1444
  %v1446 = vpop.f32.mrb[0].mxu0
  %1447 = vmatprep.mubr.f32.mxu0 0.0
  %1448 = vmatmul.mubr.f32.gmra.mrb[0].mxu0 %v1177
  %v1449 = vpop.f32.mrb[0].mxu0
  %v1450 = vadd.f32 0.0, %v1449
  %v1451 = vpop.f32.mrb[0].mxu0
  %1452 = vmatprep.mubr.f32.mxu0 0.0
  %1453 = vmatmul.mubr.f32.gmra.mrb[0].mxu0 %v1180
  %v1454 = vpop.f32.mrb[0].mxu0
  %v1455 = vadd.f32 0.0, %v1454
  %v1456 = vpop.f32.mrb[0].mxu0
  %1457 = vmatprep.mubr.f32.mxu0 0.0
  %1458 = vmatmul.mubr.f32.gmra.mrb[0].mxu0 %v1183
  %v1459 = vpop.f32.mrb[0].mxu0
  %v1460 = vadd.f32 0.0, %v1459
  %v1461 = vpop.f32.mrb[0].mxu0
  %1462 = vmatprep.mubr.f32.mxu0 0.0
  %1463 = vmatmul.mubr.f32.gmra.mrb[0].mxu0 %v1186
  %v1464 = vpop.f32.mrb[0].mxu0
  %v1465 = vadd.f32 0.0, %v1464
  %v1466 = vpop.f32.mrb[0].mxu0
  %1467 = vmatprep.mubr.f32.mxu0 0.0
  %1468 = vmatmul.mubr.f32.gmra.mrb[0].mxu0 %v1189
  %v1469 = vpop.f32.mrb[0].mxu0
  %v1470 = vadd.f32 0.0, %v1469
  %v1471 = vpop.f32.mrb[0].mxu0
  %1472 = vmatprep.mubr.f32.mxu0 0.0
  %1473 = vmatmul.mubr.f32.gmra.mrb[0].mxu0 %v1192
  %v1474 = vpop.f32.mrb[0].mxu0
  %v1475 = vadd.f32 0.0, %v1474
  %v1476 = vpop.f32.mrb[0].mxu0
  %1477 = vmatprep.mubr.f32.mxu0 0.0
  %1478 = vmatmul.mubr.f32.gmra.mrb[0].mxu0 %v1195
  %v1479 = vpop.f32.mrb[0].mxu0
  %v1480 = vadd.f32 0.0, %v1479
  %v1481 = vpop.f32.mrb[0].mxu0
  %1482 = vmatprep.mubr.f32.mxu0 0.0
  %1483 = vmatmul.mubr.f32.gmra.mrb[0].mxu0 %v1198
  %v1484 = vpop.f32.mrb[0].mxu0
  %v1485 = vadd.f32 0.0, %v1484
  %v1486 = vpop.f32.mrb[0].mxu0
  %1487 = vmatprep.mubr.f32.mxu0 0.0
  %1488 = vmatmul.mubr.f32.gmra.mrb[0].mxu0 %v1201
  %v1489 = vpop.f32.mrb[0].mxu0
  %v1490 = vadd.f32 0.0, %v1489
  %v1491 = vpop.f32.mrb[0].mxu0
  %1492 = vmatprep.mubr.f32.mxu0 0.0
  %1493 = vmatmul.mubr.f32.gmra.mrb[0].mxu0 %v1204
  %v1494 = vpop.f32.mrb[0].mxu0
  %v1495 = vadd.f32 0.0, %v1494
  %v1496 = vpop.f32.mrb[0].mxu0
  %1497 = vmatprep.mubr.f32.mxu0 0.0
  %1498 = vmatmul.mubr.f32.gmra.mrb[0].mxu0 %v1207
  %v1499 = vpop.f32.mrb[0].mxu0
  %v1500 = vadd.f32 0.0, %v1499
  %v1501 = vpop.f32.mrb[0].mxu0
  %1502 = vmatprep.mubr.f32.mxu0 0.0
  %1503 = vmatmul.mubr.f32.gmra.mrb[0].mxu0 %v1210
  %v1504 = vpop.f32.mrb[0].mxu0
  %v1505 = vadd.f32 0.0, %v1504
  %v1506 = vpop.f32.mrb[0].mxu0
  %1507 = vmatprep.mubr.f32.mxu0 0.0
  %1508 = vmatmul.mubr.f32.gmra.mrb[0].mxu0 %v1213
  %v1509 = vpop.f32.mrb[0].mxu0
  %v1510 = vadd.f32 0.0, %v1509
  %v1511 = vpop.f32.mrb[0].mxu0
  %1512 = vmatprep.mubr.f32.mxu0 0.0
  %1513 = vmatmul.mubr.f32.gmra.mrb[0].mxu0 %v1216
  %v1514 = vpop.f32.mrb[0].mxu0
  %v1515 = vadd.f32 0.0, %v1514
  %v1516 = vpop.f32.mrb[0].mxu0
  %1517 = vmatprep.mubr.f32.mxu0 0.0
  %1518 = vmatmul.mubr.f32.gmra.mrb[0].mxu0 %v1219
  %v1519 = vpop.f32.mrb[0].mxu0
  %v1520 = vadd.f32 0.0, %v1519
  %v1521 = vpop.f32.mrb[0].mxu0
  %1522 = vmatprep.mubr.f32.mxu0 0.0
  %1523 = vmatmul.mubr.f32.gmra.mrb[0].mxu0 %v1222
  %v1524 = vpop.f32.mrb[0].mxu0
  %v1525 = vadd.f32 0.0, %v1524
  %v1526 = vpop.f32.mrb[0].mxu0
  %1527 = vmatprep.mubr.f32.mxu0 0.0
  %1528 = vmatmul.mubr.f32.gmra.mrb[0].mxu0 %v1225
  %v1529 = vpop.f32.mrb[0].mxu0
  %v1530 = vadd.f32 0.0, %v1529
  %v1531 = vpop.f32.mrb[0].mxu0
  %1532 = vmatprep.mubr.f32.mxu0 0.0
  %1533 = vmatmul.mubr.f32.gmra.mrb[0].mxu0 %v1228
  %v1534 = vpop.f32.mrb[0].mxu0
  %v1535 = vadd.f32 0.0, %v1534
  %v1536 = vpop.f32.mrb[0].mxu0
  %1537 = vmatprep.mubr.f32.mxu0 0.0
  %1538 = vmatmul.mubr.f32.gmra.mrb[0].mxu0 %v1231
  %v1539 = vpop.f32.mrb[0].mxu0
  %v1540 = vadd.f32 0.0, %v1539
  %v1541 = vpop.f32.mrb[0].mxu0
  %1542 = vdwg.mxu0
  %s1543 = scalar_lea.vmem %s0, 1176
  %v1544 = vld [vmem:[%s1543] sm:$0xff]
  %v1545 = vld [vmem:[%s1543 + $0x8] sm:$0xff]
  %v1546 = vld [vmem:[%s1543 + $0x10] sm:$0xff]
  %v1547 = vld [vmem:[%s1543 + $0x18] sm:$0xff]
  %v1548 = vld [vmem:[%s1543 + $0x20] sm:$0xff]
  %v1549 = vld [vmem:[%s1543 + $0x28] sm:$0xff]
  %v1550 = vld [vmem:[%s1543 + $0x30] sm:$0xff]
  %v1551 = vld [vmem:[%s1543 + $0x38] sm:$0xff]
  %v1552 = vld [vmem:[%s1543 + $0x40] sm:$0xff]
  %v1553 = vld [vmem:[%s1543 + $0x48] sm:$0xff]
  %v1554 = vld [vmem:[%s1543 + $0x50] sm:$0xff]
  %v1555 = vld [vmem:[%s1543 + $0x58] sm:$0xff]
  %v1556 = vld [vmem:[%s1543 + $0x60] sm:$0xff]
  %v1557 = vld [vmem:[%s1543 + $0x68] sm:$0xff]
  %v1558 = vld [vmem:[%s1543 + $0x70] sm:$0xff]
  %v1559 = vld [vmem:[%s1543 + $0x78] sm:$0xff]
  %v1560 = vld [vmem:[%s1543 + $0x80] sm:$0xff]
  %v1561 = vld [vmem:[%s1543 + $0x88] sm:$0xff]
  %v1562 = vld [vmem:[%s1543 + $0x90] sm:$0xff]
  %v1563 = vld [vmem:[%s1543 + $0x98] sm:$0xff]
  %v1564 = vld [vmem:[%s1543 + $0xa0] sm:$0xff]
  %v1565 = vld [vmem:[%s1543 + $0xa8] sm:$0xff]
  %v1566 = vld [vmem:[%s1543 + $0xb0] sm:$0xff]
  %v1567 = vld [vmem:[%s1543 + $0xb8] sm:$0xff]
  %v1568 = vld [vmem:[%s1543 + $0xc0] sm:$0xff]
  %v1569 = vld [vmem:[%s1543 + $0xc8] sm:$0xff]
  %v1570 = vld [vmem:[%s1543 + $0xd0] sm:$0xff]
  %v1571 = vld [vmem:[%s1543 + $0xd8] sm:$0xff]
  %v1572 = vld [vmem:[%s1543 + $0xe0] sm:$0xff]
  %v1573 = vld [vmem:[%s1543 + $0xe8] sm:$0xff]
  %v1574 = vld [vmem:[%s1543 + $0xf0] sm:$0xff]
  %v1575 = vld [vmem:[%s1543 + $0xf8] sm:$0xff]
  %v1576 = vld [vmem:[%s1543 + $0x100] sm:$0xff]
  %v1577 = vld [vmem:[%s1543 + $0x108] sm:$0xff]
  %v1578 = vld [vmem:[%s1543 + $0x110] sm:$0xff]
  %v1579 = vld [vmem:[%s1543 + $0x118] sm:$0xff]
  %v1580 = vld [vmem:[%s1543 + $0x120] sm:$0xff]
  %v1581 = vld [vmem:[%s1543 + $0x128] sm:$0xff]
  %v1582 = vld [vmem:[%s1543 + $0x130] sm:$0xff]
  %v1583 = vld [vmem:[%s1543 + $0x138] sm:$0xff]
  %v1584 = vld [vmem:[%s1543 + $0x140] sm:$0xff]
  %v1585 = vld [vmem:[%s1543 + $0x148] sm:$0xff]
  %v1586 = vld [vmem:[%s1543 + $0x150] sm:$0xff]
  %v1587 = vld [vmem:[%s1543 + $0x158] sm:$0xff]
  %v1588 = vld [vmem:[%s1543 + $0x160] sm:$0xff]
  %v1589 = vld [vmem:[%s1543 + $0x168] sm:$0xff]
  %v1590 = vld [vmem:[%s1543 + $0x170] sm:$0xff]
  %v1591 = vld [vmem:[%s1543 + $0x178] sm:$0xff]
  %v1592 = vld [vmem:[%s1543 + $0x180] sm:$0xff]
  %v1594 = vsel %vm67, %v1544, 0
  %v1597 = vsel %vm67, %v1545, 0
  %v1600 = vsel %vm67, %v1546, 0
  %v1603 = vsel %vm67, %v1547, 0
  %v1606 = vsel %vm67, %v1548, 0
  %v1609 = vsel %vm67, %v1549, 0
  %v1612 = vsel %vm67, %v1550, 0
  %v1615 = vsel %vm67, %v1551, 0
  %v1618 = vsel %vm67, %v1552, 0
  %v1621 = vsel %vm67, %v1553, 0
  %v1624 = vsel %vm67, %v1554, 0
  %v1627 = vsel %vm67, %v1555, 0
  %v1630 = vsel %vm67, %v1556, 0
  %v1633 = vsel %vm67, %v1557, 0
  %v1636 = vsel %vm67, %v1558, 0
  %v1639 = vsel %vm67, %v1559, 0
  %v1642 = vsel %vm67, %v1560, 0
  %v1645 = vsel %vm67, %v1561, 0
  %v1648 = vsel %vm67, %v1562, 0
  %v1651 = vsel %vm67, %v1563, 0
  %v1654 = vsel %vm67, %v1564, 0
  %v1657 = vsel %vm67, %v1565, 0
  %v1660 = vsel %vm67, %v1566, 0
  %v1663 = vsel %vm67, %v1567, 0
  %v1666 = vsel %vm67, %v1568, 0
  %v1669 = vsel %vm67, %v1569, 0
  %v1672 = vsel %vm67, %v1570, 0
  %v1675 = vsel %vm67, %v1571, 0
  %v1678 = vsel %vm67, %v1572, 0
  %v1681 = vsel %vm67, %v1573, 0
  %v1684 = vsel %vm67, %v1574, 0
  %v1687 = vsel %vm67, %v1575, 0
  %v1690 = vsel %vm67, %v1576, 0
  %v1693 = vsel %vm67, %v1577, 0
  %v1696 = vsel %vm67, %v1578, 0
  %v1699 = vsel %vm67, %v1579, 0
  %v1702 = vsel %vm67, %v1580, 0
  %v1705 = vsel %vm67, %v1581, 0
  %v1708 = vsel %vm67, %v1582, 0
  %v1711 = vsel %vm67, %v1583, 0
  %v1714 = vsel %vm67, %v1584, 0
  %v1717 = vsel %vm67, %v1585, 0
  %v1720 = vsel %vm67, %v1586, 0
  %v1723 = vsel %vm67, %v1587, 0
  %v1726 = vsel %vm67, %v1588, 0
  %v1729 = vsel %vm67, %v1589, 0
  %v1732 = vsel %vm67, %v1590, 0
  %v1735 = vsel %vm67, %v1591, 0
  %v1738 = vsel %vm67, %v1592, 0
  %1740 = vmatprep.subr.mxu0 0.0
  %1741 = vmatpush1.msra.mxu0 %v63
  %1742 = vmatprep.subr.mxu0 0.0
  %1743 = vmatpush1.msra.mxu0 %v64
  %1744 = vmatprep.subr.mxu0 0.0
  %1745 = vmatpush1.msra.mxu0 %v65
  %1746 = vmatprep.subr.mxu0 0.0
  %1747 = vmatpush1.msra.mxu0 %v217
  %1748 = vmatprep.subr.mxu0 0.0
  %1749 = vmatpush1.msra.mxu0 0.0
  %1750 = vmatprep.subr.mxu0 0.0
  %1751 = vmatpush1.msra.mxu0 0.0
  %1752 = vmatprep.subr.mxu0 0.0
  %1753 = vmatpush1.msra.mxu0 0.0
  %1754 = vmatprep.subr.mxu0 0.0
  %1755 = vmatpush1.msra.mxu0 0.0
  %1756 = vmatprep.subr.mxu0 0.0
  %1757 = vmatpush1.msra.mxu0 0.0
  %1758 = vmatprep.subr.mxu0 0.0
  %1759 = vmatpush1.msra.mxu0 0.0
  %1760 = vmatprep.subr.mxu0 0.0
  %1761 = vmatpush1.msra.mxu0 0.0
  %1762 = vmatprep.subr.mxu0 0.0
  %1763 = vmatpush1.msra.mxu0 0.0
  %1764 = vmatprep.subr.mxu0 0.0
  %1765 = vmatpush1.msra.mxu0 0.0
  %1766 = vmatprep.subr.mxu0 0.0
  %1767 = vmatpush1.msra.mxu0 0.0
  %1768 = vmatprep.subr.mxu0 0.0
  %1769 = vmatpush1.msra.mxu0 0.0
  %1770 = vmatprep.subr.mxu0 0.0
  %1771 = vmatpush1.msra.mxu0 0.0
  %1772 = vmatprep.subr.mxu0 0.0
  %1773 = vmatpush1.msra.mxu0 0.0
  %1774 = vmatprep.subr.mxu0 0.0
  %1775 = vmatpush1.msra.mxu0 0.0
  %1776 = vmatprep.subr.mxu0 0.0
  %1777 = vmatpush1.msra.mxu0 0.0
  %1778 = vmatprep.subr.mxu0 0.0
  %1779 = vmatpush1.msra.mxu0 0.0
  %1780 = vmatprep.subr.mxu0 0.0
  %1781 = vmatpush1.msra.mxu0 0.0
  %1782 = vmatprep.subr.mxu0 0.0
  %1783 = vmatpush1.msra.mxu0 0.0
  %1784 = vmatprep.subr.mxu0 0.0
  %1785 = vmatpush1.msra.mxu0 0.0
  %1786 = vmatprep.subr.mxu0 0.0
  %1787 = vmatpush1.msra.mxu0 0.0
  %1788 = vmatprep.subr.mxu0 0.0
  %1789 = vmatpush1.msra.mxu0 0.0
  %1790 = vmatprep.subr.mxu0 0.0
  %1791 = vmatpush1.msra.mxu0 0.0
  %1792 = vmatprep.subr.mxu0 0.0
  %1793 = vmatpush1.msra.mxu0 0.0
  %1794 = vmatprep.subr.mxu0 0.0
  %1795 = vmatpush1.msra.mxu0 0.0
  %1796 = vmatprep.subr.mxu0 0.0
  %1797 = vmatpush1.msra.mxu0 0.0
  %1798 = vmatprep.subr.mxu0 0.0
  %1799 = vmatpush1.msra.mxu0 0.0
  %1800 = vmatprep.subr.mxu0 0.0
  %1801 = vmatpush1.msra.mxu0 0.0
  %1802 = vmatprep.subr.mxu0 0.0
  %1803 = vmatpush1.msra.mxu0 0.0
  %1804 = vmatprep.mubr.f32.mxu0 0.0
  %1805 = vmatmul.mubr.f32.gmra.mrb[0].mxu0 %v1594
  %v1806 = vpop.f32.mrb[0].mxu0
  %v1807 = vadd.f32 0.0, %v1806
  %v1808 = vpop.f32.mrb[0].mxu0
  %1809 = vmatprep.mubr.f32.mxu0 0.0
  %1810 = vmatmul.mubr.f32.gmra.mrb[0].mxu0 %v1597
  %v1811 = vpop.f32.mrb[0].mxu0
  %v1812 = vadd.f32 0.0, %v1811
  %v1813 = vpop.f32.mrb[0].mxu0
  %1814 = vmatprep.mubr.f32.mxu0 0.0
  %1815 = vmatmul.mubr.f32.gmra.mrb[0].mxu0 %v1600
  %v1816 = vpop.f32.mrb[0].mxu0
  %v1817 = vadd.f32 0.0, %v1816
  %v1818 = vpop.f32.mrb[0].mxu0
  %1819 = vmatprep.mubr.f32.mxu0 0.0
  %1820 = vmatmul.mubr.f32.gmra.mrb[0].mxu0 %v1603
  %v1821 = vpop.f32.mrb[0].mxu0
  %v1822 = vadd.f32 0.0, %v1821
  %v1823 = vpop.f32.mrb[0].mxu0
  %1824 = vmatprep.mubr.f32.mxu0 0.0
  %1825 = vmatmul.mubr.f32.gmra.mrb[0].mxu0 %v1606
  %v1826 = vpop.f32.mrb[0].mxu0
  %v1827 = vadd.f32 0.0, %v1826
  %v1828 = vpop.f32.mrb[0].mxu0
  %1829 = vmatprep.mubr.f32.mxu0 0.0
  %1830 = vmatmul.mubr.f32.gmra.mrb[0].mxu0 %v1609
  %v1831 = vpop.f32.mrb[0].mxu0
  %v1832 = vadd.f32 0.0, %v1831
  %v1833 = vpop.f32.mrb[0].mxu0
  %1834 = vmatprep.mubr.f32.mxu0 0.0
  %1835 = vmatmul.mubr.f32.gmra.mrb[0].mxu0 %v1612
  %v1836 = vpop.f32.mrb[0].mxu0
  %v1837 = vadd.f32 0.0, %v1836
  %v1838 = vpop.f32.mrb[0].mxu0
  %1839 = vmatprep.mubr.f32.mxu0 0.0
  %1840 = vmatmul.mubr.f32.gmra.mrb[0].mxu0 %v1615
  %v1841 = vpop.f32.mrb[0].mxu0
  %v1842 = vadd.f32 0.0, %v1841
  %v1843 = vpop.f32.mrb[0].mxu0
  %1844 = vmatprep.mubr.f32.mxu0 0.0
  %1845 = vmatmul.mubr.f32.gmra.mrb[0].mxu0 %v1618
  %v1846 = vpop.f32.mrb[0].mxu0
  %v1847 = vadd.f32 0.0, %v1846
  %v1848 = vpop.f32.mrb[0].mxu0
  %1849 = vmatprep.mubr.f32.mxu0 0.0
  %1850 = vmatmul.mubr.f32.gmra.mrb[0].mxu0 %v1621
  %v1851 = vpop.f32.mrb[0].mxu0
  %v1852 = vadd.f32 0.0, %v1851
  %v1853 = vpop.f32.mrb[0].mxu0
  %1854 = vmatprep.mubr.f32.mxu0 0.0
  %1855 = vmatmul.mubr.f32.gmra.mrb[0].mxu0 %v1624
  %v1856 = vpop.f32.mrb[0].mxu0
  %v1857 = vadd.f32 0.0, %v1856
  %v1858 = vpop.f32.mrb[0].mxu0
  %1859 = vmatprep.mubr.f32.mxu0 0.0
  %1860 = vmatmul.mubr.f32.gmra.mrb[0].mxu0 %v1627
  %v1861 = vpop.f32.mrb[0].mxu0
  %v1862 = vadd.f32 0.0, %v1861
  %v1863 = vpop.f32.mrb[0].mxu0
  %1864 = vmatprep.mubr.f32.mxu0 0.0
  %1865 = vmatmul.mubr.f32.gmra.mrb[0].mxu0 %v1630
  %v1866 = vpop.f32.mrb[0].mxu0
  %v1867 = vadd.f32 0.0, %v1866
  %v1868 = vpop.f32.mrb[0].mxu0
  %1869 = vmatprep.mubr.f32.mxu0 0.0
  %1870 = vmatmul.mubr.f32.gmra.mrb[0].mxu0 %v1633
  %v1871 = vpop.f32.mrb[0].mxu0
  %v1872 = vadd.f32 0.0, %v1871
  %v1873 = vpop.f32.mrb[0].mxu0
  %1874 = vmatprep.mubr.f32.mxu0 0.0
  %1875 = vmatmul.mubr.f32.gmra.mrb[0].mxu0 %v1636
  %v1876 = vpop.f32.mrb[0].mxu0
  %v1877 = vadd.f32 0.0, %v1876
  %v1878 = vpop.f32.mrb[0].mxu0
  %1879 = vmatprep.mubr.f32.mxu0 0.0
  %1880 = vmatmul.mubr.f32.gmra.mrb[0].mxu0 %v1639
  %v1881 = vpop.f32.mrb[0].mxu0
  %v1882 = vadd.f32 0.0, %v1881
  %v1883 = vpop.f32.mrb[0].mxu0
  %1884 = vmatprep.mubr.f32.mxu0 0.0
  %1885 = vmatmul.mubr.f32.gmra.mrb[0].mxu0 %v1642
  %v1886 = vpop.f32.mrb[0].mxu0
  %v1887 = vadd.f32 0.0, %v1886
  %v1888 = vpop.f32.mrb[0].mxu0
  %1889 = vmatprep.mubr.f32.mxu0 0.0
  %1890 = vmatmul.mubr.f32.gmra.mrb[0].mxu0 %v1645
  %v1891 = vpop.f32.mrb[0].mxu0
  %v1892 = vadd.f32 0.0, %v1891
  %v1893 = vpop.f32.mrb[0].mxu0
  %1894 = vmatprep.mubr.f32.mxu0 0.0
  %1895 = vmatmul.mubr.f32.gmra.mrb[0].mxu0 %v1648
  %v1896 = vpop.f32.mrb[0].mxu0
  %v1897 = vadd.f32 0.0, %v1896
  %v1898 = vpop.f32.mrb[0].mxu0
  %1899 = vmatprep.mubr.f32.mxu0 0.0
  %1900 = vmatmul.mubr.f32.gmra.mrb[0].mxu0 %v1651
  %v1901 = vpop.f32.mrb[0].mxu0
  %v1902 = vadd.f32 0.0, %v1901
  %v1903 = vpop.f32.mrb[0].mxu0
  %1904 = vmatprep.mubr.f32.mxu0 0.0
  %1905 = vmatmul.mubr.f32.gmra.mrb[0].mxu0 %v1654
  %v1906 = vpop.f32.mrb[0].mxu0
  %v1907 = vadd.f32 0.0, %v1906
  %v1908 = vpop.f32.mrb[0].mxu0
  %1909 = vmatprep.mubr.f32.mxu0 0.0
  %1910 = vmatmul.mubr.f32.gmra.mrb[0].mxu0 %v1657
  %v1911 = vpop.f32.mrb[0].mxu0
  %v1912 = vadd.f32 0.0, %v1911
  %v1913 = vpop.f32.mrb[0].mxu0
  %1914 = vmatprep.mubr.f32.mxu0 0.0
  %1915 = vmatmul.mubr.f32.gmra.mrb[0].mxu0 %v1660
  %v1916 = vpop.f32.mrb[0].mxu0
  %v1917 = vadd.f32 0.0, %v1916
  %v1918 = vpop.f32.mrb[0].mxu0
  %1919 = vmatprep.mubr.f32.mxu0 0.0
  %1920 = vmatmul.mubr.f32.gmra.mrb[0].mxu0 %v1663
  %v1921 = vpop.f32.mrb[0].mxu0
  %v1922 = vadd.f32 0.0, %v1921
  %v1923 = vpop.f32.mrb[0].mxu0
  %1924 = vmatprep.mubr.f32.mxu0 0.0
  %1925 = vmatmul.mubr.f32.gmra.mrb[0].mxu0 %v1666
  %v1926 = vpop.f32.mrb[0].mxu0
  %v1927 = vadd.f32 0.0, %v1926
  %v1928 = vpop.f32.mrb[0].mxu0
  %1929 = vmatprep.mubr.f32.mxu0 0.0
  %1930 = vmatmul.mubr.f32.gmra.mrb[0].mxu0 %v1669
  %v1931 = vpop.f32.mrb[0].mxu0
  %v1932 = vadd.f32 0.0, %v1931
  %v1933 = vpop.f32.mrb[0].mxu0
  %1934 = vmatprep.mubr.f32.mxu0 0.0
  %1935 = vmatmul.mubr.f32.gmra.mrb[0].mxu0 %v1672
  %v1936 = vpop.f32.mrb[0].mxu0
  %v1937 = vadd.f32 0.0, %v1936
  %v1938 = vpop.f32.mrb[0].mxu0
  %1939 = vmatprep.mubr.f32.mxu0 0.0
  %1940 = vmatmul.mubr.f32.gmra.mrb[0].mxu0 %v1675
  %v1941 = vpop.f32.mrb[0].mxu0
  %v1942 = vadd.f32 0.0, %v1941
  %v1943 = vpop.f32.mrb[0].mxu0
  %1944 = vmatprep.mubr.f32.mxu0 0.0
  %1945 = vmatmul.mubr.f32.gmra.mrb[0].mxu0 %v1678
  %v1946 = vpop.f32.mrb[0].mxu0
  %v1947 = vadd.f32 0.0, %v1946
  %v1948 = vpop.f32.mrb[0].mxu0
  %1949 = vmatprep.mubr.f32.mxu0 0.0
  %1950 = vmatmul.mubr.f32.gmra.mrb[0].mxu0 %v1681
  %v1951 = vpop.f32.mrb[0].mxu0
  %v1952 = vadd.f32 0.0, %v1951
  %v1953 = vpop.f32.mrb[0].mxu0
  %1954 = vmatprep.mubr.f32.mxu0 0.0
  %1955 = vmatmul.mubr.f32.gmra.mrb[0].mxu0 %v1684
  %v1956 = vpop.f32.mrb[0].mxu0
  %v1957 = vadd.f32 0.0, %v1956
  %v1958 = vpop.f32.mrb[0].mxu0
  %1959 = vmatprep.mubr.f32.mxu0 0.0
  %1960 = vmatmul.mubr.f32.gmra.mrb[0].mxu0 %v1687
  %v1961 = vpop.f32.mrb[0].mxu0
  %v1962 = vadd.f32 0.0, %v1961
  %v1963 = vpop.f32.mrb[0].mxu0
  %1964 = vmatprep.mubr.f32.mxu0 0.0
  %1965 = vmatmul.mubr.f32.gmra.mrb[0].mxu0 %v1690
  %v1966 = vpop.f32.mrb[0].mxu0
  %v1967 = vadd.f32 0.0, %v1966
  %v1968 = vpop.f32.mrb[0].mxu0
  %1969 = vmatprep.mubr.f32.mxu0 0.0
  %1970 = vmatmul.mubr.f32.gmra.mrb[0].mxu0 %v1693
  %v1971 = vpop.f32.mrb[0].mxu0
  %v1972 = vadd.f32 0.0, %v1971
  %v1973 = vpop.f32.mrb[0].mxu0
  %1974 = vmatprep.mubr.f32.mxu0 0.0
  %1975 = vmatmul.mubr.f32.gmra.mrb[0].mxu0 %v1696
  %v1976 = vpop.f32.mrb[0].mxu0
  %v1977 = vadd.f32 0.0, %v1976
  %v1978 = vpop.f32.mrb[0].mxu0
  %1979 = vmatprep.mubr.f32.mxu0 0.0
  %1980 = vmatmul.mubr.f32.gmra.mrb[0].mxu0 %v1699
  %v1981 = vpop.f32.mrb[0].mxu0
  %v1982 = vadd.f32 0.0, %v1981
  %v1983 = vpop.f32.mrb[0].mxu0
  %1984 = vmatprep.mubr.f32.mxu0 0.0
  %1985 = vmatmul.mubr.f32.gmra.mrb[0].mxu0 %v1702
  %v1986 = vpop.f32.mrb[0].mxu0
  %v1987 = vadd.f32 0.0, %v1986
  %v1988 = vpop.f32.mrb[0].mxu0
  %1989 = vmatprep.mubr.f32.mxu0 0.0
  %1990 = vmatmul.mubr.f32.gmra.mrb[0].mxu0 %v1705
  %v1991 = vpop.f32.mrb[0].mxu0
  %v1992 = vadd.f32 0.0, %v1991
  %v1993 = vpop.f32.mrb[0].mxu0
  %1994 = vmatprep.mubr.f32.mxu0 0.0
  %1995 = vmatmul.mubr.f32.gmra.mrb[0].mxu0 %v1708
  %v1996 = vpop.f32.mrb[0].mxu0
  %v1997 = vadd.f32 0.0, %v1996
  %v1998 = vpop.f32.mrb[0].mxu0
  %1999 = vmatprep.mubr.f32.mxu0 0.0
  %2000 = vmatmul.mubr.f32.gmra.mrb[0].mxu0 %v1711
  %v2001 = vpop.f32.mrb[0].mxu0
  %v2002 = vadd.f32 0.0, %v2001
  %v2003 = vpop.f32.mrb[0].mxu0
  %2004 = vmatprep.mubr.f32.mxu0 0.0
  %2005 = vmatmul.mubr.f32.gmra.mrb[0].mxu0 %v1714
  %v2006 = vpop.f32.mrb[0].mxu0
  %v2007 = vadd.f32 0.0, %v2006
  %v2008 = vpop.f32.mrb[0].mxu0
  %2009 = vmatprep.mubr.f32.mxu0 0.0
  %2010 = vmatmul.mubr.f32.gmra.mrb[0].mxu0 %v1717
  %v2011 = vpop.f32.mrb[0].mxu0
  %v2012 = vadd.f32 0.0, %v2011
  %v2013 = vpop.f32.mrb[0].mxu0
  %2014 = vmatprep.mubr.f32.mxu0 0.0
  %2015 = vmatmul.mubr.f32.gmra.mrb[0].mxu0 %v1720
  %v2016 = vpop.f32.mrb[0].mxu0
  %v2017 = vadd.f32 0.0, %v2016
  %v2018 = vpop.f32.mrb[0].mxu0
  %2019 = vmatprep.mubr.f32.mxu0 0.0
  %2020 = vmatmul.mubr.f32.gmra.mrb[0].mxu0 %v1723
  %v2021 = vpop.f32.mrb[0].mxu0
  %v2022 = vadd.f32 0.0, %v2021
  %v2023 = vpop.f32.mrb[0].mxu0
  %2024 = vmatprep.mubr.f32.mxu0 0.0
  %2025 = vmatmul.mubr.f32.gmra.mrb[0].mxu0 %v1726
  %v2026 = vpop.f32.mrb[0].mxu0
  %v2027 = vadd.f32 0.0, %v2026
  %v2028 = vpop.f32.mrb[0].mxu0
  %2029 = vmatprep.mubr.f32.mxu0 0.0
  %2030 = vmatmul.mubr.f32.gmra.mrb[0].mxu0 %v1729
  %v2031 = vpop.f32.mrb[0].mxu0
  %v2032 = vadd.f32 0.0, %v2031
  %v2033 = vpop.f32.mrb[0].mxu0
  %2034 = vmatprep.mubr.f32.mxu0 0.0
  %2035 = vmatmul.mubr.f32.gmra.mrb[0].mxu0 %v1732
  %v2036 = vpop.f32.mrb[0].mxu0
  %v2037 = vadd.f32 0.0, %v2036
  %v2038 = vpop.f32.mrb[0].mxu0
  %2039 = vmatprep.mubr.f32.mxu0 0.0
  %2040 = vmatmul.mubr.f32.gmra.mrb[0].mxu0 %v1735
  %v2041 = vpop.f32.mrb[0].mxu0
  %v2042 = vadd.f32 0.0, %v2041
  %v2043 = vpop.f32.mrb[0].mxu0
  %2044 = vmatprep.mubr.f32.mxu0 0.0
  %2045 = vmatmul.mubr.f32.gmra.mrb[0].mxu0 %v1738
  %v2046 = vpop.f32.mrb[0].mxu0
  %v2047 = vadd.f32 0.0, %v2046
  %v2048 = vpop.f32.mrb[0].mxu0
  %2049 = vdwg.mxu0
  %v2050 = vmax.f32 %v286, %v793
  %v2051 = vmax.f32 %v291, %v798
  %v2052 = vmax.f32 %v296, %v803
  %v2053 = vmax.f32 %v301, %v808
  %v2054 = vmax.f32 %v306, %v813
  %v2055 = vmax.f32 %v311, %v818
  %v2056 = vmax.f32 %v316, %v823
  %v2057 = vmax.f32 %v321, %v828
  %v2058 = vmax.f32 %v326, %v833
  %v2059 = vmax.f32 %v331, %v838
  %v2060 = vmax.f32 %v336, %v843
  %v2061 = vmax.f32 %v341, %v848
  %v2062 = vmax.f32 %v346, %v853
  %v2063 = vmax.f32 %v351, %v858
  %v2064 = vmax.f32 %v356, %v863
  %v2065 = vmax.f32 %v361, %v868
  %v2066 = vmax.f32 %v366, %v873
  %v2067 = vmax.f32 %v371, %v878
  %v2068 = vmax.f32 %v376, %v883
  %v2069 = vmax.f32 %v381, %v888
  %v2070 = vmax.f32 %v386, %v893
  %v2071 = vmax.f32 %v391, %v898
  %v2072 = vmax.f32 %v396, %v903
  %v2073 = vmax.f32 %v401, %v908
  %v2074 = vmax.f32 %v406, %v913
  %v2075 = vmax.f32 %v411, %v918
  %v2076 = vmax.f32 %v416, %v923
  %v2077 = vmax.f32 %v421, %v928
  %v2078 = vmax.f32 %v426, %v933
  %v2079 = vmax.f32 %v431, %v938
  %v2080 = vmax.f32 %v436, %v943
  %v2081 = vmax.f32 %v441, %v948
  %v2082 = vmax.f32 %v446, %v953
  %v2083 = vmax.f32 %v451, %v958
  %v2084 = vmax.f32 %v456, %v963
  %v2085 = vmax.f32 %v461, %v968
  %v2086 = vmax.f32 %v466, %v973
  %v2087 = vmax.f32 %v471, %v978
  %v2088 = vmax.f32 %v476, %v983
  %v2089 = vmax.f32 %v481, %v988
  %v2090 = vmax.f32 %v486, %v993
  %v2091 = vmax.f32 %v491, %v998
  %v2092 = vmax.f32 %v496, %v1003
  %v2093 = vmax.f32 %v501, %v1008
  %v2094 = vmax.f32 %v506, %v1013
  %v2095 = vmax.f32 %v511, %v1018
  %v2096 = vmax.f32 %v516, %v1023
  %v2097 = vmax.f32 %v521, %v1028
  %v2098 = vmax.f32 %v526, %v1033
  %v2099 = vmax.f32 %v1300, %v1807
  %v2100 = vmax.f32 %v1305, %v1812
  %v2101 = vmax.f32 %v1310, %v1817
  %v2102 = vmax.f32 %v1315, %v1822
  %v2103 = vmax.f32 %v1320, %v1827
  %v2104 = vmax.f32 %v1325, %v1832
  %v2105 = vmax.f32 %v1330, %v1837
  %v2106 = vmax.f32 %v1335, %v1842
  %v2107 = vmax.f32 %v1340, %v1847
  %v2108 = vmax.f32 %v1345, %v1852
  %v2109 = vmax.f32 %v1350, %v1857
  %v2110 = vmax.f32 %v1355, %v1862
  %v2111 = vmax.f32 %v1360, %v1867
  %v2112 = vmax.f32 %v1365, %v1872
  %v2113 = vmax.f32 %v1370, %v1877
  %v2114 = vmax.f32 %v1375, %v1882
  %v2115 = vmax.f32 %v1380, %v1887
  %v2116 = vmax.f32 %v1385, %v1892
  %v2117 = vmax.f32 %v1390, %v1897
  %v2118 = vmax.f32 %v1395, %v1902
  %v2119 = vmax.f32 %v1400, %v1907
  %v2120 = vmax.f32 %v1405, %v1912
  %v2121 = vmax.f32 %v1410, %v1917
  %v2122 = vmax.f32 %v1415, %v1922
  %v2123 = vmax.f32 %v1420, %v1927
  %v2124 = vmax.f32 %v1425, %v1932
  %v2125 = vmax.f32 %v1430, %v1937
  %v2126 = vmax.f32 %v1435, %v1942
  %v2127 = vmax.f32 %v1440, %v1947
  %v2128 = vmax.f32 %v1445, %v1952
  %v2129 = vmax.f32 %v1450, %v1957
  %v2130 = vmax.f32 %v1455, %v1962
  %v2131 = vmax.f32 %v1460, %v1967
  %v2132 = vmax.f32 %v1465, %v1972
  %v2133 = vmax.f32 %v1470, %v1977
  %v2134 = vmax.f32 %v1475, %v1982
  %v2135 = vmax.f32 %v1480, %v1987
  %v2136 = vmax.f32 %v1485, %v1992
  %v2137 = vmax.f32 %v1490, %v1997
  %v2138 = vmax.f32 %v1495, %v2002
  %v2139 = vmax.f32 %v1500, %v2007
  %v2140 = vmax.f32 %v1505, %v2012
  %v2141 = vmax.f32 %v1510, %v2017
  %v2142 = vmax.f32 %v1515, %v2022
  %v2143 = vmax.f32 %v1520, %v2027
  %v2144 = vmax.f32 %v1525, %v2032
  %v2145 = vmax.f32 %v1530, %v2037
  %v2146 = vmax.f32 %v1535, %v2042
  %v2147 = vmax.f32 %v1540, %v2047
  %v2148 = vmax.f32 %v2050, %v2099
  %v2149 = vmax.f32 %v2051, %v2100
  %v2150 = vmax.f32 %v2052, %v2101
  %v2151 = vmax.f32 %v2053, %v2102
  %v2152 = vmax.f32 %v2054, %v2103
  %v2153 = vmax.f32 %v2055, %v2104
  %v2154 = vmax.f32 %v2056, %v2105
  %v2155 = vmax.f32 %v2057, %v2106
  %v2156 = vmax.f32 %v2058, %v2107
  %v2157 = vmax.f32 %v2059, %v2108
  %v2158 = vmax.f32 %v2060, %v2109
  %v2159 = vmax.f32 %v2061, %v2110
  %v2160 = vmax.f32 %v2062, %v2111
  %v2161 = vmax.f32 %v2063, %v2112
  %v2162 = vmax.f32 %v2064, %v2113
  %v2163 = vmax.f32 %v2065, %v2114
  %v2164 = vmax.f32 %v2066, %v2115
  %v2165 = vmax.f32 %v2067, %v2116
  %v2166 = vmax.f32 %v2068, %v2117
  %v2167 = vmax.f32 %v2069, %v2118
  %v2168 = vmax.f32 %v2070, %v2119
  %v2169 = vmax.f32 %v2071, %v2120
  %v2170 = vmax.f32 %v2072, %v2121
  %v2171 = vmax.f32 %v2073, %v2122
  %v2172 = vmax.f32 %v2074, %v2123
  %v2173 = vmax.f32 %v2075, %v2124
  %v2174 = vmax.f32 %v2076, %v2125
  %v2175 = vmax.f32 %v2077, %v2126
  %v2176 = vmax.f32 %v2078, %v2127
  %v2177 = vmax.f32 %v2079, %v2128
  %v2178 = vmax.f32 %v2080, %v2129
  %v2179 = vmax.f32 %v2081, %v2130
  %v2180 = vmax.f32 %v2082, %v2131
  %v2181 = vmax.f32 %v2083, %v2132
  %v2182 = vmax.f32 %v2084, %v2133
  %v2183 = vmax.f32 %v2085, %v2134
  %v2184 = vmax.f32 %v2086, %v2135
  %v2185 = vmax.f32 %v2087, %v2136
  %v2186 = vmax.f32 %v2088, %v2137
  %v2187 = vmax.f32 %v2089, %v2138
  %v2188 = vmax.f32 %v2090, %v2139
  %v2189 = vmax.f32 %v2091, %v2140
  %v2190 = vmax.f32 %v2092, %v2141
  %v2191 = vmax.f32 %v2093, %v2142
  %v2192 = vmax.f32 %v2094, %v2143
  %v2193 = vmax.f32 %v2095, %v2144
  %v2194 = vmax.f32 %v2096, %v2145
  %v2195 = vmax.f32 %v2097, %v2146
  %v2196 = vmax.f32 %v2098, %v2147
  %v2197 = vld [vmem:[%s2] sm:$0x1]
  %v2199 = vlaneseq
  %v2200 = vshrl.u32 %v2199, 7
  %v2201 = vsub.s32 0, %v2200
  %v2202 = vrot.slane %v2197, %v2201
  %v2204 = vadd.f32 %v2148, %v2202
  %v2205 = vadd.f32 %v2149, %v2202
  %v2206 = vadd.f32 %v2150, %v2202
  %v2207 = vadd.f32 %v2151, %v2202
  %v2208 = vadd.f32 %v2152, %v2202
  %v2209 = vadd.f32 %v2153, %v2202
  %v2210 = vadd.f32 %v2154, %v2202
  %v2211 = vadd.f32 %v2155, %v2202
  %v2212 = vadd.f32 %v2156, %v2202
  %v2213 = vadd.f32 %v2157, %v2202
  %v2214 = vadd.f32 %v2158, %v2202
  %v2215 = vadd.f32 %v2159, %v2202
  %v2216 = vadd.f32 %v2160, %v2202
  %v2217 = vadd.f32 %v2161, %v2202
  %v2218 = vadd.f32 %v2162, %v2202
  %v2219 = vadd.f32 %v2163, %v2202
  %v2220 = vadd.f32 %v2164, %v2202
  %v2221 = vadd.f32 %v2165, %v2202
  %v2222 = vadd.f32 %v2166, %v2202
  %v2223 = vadd.f32 %v2167, %v2202
  %v2224 = vadd.f32 %v2168, %v2202
  %v2225 = vadd.f32 %v2169, %v2202
  %v2226 = vadd.f32 %v2170, %v2202
  %v2227 = vadd.f32 %v2171, %v2202
  %v2228 = vadd.f32 %v2172, %v2202
  %v2229 = vadd.f32 %v2173, %v2202
  %v2230 = vadd.f32 %v2174, %v2202
  %v2231 = vadd.f32 %v2175, %v2202
  %v2232 = vadd.f32 %v2176, %v2202
  %v2233 = vadd.f32 %v2177, %v2202
  %v2234 = vadd.f32 %v2178, %v2202
  %v2235 = vadd.f32 %v2179, %v2202
  %v2236 = vadd.f32 %v2180, %v2202
  %v2237 = vadd.f32 %v2181, %v2202
  %v2238 = vadd.f32 %v2182, %v2202
  %v2239 = vadd.f32 %v2183, %v2202
  %v2240 = vadd.f32 %v2184, %v2202
  %v2241 = vadd.f32 %v2185, %v2202
  %v2242 = vadd.f32 %v2186, %v2202
  %v2243 = vadd.f32 %v2187, %v2202
  %v2244 = vadd.f32 %v2188, %v2202
  %v2245 = vadd.f32 %v2189, %v2202
  %v2246 = vadd.f32 %v2190, %v2202
  %v2247 = vadd.f32 %v2191, %v2202
  %v2248 = vadd.f32 %v2192, %v2202
  %v2249 = vadd.f32 %v2193, %v2202
  %v2250 = vadd.f32 %v2194, %v2202
  %v2251 = vadd.f32 %v2195, %v2202
  %v2252 = vadd.f32 %v2196, %v2202
  %v2253 = vmax.f32 %v2204, 0.0
  %v2254 = vmax.f32 %v2205, 0.0
  %v2255 = vmax.f32 %v2206, 0.0
  %v2256 = vmax.f32 %v2207, 0.0
  %v2257 = vmax.f32 %v2208, 0.0
  %v2258 = vmax.f32 %v2209, 0.0
  %v2259 = vmax.f32 %v2210, 0.0
  %v2260 = vmax.f32 %v2211, 0.0
  %v2261 = vmax.f32 %v2212, 0.0
  %v2262 = vmax.f32 %v2213, 0.0
  %v2263 = vmax.f32 %v2214, 0.0
  %v2264 = vmax.f32 %v2215, 0.0
  %v2265 = vmax.f32 %v2216, 0.0
  %v2266 = vmax.f32 %v2217, 0.0
  %v2267 = vmax.f32 %v2218, 0.0
  %v2268 = vmax.f32 %v2219, 0.0
  %v2269 = vmax.f32 %v2220, 0.0
  %v2270 = vmax.f32 %v2221, 0.0
  %v2271 = vmax.f32 %v2222, 0.0
  %v2272 = vmax.f32 %v2223, 0.0
  %v2273 = vmax.f32 %v2224, 0.0
  %v2274 = vmax.f32 %v2225, 0.0
  %v2275 = vmax.f32 %v2226, 0.0
  %v2276 = vmax.f32 %v2227, 0.0
  %v2277 = vmax.f32 %v2228, 0.0
  %v2278 = vmax.f32 %v2229, 0.0
  %v2279 = vmax.f32 %v2230, 0.0
  %v2280 = vmax.f32 %v2231, 0.0
  %v2281 = vmax.f32 %v2232, 0.0
  %v2282 = vmax.f32 %v2233, 0.0
  %v2283 = vmax.f32 %v2234, 0.0
  %v2284 = vmax.f32 %v2235, 0.0
  %v2285 = vmax.f32 %v2236, 0.0
  %v2286 = vmax.f32 %v2237, 0.0
  %v2287 = vmax.f32 %v2238, 0.0
  %v2288 = vmax.f32 %v2239, 0.0
  %v2289 = vmax.f32 %v2240, 0.0
  %v2290 = vmax.f32 %v2241, 0.0
  %v2291 = vmax.f32 %v2242, 0.0
  %v2292 = vmax.f32 %v2243, 0.0
  %v2293 = vmax.f32 %v2244, 0.0
  %v2294 = vmax.f32 %v2245, 0.0
  %v2295 = vmax.f32 %v2246, 0.0
  %v2296 = vmax.f32 %v2247, 0.0
  %v2297 = vmax.f32 %v2248, 0.0
  %v2298 = vmax.f32 %v2249, 0.0
  %v2299 = vmax.f32 %v2250, 0.0
  %v2300 = vmax.f32 %v2251, 0.0
  %v2301 = vmax.f32 %v2252, 0.0
  %2302 = vst [vmem:[%s3] sm:$0xff] %v2253
  %2303 = vst [vmem:[%s3 + $0x8] sm:$0xff] %v2254
  %2304 = vst [vmem:[%s3 + $0x10] sm:$0xff] %v2255
  %2305 = vst [vmem:[%s3 + $0x18] sm:$0xff] %v2256
  %2306 = vst [vmem:[%s3 + $0x20] sm:$0xff] %v2257
  %2307 = vst [vmem:[%s3 + $0x28] sm:$0xff] %v2258
  %2308 = vst [vmem:[%s3 + $0x30] sm:$0xff] %v2259
  %2309 = vst [vmem:[%s3 + $0x38] sm:$0xff] %v2260
  %2310 = vst [vmem:[%s3 + $0x40] sm:$0xff] %v2261
  %2311 = vst [vmem:[%s3 + $0x48] sm:$0xff] %v2262
  %2312 = vst [vmem:[%s3 + $0x50] sm:$0xff] %v2263
  %2313 = vst [vmem:[%s3 + $0x58] sm:$0xff] %v2264
  %2314 = vst [vmem:[%s3 + $0x60] sm:$0xff] %v2265
  %2315 = vst [vmem:[%s3 + $0x68] sm:$0xff] %v2266
  %2316 = vst [vmem:[%s3 + $0x70] sm:$0xff] %v2267
  %2317 = vst [vmem:[%s3 + $0x78] sm:$0xff] %v2268
  %2318 = vst [vmem:[%s3 + $0x80] sm:$0xff] %v2269
  %2319 = vst [vmem:[%s3 + $0x88] sm:$0xff] %v2270
  %2320 = vst [vmem:[%s3 + $0x90] sm:$0xff] %v2271
  %2321 = vst [vmem:[%s3 + $0x98] sm:$0xff] %v2272
  %2322 = vst [vmem:[%s3 + $0xa0] sm:$0xff] %v2273
  %2323 = vst [vmem:[%s3 + $0xa8] sm:$0xff] %v2274
  %2324 = vst [vmem:[%s3 + $0xb0] sm:$0xff] %v2275
  %2325 = vst [vmem:[%s3 + $0xb8] sm:$0xff] %v2276
  %2326 = vst [vmem:[%s3 + $0xc0] sm:$0xff] %v2277
  %2327 = vst [vmem:[%s3 + $0xc8] sm:$0xff] %v2278
  %2328 = vst [vmem:[%s3 + $0xd0] sm:$0xff] %v2279
  %2329 = vst [vmem:[%s3 + $0xd8] sm:$0xff] %v2280
  %2330 = vst [vmem:[%s3 + $0xe0] sm:$0xff] %v2281
  %2331 = vst [vmem:[%s3 + $0xe8] sm:$0xff] %v2282
  %2332 = vst [vmem:[%s3 + $0xf0] sm:$0xff] %v2283
  %2333 = vst [vmem:[%s3 + $0xf8] sm:$0xff] %v2284
  %2334 = vst [vmem:[%s3 + $0x100] sm:$0xff] %v2285
  %2335 = vst [vmem:[%s3 + $0x108] sm:$0xff] %v2286
  %2336 = vst [vmem:[%s3 + $0x110] sm:$0xff] %v2287
  %2337 = vst [vmem:[%s3 + $0x118] sm:$0xff] %v2288
  %2338 = vst [vmem:[%s3 + $0x120] sm:$0xff] %v2289
  %2339 = vst [vmem:[%s3 + $0x128] sm:$0xff] %v2290
  %2340 = vst [vmem:[%s3 + $0x130] sm:$0xff] %v2291
  %2341 = vst [vmem:[%s3 + $0x138] sm:$0xff] %v2292
  %2342 = vst [vmem:[%s3 + $0x140] sm:$0xff] %v2293
  %2343 = vst [vmem:[%s3 + $0x148] sm:$0xff] %v2294
  %2344 = vst [vmem:[%s3 + $0x150] sm:$0xff] %v2295
  %2345 = vst [vmem:[%s3 + $0x158] sm:$0xff] %v2296
  %2346 = vst [vmem:[%s3 + $0x160] sm:$0xff] %v2297
  %2347 = vst [vmem:[%s3 + $0x168] sm:$0xff] %v2298
  %2348 = vst [vmem:[%s3 + $0x170] sm:$0xff] %v2299
  %2349 = vst [vmem:[%s3 + $0x178] sm:$0xff] %v2300
  %2350 = vst [vmem:[%s3 + $0x180] sm:$0xff] %v2301
  // Predicated region
  $region14: #{model_forward.3} parent=0 // pred_check
    _
  $region15: #{model_forward.3} parent=0 // pred_check_branch
    %2352 = sbr.rel (0) target = $region17
  $region16: #{model_forward.3} parent=0 // pred_region
    _
  $region17: #{model_forward.3} parent=0 // pred_fallthru
    _
  // Predicated region
  $region18: #{model_forward.3} parent=0 // pred_check
    _
  $region19: #{model_forward.3} parent=0 // pred_check_branch
    %2354 = sbr.rel (0) target = $region21
  $region20: #{model_forward.3} parent=0 // pred_region
    _
  $region21: #{model_forward.3} parent=0 // pred_fallthru
    _

// kernel: model_forward.4
$region0: #{model_forward.4}
  #allocation0 [shape = 'u32[]', space=smem, size = 0x4, offset = 0x4, fixed_abs, tag = 'smem constant byte address 0x4 - core index']
  #allocation1 [shape = 'u32[144,128]{1,0:T(1,128)}', space=vmem, size = 0x12000, scoped, tag = 'internal scratch']
  %s0 = inlined_call_operand.vmem [shape: f32[4,56,150], index: 0, kind: input, shape index: {}]
  %s1 = inlined_call_operand.vmem [shape: f32[150,128], index: 1, kind: input, shape index: {}]
  %s2 = inlined_call_operand.vmem [shape: f32[1,128], index: 2, kind: input, shape index: {}]
  %s3 = inlined_call_operand.vmem [shape: f32[56,128], index: 3, kind: output, shape index: {}]
  %s4 = sld [smem:[#allocation0]]
  $region22: #{model_forward.4} parent=0
    _
  %s6 = ssub.s32 1, %s4
  %s7 = scalar_select 0, %s6, %s4
  // Predicated region
  $region2: #{model_forward.4} parent=0 // pred_check
    _
  $region3: #{model_forward.4} parent=0 // pred_check_branch
    %9 = sbr.rel (0) target = $region5
  $region4: #{model_forward.4} parent=0 // pred_region
    _
  $region5: #{model_forward.4} parent=0 // pred_fallthru
    _
  // Predicated region
  $region6: #{model_forward.4} parent=0 // pred_check
    _
  $region7: #{model_forward.4} parent=0 // pred_check_branch
    %11 = sbr.rel (0) target = $region9
  $region8: #{model_forward.4} parent=0 // pred_region
    _
  $region9: #{model_forward.4} parent=0 // pred_fallthru
    _
  // Predicated region
  $region10: #{model_forward.4} parent=0 // pred_check
    _
  $region11: #{model_forward.4} parent=0 // pred_check_branch
    %13 = sbr.rel (0) target = $region13
  $region12: #{model_forward.4} parent=0 // pred_region
    _
  $region13: #{model_forward.4} parent=0 // pred_fallthru
    _
  %v14 = vld [vmem:[%s0] sm:$0xff]
  %v15 = vld [vmem:[%s0 + $0x8] sm:$0xff]
  %v16 = vld [vmem:[%s0 + $0x10] sm:$0xff]
  %v17 = vld [vmem:[%s0 + $0x18] sm:$0xff]
  %v18 = vld [vmem:[%s0 + $0x20] sm:$0xff]
  %v19 = vld [vmem:[%s0 + $0x28] sm:$0xff]
  %v20 = vld [vmem:[%s0 + $0x30] sm:$0xff]
  %v21 = vld [vmem:[%s0 + $0x38] sm:$0xff]
  %v22 = vld [vmem:[%s0 + $0x40] sm:$0xff]
  %v23 = vld [vmem:[%s0 + $0x48] sm:$0xff]
  %v24 = vld [vmem:[%s0 + $0x50] sm:$0xff]
  %v25 = vld [vmem:[%s0 + $0x58] sm:$0xff]
  %v26 = vld [vmem:[%s0 + $0x60] sm:$0xff]
  %v27 = vld [vmem:[%s0 + $0x68] sm:$0xff]
  %v28 = vld [vmem:[%s1] sm:$0xff]
  %v29 = vld [vmem:[%s1 + $0x8] sm:$0xff]
  %v30 = vld [vmem:[%s1 + $0x10] sm:$0xff]
  %v31 = vld [vmem:[%s1 + $0x18] sm:$0xff]
  %v32 = vld [vmem:[%s1 + $0x20] sm:$0xff]
  %v33 = vld [vmem:[%s1 + $0x28] sm:$0xff]
  %v34 = vld [vmem:[%s1 + $0x30] sm:$0xff]
  %v35 = vld [vmem:[%s1 + $0x38] sm:$0xff]
  %v36 = vld [vmem:[%s1 + $0x40] sm:$0xff]
  %v37 = vld [vmem:[%s1 + $0x48] sm:$0xff]
  %v38 = vld [vmem:[%s1 + $0x50] sm:$0xff]
  %v39 = vld [vmem:[%s1 + $0x58] sm:$0xff]
  %v40 = vld [vmem:[%s1 + $0x60] sm:$0xff]
  %v41 = vld [vmem:[%s1 + $0x68] sm:$0xff]
  %v42 = vld [vmem:[%s1 + $0x70] sm:$0xff]
  %v43 = vld [vmem:[%s1 + $0x78] sm:$0xff]
  %v44 = vld [vmem:[%s1 + $0x80] sm:$0xff]
  %v45 = vld [vmem:[%s1 + $0x88] sm:$0xff]
  %v46 = vld [vmem:[%s1 + $0x90] sm:$0x3f]
  %vm47 = vcmask 179200
  %v49 = vsel %vm47, %v15, 0
  %v52 = vsel %vm47, %v17, 0
  %v55 = vsel %vm47, %v19, 0
  %v58 = vsel %vm47, %v21, 0
  %v61 = vsel %vm47, %v23, 0
  %v64 = vsel %vm47, %v25, 0
  %v67 = vsel %vm47, %v27, 0
  %vm69 = vcmask 1045504
  %v71 = vsel %vm69, %v46, 0
  %73 = vmatprep.subr.mxu0 0.0
  %74 = vmatpush1.msra.mxu0 %v28
  %75 = vmatprep.subr.mxu0 0.0
  %76 = vmatpush1.msra.mxu0 %v29
  %77 = vmatprep.subr.mxu0 0.0
  %78 = vmatpush1.msra.mxu0 %v30
  %79 = vmatprep.subr.mxu0 0.0
  %80 = vmatpush1.msra.mxu0 %v31
  %81 = vmatprep.subr.mxu0 0.0
  %82 = vmatpush1.msra.mxu0 %v32
  %83 = vmatprep.subr.mxu0 0.0
  %84 = vmatpush1.msra.mxu0 %v33
  %85 = vmatprep.subr.mxu0 0.0
  %86 = vmatpush1.msra.mxu0 %v34
  %87 = vmatprep.subr.mxu0 0.0
  %88 = vmatpush1.msra.mxu0 %v35
  %89 = vmatprep.subr.mxu0 0.0
  %90 = vmatpush1.msra.mxu0 %v36
  %91 = vmatprep.subr.mxu0 0.0
  %92 = vmatpush1.msra.mxu0 %v37
  %93 = vmatprep.subr.mxu0 0.0
  %94 = vmatpush1.msra.mxu0 %v38
  %95 = vmatprep.subr.mxu0 0.0
  %96 = vmatpush1.msra.mxu0 %v39
  %97 = vmatprep.subr.mxu0 0.0
  %98 = vmatpush1.msra.mxu0 %v40
  %99 = vmatprep.subr.mxu0 0.0
  %100 = vmatpush1.msra.mxu0 %v41
  %101 = vmatprep.subr.mxu0 0.0
  %102 = vmatpush1.msra.mxu0 %v42
  %103 = vmatprep.subr.mxu0 0.0
  %104 = vmatpush1.msra.mxu0 %v43
  %105 = vmatprep.subr.mxu0 0.0
  %106 = vmatpush1.msra.mxu0 %v44
  %107 = vmatprep.subr.mxu0 0.0
  %108 = vmatpush1.msra.mxu0 %v45
  %109 = vmatprep.subr.mxu0 0.0
  %110 = vmatpush1.msra.mxu0 %v71
  %111 = vmatprep.subr.mxu0 0.0
  %112 = vmatpush1.msra.mxu0 0.0
  %113 = vmatprep.subr.mxu0 0.0
  %114 = vmatpush1.msra.mxu0 0.0
  %115 = vmatprep.subr.mxu0 0.0
  %116 = vmatpush1.msra.mxu0 0.0
  %117 = vmatprep.subr.mxu0 0.0
  %118 = vmatpush1.msra.mxu0 0.0
  %119 = vmatprep.subr.mxu0 0.0
  %120 = vmatpush1.msra.mxu0 0.0
  %121 = vmatprep.subr.mxu0 0.0
  %122 = vmatpush1.msra.mxu0 0.0
  %123 = vmatprep.subr.mxu0 0.0
  %124 = vmatpush1.msra.mxu0 0.0
  %125 = vmatprep.subr.mxu0 0.0
  %126 = vmatpush1.msra.mxu0 0.0
  %127 = vmatprep.subr.mxu0 0.0
  %128 = vmatpush1.msra.mxu0 0.0
  %129 = vmatprep.subr.mxu0 0.0
  %130 = vmatpush1.msra.mxu0 0.0
  %131 = vmatprep.subr.mxu0 0.0
  %132 = vmatpush1.msra.mxu0 0.0
  %133 = vmatprep.subr.mxu0 0.0
  %134 = vmatpush1.msra.mxu0 0.0
  %135 = vmatprep.subr.mxu0 0.0
  %136 = vmatpush1.msra.mxu0 0.0
  %137 = vmatprep.mubr.f32.mxu0 %v49
  %138 = vmatmul.mubr.f32.gmra.mrb[0].mxu0 %v14
  %v139 = vpop.f32.mrb[0].mxu0
  %v140 = vadd.f32 0.0, %v139
  %v141 = vpop.f32.mrb[0].mxu0
  %142 = vmatprep.mubr.f32.mxu0 %v52
  %143 = vmatmul.mubr.f32.gmra.mrb[0].mxu0 %v16
  %v144 = vpop.f32.mrb[0].mxu0
  %v145 = vadd.f32 0.0, %v144
  %v146 = vpop.f32.mrb[0].mxu0
  %147 = vmatprep.mubr.f32.mxu0 %v55
  %148 = vmatmul.mubr.f32.gmra.mrb[0].mxu0 %v18
  %v149 = vpop.f32.mrb[0].mxu0
  %v150 = vadd.f32 0.0, %v149
  %v151 = vpop.f32.mrb[0].mxu0
  %152 = vmatprep.mubr.f32.mxu0 %v58
  %153 = vmatmul.mubr.f32.gmra.mrb[0].mxu0 %v20
  %v154 = vpop.f32.mrb[0].mxu0
  %v155 = vadd.f32 0.0, %v154
  %v156 = vpop.f32.mrb[0].mxu0
  %157 = vmatprep.mubr.f32.mxu0 %v61
  %158 = vmatmul.mubr.f32.gmra.mrb[0].mxu0 %v22
  %v159 = vpop.f32.mrb[0].mxu0
  %v160 = vadd.f32 0.0, %v159
  %v161 = vpop.f32.mrb[0].mxu0
  %162 = vmatprep.mubr.f32.mxu0 %v64
  %163 = vmatmul.mubr.f32.gmra.mrb[0].mxu0 %v24
  %v164 = vpop.f32.mrb[0].mxu0
  %v165 = vadd.f32 0.0, %v164
  %v166 = vpop.f32.mrb[0].mxu0
  %167 = vmatprep.mubr.f32.mxu0 %v67
  %168 = vmatmul.mubr.f32.gmra.mrb[0].mxu0 %v26
  %v169 = vpop.f32.mrb[0].mxu0
  %v170 = vadd.f32 0.0, %v169
  %v171 = vpop.f32.mrb[0].mxu0
  %172 = vdwg.mxu0
  %s173 = scalar_lea.vmem %s0, 112
  %v174 = vld [vmem:[%s173] sm:$0xff]
  %v175 = vld [vmem:[%s173 + $0x8] sm:$0xff]
  %v176 = vld [vmem:[%s173 + $0x10] sm:$0xff]
  %v177 = vld [vmem:[%s173 + $0x18] sm:$0xff]
  %v178 = vld [vmem:[%s173 + $0x20] sm:$0xff]
  %v179 = vld [vmem:[%s173 + $0x28] sm:$0xff]
  %v180 = vld [vmem:[%s173 + $0x30] sm:$0xff]
  %v181 = vld [vmem:[%s173 + $0x38] sm:$0xff]
  %v182 = vld [vmem:[%s173 + $0x40] sm:$0xff]
  %v183 = vld [vmem:[%s173 + $0x48] sm:$0xff]
  %v184 = vld [vmem:[%s173 + $0x50] sm:$0xff]
  %v185 = vld [vmem:[%s173 + $0x58] sm:$0xff]
  %v186 = vld [vmem:[%s173 + $0x60] sm:$0xff]
  %v187 = vld [vmem:[%s173 + $0x68] sm:$0xff]
  %v189 = vsel %vm47, %v175, 0
  %v192 = vsel %vm47, %v177, 0
  %v195 = vsel %vm47, %v179, 0
  %v198 = vsel %vm47, %v181, 0
  %v201 = vsel %vm47, %v183, 0
  %v204 = vsel %vm47, %v185, 0
  %v207 = vsel %vm47, %v187, 0
  %209 = vmatprep.subr.mxu0 0.0
  %210 = vmatpush1.msra.mxu0 %v28
  %211 = vmatprep.subr.mxu0 0.0
  %212 = vmatpush1.msra.mxu0 %v29
  %213 = vmatprep.subr.mxu0 0.0
  %214 = vmatpush1.msra.mxu0 %v30
  %215 = vmatprep.subr.mxu0 0.0
  %216 = vmatpush1.msra.mxu0 %v31
  %217 = vmatprep.subr.mxu0 0.0
  %218 = vmatpush1.msra.mxu0 %v32
  %219 = vmatprep.subr.mxu0 0.0
  %220 = vmatpush1.msra.mxu0 %v33
  %221 = vmatprep.subr.mxu0 0.0
  %222 = vmatpush1.msra.mxu0 %v34
  %223 = vmatprep.subr.mxu0 0.0
  %224 = vmatpush1.msra.mxu0 %v35
  %225 = vmatprep.subr.mxu0 0.0
  %226 = vmatpush1.msra.mxu0 %v36
  %227 = vmatprep.subr.mxu0 0.0
  %228 = vmatpush1.msra.mxu0 %v37
  %229 = vmatprep.subr.mxu0 0.0
  %230 = vmatpush1.msra.mxu0 %v38
  %231 = vmatprep.subr.mxu0 0.0
  %232 = vmatpush1.msra.mxu0 %v39
  %233 = vmatprep.subr.mxu0 0.0
  %234 = vmatpush1.msra.mxu0 %v40
  %235 = vmatprep.subr.mxu0 0.0
  %236 = vmatpush1.msra.mxu0 %v41
  %237 = vmatprep.subr.mxu0 0.0
  %238 = vmatpush1.msra.mxu0 %v42
  %239 = vmatprep.subr.mxu0 0.0
  %240 = vmatpush1.msra.mxu0 %v43
  %241 = vmatprep.subr.mxu0 0.0
  %242 = vmatpush1.msra.mxu0 %v44
  %243 = vmatprep.subr.mxu0 0.0
  %244 = vmatpush1.msra.mxu0 %v45
  %245 = vmatprep.subr.mxu0 0.0
  %246 = vmatpush1.msra.mxu0 %v71
  %247 = vmatprep.subr.mxu0 0.0
  %248 = vmatpush1.msra.mxu0 0.0
  %249 = vmatprep.subr.mxu0 0.0
  %250 = vmatpush1.msra.mxu0 0.0
  %251 = vmatprep.subr.mxu0 0.0
  %252 = vmatpush1.msra.mxu0 0.0
  %253 = vmatprep.subr.mxu0 0.0
  %254 = vmatpush1.msra.mxu0 0.0
  %255 = vmatprep.subr.mxu0 0.0
  %256 = vmatpush1.msra.mxu0 0.0
  %257 = vmatprep.subr.mxu0 0.0
  %258 = vmatpush1.msra.mxu0 0.0
  %259 = vmatprep.subr.mxu0 0.0
  %260 = vmatpush1.msra.mxu0 0.0
  %261 = vmatprep.subr.mxu0 0.0
  %262 = vmatpush1.msra.mxu0 0.0
  %263 = vmatprep.subr.mxu0 0.0
  %264 = vmatpush1.msra.mxu0 0.0
  %265 = vmatprep.subr.mxu0 0.0
  %266 = vmatpush1.msra.mxu0 0.0
  %267 = vmatprep.subr.mxu0 0.0
  %268 = vmatpush1.msra.mxu0 0.0
  %269 = vmatprep.subr.mxu0 0.0
  %270 = vmatpush1.msra.mxu0 0.0
  %271 = vmatprep.subr.mxu0 0.0
  %272 = vmatpush1.msra.mxu0 0.0
  %273 = vmatprep.mubr.f32.mxu0 %v189
  %274 = vmatmul.mubr.f32.gmra.mrb[0].mxu0 %v174
  %v275 = vpop.f32.mrb[0].mxu0
  %v276 = vadd.f32 0.0, %v275
  %v277 = vpop.f32.mrb[0].mxu0
  %278 = vmatprep.mubr.f32.mxu0 %v192
  %279 = vmatmul.mubr.f32.gmra.mrb[0].mxu0 %v176
  %v280 = vpop.f32.mrb[0].mxu0
  %v281 = vadd.f32 0.0, %v280
  %v282 = vpop.f32.mrb[0].mxu0
  %283 = vmatprep.mubr.f32.mxu0 %v195
  %284 = vmatmul.mubr.f32.gmra.mrb[0].mxu0 %v178
  %v285 = vpop.f32.mrb[0].mxu0
  %v286 = vadd.f32 0.0, %v285
  %v287 = vpop.f32.mrb[0].mxu0
  %288 = vmatprep.mubr.f32.mxu0 %v198
  %289 = vmatmul.mubr.f32.gmra.mrb[0].mxu0 %v180
  %v290 = vpop.f32.mrb[0].mxu0
  %v291 = vadd.f32 0.0, %v290
  %v292 = vpop.f32.mrb[0].mxu0
  %293 = vmatprep.mubr.f32.mxu0 %v201
  %294 = vmatmul.mubr.f32.gmra.mrb[0].mxu0 %v182
  %v295 = vpop.f32.mrb[0].mxu0
  %v296 = vadd.f32 0.0, %v295
  %v297 = vpop.f32.mrb[0].mxu0
  %298 = vmatprep.mubr.f32.mxu0 %v204
  %299 = vmatmul.mubr.f32.gmra.mrb[0].mxu0 %v184
  %v300 = vpop.f32.mrb[0].mxu0
  %v301 = vadd.f32 0.0, %v300
  %v302 = vpop.f32.mrb[0].mxu0
  %303 = vmatprep.mubr.f32.mxu0 %v207
  %304 = vmatmul.mubr.f32.gmra.mrb[0].mxu0 %v186
  %v305 = vpop.f32.mrb[0].mxu0
  %v306 = vadd.f32 0.0, %v305
  %v307 = vpop.f32.mrb[0].mxu0
  %308 = vdwg.mxu0
  %s309 = scalar_lea.vmem %s0, 224
  %v310 = vld [vmem:[%s309] sm:$0xff]
  %v311 = vld [vmem:[%s309 + $0x8] sm:$0xff]
  %v312 = vld [vmem:[%s309 + $0x10] sm:$0xff]
  %v313 = vld [vmem:[%s309 + $0x18] sm:$0xff]
  %v314 = vld [vmem:[%s309 + $0x20] sm:$0xff]
  %v315 = vld [vmem:[%s309 + $0x28] sm:$0xff]
  %v316 = vld [vmem:[%s309 + $0x30] sm:$0xff]
  %v317 = vld [vmem:[%s309 + $0x38] sm:$0xff]
  %v318 = vld [vmem:[%s309 + $0x40] sm:$0xff]
  %v319 = vld [vmem:[%s309 + $0x48] sm:$0xff]
  %v320 = vld [vmem:[%s309 + $0x50] sm:$0xff]
  %v321 = vld [vmem:[%s309 + $0x58] sm:$0xff]
  %v322 = vld [vmem:[%s309 + $0x60] sm:$0xff]
  %v323 = vld [vmem:[%s309 + $0x68] sm:$0xff]
  %v325 = vsel %vm47, %v311, 0
  %v328 = vsel %vm47, %v313, 0
  %v331 = vsel %vm47, %v315, 0
  %v334 = vsel %vm47, %v317, 0
  %v337 = vsel %vm47, %v319, 0
  %v340 = vsel %vm47, %v321, 0
  %v343 = vsel %vm47, %v323, 0
  %345 = vmatprep.subr.mxu0 0.0
  %346 = vmatpush1.msra.mxu0 %v28
  %347 = vmatprep.subr.mxu0 0.0
  %348 = vmatpush1.msra.mxu0 %v29
  %349 = vmatprep.subr.mxu0 0.0
  %350 = vmatpush1.msra.mxu0 %v30
  %351 = vmatprep.subr.mxu0 0.0
  %352 = vmatpush1.msra.mxu0 %v31
  %353 = vmatprep.subr.mxu0 0.0
  %354 = vmatpush1.msra.mxu0 %v32
  %355 = vmatprep.subr.mxu0 0.0
  %356 = vmatpush1.msra.mxu0 %v33
  %357 = vmatprep.subr.mxu0 0.0
  %358 = vmatpush1.msra.mxu0 %v34
  %359 = vmatprep.subr.mxu0 0.0
  %360 = vmatpush1.msra.mxu0 %v35
  %361 = vmatprep.subr.mxu0 0.0
  %362 = vmatpush1.msra.mxu0 %v36
  %363 = vmatprep.subr.mxu0 0.0
  %364 = vmatpush1.msra.mxu0 %v37
  %365 = vmatprep.subr.mxu0 0.0
  %366 = vmatpush1.msra.mxu0 %v38
  %367 = vmatprep.subr.mxu0 0.0
  %368 = vmatpush1.msra.mxu0 %v39
  %369 = vmatprep.subr.mxu0 0.0
  %370 = vmatpush1.msra.mxu0 %v40
  %371 = vmatprep.subr.mxu0 0.0
  %372 = vmatpush1.msra.mxu0 %v41
  %373 = vmatprep.subr.mxu0 0.0
  %374 = vmatpush1.msra.mxu0 %v42
  %375 = vmatprep.subr.mxu0 0.0
  %376 = vmatpush1.msra.mxu0 %v43
  %377 = vmatprep.subr.mxu0 0.0
  %378 = vmatpush1.msra.mxu0 %v44
  %379 = vmatprep.subr.mxu0 0.0
  %380 = vmatpush1.msra.mxu0 %v45
  %381 = vmatprep.subr.mxu0 0.0
  %382 = vmatpush1.msra.mxu0 %v71
  %383 = vmatprep.subr.mxu0 0.0
  %384 = vmatpush1.msra.mxu0 0.0
  %385 = vmatprep.subr.mxu0 0.0
  %386 = vmatpush1.msra.mxu0 0.0
  %387 = vmatprep.subr.mxu0 0.0
  %388 = vmatpush1.msra.mxu0 0.0
  %389 = vmatprep.subr.mxu0 0.0
  %390 = vmatpush1.msra.mxu0 0.0
  %391 = vmatprep.subr.mxu0 0.0
  %392 = vmatpush1.msra.mxu0 0.0
  %393 = vmatprep.subr.mxu0 0.0
  %394 = vmatpush1.msra.mxu0 0.0
  %395 = vmatprep.subr.mxu0 0.0
  %396 = vmatpush1.msra.mxu0 0.0
  %397 = vmatprep.subr.mxu0 0.0
  %398 = vmatpush1.msra.mxu0 0.0
  %399 = vmatprep.subr.mxu0 0.0
  %400 = vmatpush1.msra.mxu0 0.0
  %401 = vmatprep.subr.mxu0 0.0
  %402 = vmatpush1.msra.mxu0 0.0
  %403 = vmatprep.subr.mxu0 0.0
  %404 = vmatpush1.msra.mxu0 0.0
  %405 = vmatprep.subr.mxu0 0.0
  %406 = vmatpush1.msra.mxu0 0.0
  %407 = vmatprep.subr.mxu0 0.0
  %408 = vmatpush1.msra.mxu0 0.0
  %409 = vmatprep.mubr.f32.mxu0 %v325
  %410 = vmatmul.mubr.f32.gmra.mrb[0].mxu0 %v310
  %v411 = vpop.f32.mrb[0].mxu0
  %v412 = vadd.f32 0.0, %v411
  %v413 = vpop.f32.mrb[0].mxu0
  %414 = vmatprep.mubr.f32.mxu0 %v328
  %415 = vmatmul.mubr.f32.gmra.mrb[0].mxu0 %v312
  %v416 = vpop.f32.mrb[0].mxu0
  %v417 = vadd.f32 0.0, %v416
  %v418 = vpop.f32.mrb[0].mxu0
  %419 = vmatprep.mubr.f32.mxu0 %v331
  %420 = vmatmul.mubr.f32.gmra.mrb[0].mxu0 %v314
  %v421 = vpop.f32.mrb[0].mxu0
  %v422 = vadd.f32 0.0, %v421
  %v423 = vpop.f32.mrb[0].mxu0
  %424 = vmatprep.mubr.f32.mxu0 %v334
  %425 = vmatmul.mubr.f32.gmra.mrb[0].mxu0 %v316
  %v426 = vpop.f32.mrb[0].mxu0
  %v427 = vadd.f32 0.0, %v426
  %v428 = vpop.f32.mrb[0].mxu0
  %429 = vmatprep.mubr.f32.mxu0 %v337
  %430 = vmatmul.mubr.f32.gmra.mrb[0].mxu0 %v318
  %v431 = vpop.f32.mrb[0].mxu0
  %v432 = vadd.f32 0.0, %v431
  %v433 = vpop.f32.mrb[0].mxu0
  %434 = vmatprep.mubr.f32.mxu0 %v340
  %435 = vmatmul.mubr.f32.gmra.mrb[0].mxu0 %v320
  %v436 = vpop.f32.mrb[0].mxu0
  %v437 = vadd.f32 0.0, %v436
  %v438 = vpop.f32.mrb[0].mxu0
  %439 = vmatprep.mubr.f32.mxu0 %v343
  %440 = vmatmul.mubr.f32.gmra.mrb[0].mxu0 %v322
  %v441 = vpop.f32.mrb[0].mxu0
  %v442 = vadd.f32 0.0, %v441
  %v443 = vpop.f32.mrb[0].mxu0
  %444 = vdwg.mxu0
  %s445 = scalar_lea.vmem %s0, 336
  %v446 = vld [vmem:[%s445] sm:$0xff]
  %v447 = vld [vmem:[%s445 + $0x8] sm:$0xff]
  %v448 = vld [vmem:[%s445 + $0x10] sm:$0xff]
  %v449 = vld [vmem:[%s445 + $0x18] sm:$0xff]
  %v450 = vld [vmem:[%s445 + $0x20] sm:$0xff]
  %v451 = vld [vmem:[%s445 + $0x28] sm:$0xff]
  %v452 = vld [vmem:[%s445 + $0x30] sm:$0xff]
  %v453 = vld [vmem:[%s445 + $0x38] sm:$0xff]
  %v454 = vld [vmem:[%s445 + $0x40] sm:$0xff]
  %v455 = vld [vmem:[%s445 + $0x48] sm:$0xff]
  %v456 = vld [vmem:[%s445 + $0x50] sm:$0xff]
  %v457 = vld [vmem:[%s445 + $0x58] sm:$0xff]
  %v458 = vld [vmem:[%s445 + $0x60] sm:$0xff]
  %v459 = vld [vmem:[%s445 + $0x68] sm:$0xff]
  %v461 = vsel %vm47, %v447, 0
  %v464 = vsel %vm47, %v449, 0
  %v467 = vsel %vm47, %v451, 0
  %v470 = vsel %vm47, %v453, 0
  %v473 = vsel %vm47, %v455, 0
  %v476 = vsel %vm47, %v457, 0
  %v479 = vsel %vm47, %v459, 0
  %481 = vmatprep.subr.mxu0 0.0
  %482 = vmatpush1.msra.mxu0 %v28
  %483 = vmatprep.subr.mxu0 0.0
  %484 = vmatpush1.msra.mxu0 %v29
  %485 = vmatprep.subr.mxu0 0.0
  %486 = vmatpush1.msra.mxu0 %v30
  %487 = vmatprep.subr.mxu0 0.0
  %488 = vmatpush1.msra.mxu0 %v31
  %489 = vmatprep.subr.mxu0 0.0
  %490 = vmatpush1.msra.mxu0 %v32
  %491 = vmatprep.subr.mxu0 0.0
  %492 = vmatpush1.msra.mxu0 %v33
  %493 = vmatprep.subr.mxu0 0.0
  %494 = vmatpush1.msra.mxu0 %v34
  %495 = vmatprep.subr.mxu0 0.0
  %496 = vmatpush1.msra.mxu0 %v35
  %497 = vmatprep.subr.mxu0 0.0
  %498 = vmatpush1.msra.mxu0 %v36
  %499 = vmatprep.subr.mxu0 0.0
  %500 = vmatpush1.msra.mxu0 %v37
  %501 = vmatprep.subr.mxu0 0.0
  %502 = vmatpush1.msra.mxu0 %v38
  %503 = vmatprep.subr.mxu0 0.0
  %504 = vmatpush1.msra.mxu0 %v39
  %505 = vmatprep.subr.mxu0 0.0
  %506 = vmatpush1.msra.mxu0 %v40
  %507 = vmatprep.subr.mxu0 0.0
  %508 = vmatpush1.msra.mxu0 %v41
  %509 = vmatprep.subr.mxu0 0.0
  %510 = vmatpush1.msra.mxu0 %v42
  %511 = vmatprep.subr.mxu0 0.0
  %512 = vmatpush1.msra.mxu0 %v43
  %513 = vmatprep.subr.mxu0 0.0
  %514 = vmatpush1.msra.mxu0 %v44
  %515 = vmatprep.subr.mxu0 0.0
  %516 = vmatpush1.msra.mxu0 %v45
  %517 = vmatprep.subr.mxu0 0.0
  %518 = vmatpush1.msra.mxu0 %v71
  %519 = vmatprep.subr.mxu0 0.0
  %520 = vmatpush1.msra.mxu0 0.0
  %521 = vmatprep.subr.mxu0 0.0
  %522 = vmatpush1.msra.mxu0 0.0
  %523 = vmatprep.subr.mxu0 0.0
  %524 = vmatpush1.msra.mxu0 0.0
  %525 = vmatprep.subr.mxu0 0.0
  %526 = vmatpush1.msra.mxu0 0.0
  %527 = vmatprep.subr.mxu0 0.0
  %528 = vmatpush1.msra.mxu0 0.0
  %529 = vmatprep.subr.mxu0 0.0
  %530 = vmatpush1.msra.mxu0 0.0
  %531 = vmatprep.subr.mxu0 0.0
  %532 = vmatpush1.msra.mxu0 0.0
  %533 = vmatprep.subr.mxu0 0.0
  %534 = vmatpush1.msra.mxu0 0.0
  %535 = vmatprep.subr.mxu0 0.0
  %536 = vmatpush1.msra.mxu0 0.0
  %537 = vmatprep.subr.mxu0 0.0
  %538 = vmatpush1.msra.mxu0 0.0
  %539 = vmatprep.subr.mxu0 0.0
  %540 = vmatpush1.msra.mxu0 0.0
  %541 = vmatprep.subr.mxu0 0.0
  %542 = vmatpush1.msra.mxu0 0.0
  %543 = vmatprep.subr.mxu0 0.0
  %544 = vmatpush1.msra.mxu0 0.0
  %545 = vmatprep.mubr.f32.mxu0 %v461
  %546 = vmatmul.mubr.f32.gmra.mrb[0].mxu0 %v446
  %v547 = vpop.f32.mrb[0].mxu0
  %v548 = vadd.f32 0.0, %v547
  %v549 = vpop.f32.mrb[0].mxu0
  %550 = vmatprep.mubr.f32.mxu0 %v464
  %551 = vmatmul.mubr.f32.gmra.mrb[0].mxu0 %v448
  %v552 = vpop.f32.mrb[0].mxu0
  %v553 = vadd.f32 0.0, %v552
  %v554 = vpop.f32.mrb[0].mxu0
  %555 = vmatprep.mubr.f32.mxu0 %v467
  %556 = vmatmul.mubr.f32.gmra.mrb[0].mxu0 %v450
  %v557 = vpop.f32.mrb[0].mxu0
  %v558 = vadd.f32 0.0, %v557
  %v559 = vpop.f32.mrb[0].mxu0
  %560 = vmatprep.mubr.f32.mxu0 %v470
  %561 = vmatmul.mubr.f32.gmra.mrb[0].mxu0 %v452
  %v562 = vpop.f32.mrb[0].mxu0
  %v563 = vadd.f32 0.0, %v562
  %v564 = vpop.f32.mrb[0].mxu0
  %565 = vmatprep.mubr.f32.mxu0 %v473
  %566 = vmatmul.mubr.f32.gmra.mrb[0].mxu0 %v454
  %v567 = vpop.f32.mrb[0].mxu0
  %v568 = vadd.f32 0.0, %v567
  %v569 = vpop.f32.mrb[0].mxu0
  %570 = vmatprep.mubr.f32.mxu0 %v476
  %571 = vmatmul.mubr.f32.gmra.mrb[0].mxu0 %v456
  %v572 = vpop.f32.mrb[0].mxu0
  %v573 = vadd.f32 0.0, %v572
  %v574 = vpop.f32.mrb[0].mxu0
  %575 = vmatprep.mubr.f32.mxu0 %v479
  %576 = vmatmul.mubr.f32.gmra.mrb[0].mxu0 %v458
  %v577 = vpop.f32.mrb[0].mxu0
  %v578 = vadd.f32 0.0, %v577
  %v579 = vpop.f32.mrb[0].mxu0
  %580 = vdwg.mxu0
  %v581 = vmax.f32 %v140, %v276
  %v582 = vmax.f32 %v145, %v281
  %v583 = vmax.f32 %v150, %v286
  %v584 = vmax.f32 %v155, %v291
  %v585 = vmax.f32 %v160, %v296
  %v586 = vmax.f32 %v165, %v301
  %v587 = vmax.f32 %v170, %v306
  %v588 = vmax.f32 %v412, %v548
  %v589 = vmax.f32 %v417, %v553
  %v590 = vmax.f32 %v422, %v558
  %v591 = vmax.f32 %v427, %v563
  %v592 = vmax.f32 %v432, %v568
  %v593 = vmax.f32 %v437, %v573
  %v594 = vmax.f32 %v442, %v578
  %v595 = vmax.f32 %v581, %v588
  %v596 = vmax.f32 %v582, %v589
  %v597 = vmax.f32 %v583, %v590
  %v598 = vmax.f32 %v584, %v591
  %v599 = vmax.f32 %v585, %v592
  %v600 = vmax.f32 %v586, %v593
  %v601 = vmax.f32 %v587, %v594
  %v602 = vld [vmem:[%s2] sm:$0x1]
  %v604 = vlaneseq
  %v605 = vshrl.u32 %v604, 7
  %v606 = vsub.s32 0, %v605
  %v607 = vrot.slane %v602, %v606
  %v609 = vadd.f32 %v595, %v607
  %v610 = vadd.f32 %v596, %v607
  %v611 = vadd.f32 %v597, %v607
  %v612 = vadd.f32 %v598, %v607
  %v613 = vadd.f32 %v599, %v607
  %v614 = vadd.f32 %v600, %v607
  %v615 = vadd.f32 %v601, %v607
  %v616 = vmax.f32 %v609, 0.0
  %v617 = vmax.f32 %v610, 0.0
  %v618 = vmax.f32 %v611, 0.0
  %v619 = vmax.f32 %v612, 0.0
  %v620 = vmax.f32 %v613, 0.0
  %v621 = vmax.f32 %v614, 0.0
  %v622 = vmax.f32 %v615, 0.0
  %623 = vst [vmem:[%s3] sm:$0xff] %v616
  %624 = vst [vmem:[%s3 + $0x8] sm:$0xff] %v617
  %625 = vst [vmem:[%s3 + $0x10] sm:$0xff] %v618
  %626 = vst [vmem:[%s3 + $0x18] sm:$0xff] %v619
  %627 = vst [vmem:[%s3 + $0x20] sm:$0xff] %v620
  %628 = vst [vmem:[%s3 + $0x28] sm:$0xff] %v621
  %629 = vst [vmem:[%s3 + $0x30] sm:$0xff] %v622
  // Predicated region
  $region14: #{model_forward.4} parent=0 // pred_check
    _
  $region15: #{model_forward.4} parent=0 // pred_check_branch
    %631 = sbr.rel (0) target = $region17
  $region16: #{model_forward.4} parent=0 // pred_region
    _
  $region17: #{model_forward.4} parent=0 // pred_fallthru
    _
  // Predicated region
  $region18: #{model_forward.4} parent=0 // pred_check
    _
  $region19: #{model_forward.4} parent=0 // pred_check_branch
    %633 = sbr.rel (0) target = $region21
  $region20: #{model_forward.4} parent=0 // pred_region
    _
  $region21: #{model_forward.4} parent=0 // pred_fallthru
    _

// kernel: model_forward.5
$region0: #{model_forward.5}
  #allocation0 [shape = 'u32[]', space=smem, size = 0x4, offset = 0x4, fixed_abs, tag = 'smem constant byte address 0x4 - core index']
  #allocation1 [shape = 'u32[144,128]{1,0:T(1,128)}', space=vmem, size = 0x12000, scoped, tag = 'internal scratch']
  %s0 = inlined_call_operand.vmem [shape: f32[2,3200], index: 0, kind: input, shape index: {}]
  %s1 = inlined_call_operand.vmem [shape: f32[3200,128], index: 1, kind: input, shape index: {}]
  %s2 = inlined_call_operand.vmem [shape: f32[1,128], index: 2, kind: input, shape index: {}]
  %s3 = inlined_call_operand.vmem [shape: f32[128,128], index: 3, kind: input, shape index: {}]
  %s4 = inlined_call_operand.vmem [shape: f32[1,128], index: 4, kind: input, shape index: {}]
  %s5 = inlined_call_operand.vmem [shape: f32[128,10], index: 5, kind: input, shape index: {}]
  %s6 = inlined_call_operand.vmem [shape: f32[1,10], index: 6, kind: input, shape index: {}]
  %s7 = inlined_call_operand.hbm [shape: f32[2,10], index: 7, kind: output, shape index: {}]
  %s8 = sld [smem:[#allocation0]]
  $region38: #{model_forward.5} parent=0
    _
  %s10 = ssub.s32 1, %s8
  %s11 = scalar_select 0, %s10, %s8
  $region1: #{model_forward.5} parent=0
    #allocation2 [shape = 'u8[1024]{0}', space=vmem, size = 0x400, scoped, tag = 'output window, operand 0, single buffered']
    #allocation3 [shape = 's32[1]{0}', space=sflag, size = 0x4, scoped, tag = 'scoped memory for model_forward.5']
    %12 = vsyncpa [#allocation3], 0
    // Predicated region
    $region2: #{model_forward.5} parent=1 // pred_check
      _
    $region3: #{model_forward.5} parent=1 // pred_check_branch
      %14 = sbr.rel (0) target = $region5
    $region4: #{model_forward.5} parent=1 // pred_region
      _
    $region5: #{model_forward.5} parent=1 // pred_fallthru
      _
    // Predicated region
    $region6: #{model_forward.5} parent=1 // pred_check
      _
    $region7: #{model_forward.5} parent=1 // pred_check_branch
      %16 = sbr.rel (0) target = $region9
    $region8: #{model_forward.5} parent=1 // pred_region
      _
    $region9: #{model_forward.5} parent=1 // pred_fallthru
      _
    // Predicated region
    $region10: #{model_forward.5} parent=1 // pred_check
      _
    $region11: #{model_forward.5} parent=1 // pred_check_branch
      %18 = sbr.rel (0) target = $region13
    $region12: #{model_forward.5} parent=1 // pred_region
      _
    $region13: #{model_forward.5} parent=1 // pred_fallthru
      _
    // Predicated region
    $region14: #{model_forward.5} parent=1 // pred_check
      _
    $region15: #{model_forward.5} parent=1 // pred_check_branch
      %20 = sbr.rel (0) target = $region17
    $region16: #{model_forward.5} parent=1 // pred_region
      _
    $region17: #{model_forward.5} parent=1 // pred_fallthru
      _
    // Predicated region
    $region18: #{model_forward.5} parent=1 // pred_check
      _
    $region19: #{model_forward.5} parent=1 // pred_check_branch
      %22 = sbr.rel (0) target = $region21
    $region20: #{model_forward.5} parent=1 // pred_region
      _
    $region21: #{model_forward.5} parent=1 // pred_fallthru
      _
    // Predicated region
    $region22: #{model_forward.5} parent=1 // pred_check
      _
    $region23: #{model_forward.5} parent=1 // pred_check_branch
      %24 = sbr.rel (0) target = $region25
    $region24: #{model_forward.5} parent=1 // pred_region
      _
    $region25: #{model_forward.5} parent=1 // pred_fallthru
      _
    // Predicated region
    $region26: #{model_forward.5} parent=1 // pred_check
      _
    $region27: #{model_forward.5} parent=1 // pred_check_branch
      %26 = sbr.rel (0) target = $region29
    $region28: #{model_forward.5} parent=1 // pred_region
      _
    $region29: #{model_forward.5} parent=1 // pred_fallthru
      _
    %v27 = vld [vmem:[%s0] sm:$0xff]
    %v28 = vld [vmem:[%s0 + $0x8] sm:$0xff]
    %v29 = vld [vmem:[%s0 + $0x10] sm:$0xff]
    %v30 = vld [vmem:[%s0 + $0x18] sm:$0xff]
    %v31 = vld [vmem:[%s0 + $0x20] sm:$0xff]
    %v32 = vld [vmem:[%s0 + $0x28] sm:$0xff]
    %v33 = vld [vmem:[%s0 + $0x30] sm:$0x3]
    %v34 = vld [vmem:[%s1] sm:$0xff]
    %v35 = vld [vmem:[%s1 + $0x8] sm:$0xff]
    %v36 = vld [vmem:[%s1 + $0x10] sm:$0xff]
    %v37 = vld [vmem:[%s1 + $0x18] sm:$0xff]
    %v38 = vld [vmem:[%s1 + $0x20] sm:$0xff]
    %v39 = vld [vmem:[%s1 + $0x28] sm:$0xff]
    %v40 = vld [vmem:[%s1 + $0x30] sm:$0xff]
    %v41 = vld [vmem:[%s1 + $0x38] sm:$0xff]
    %v42 = vld [vmem:[%s1 + $0x40] sm:$0xff]
    %v43 = vld [vmem:[%s1 + $0x48] sm:$0xff]
    %v44 = vld [vmem:[%s1 + $0x50] sm:$0xff]
    %v45 = vld [vmem:[%s1 + $0x58] sm:$0xff]
    %v46 = vld [vmem:[%s1 + $0x60] sm:$0xff]
    %v47 = vld [vmem:[%s1 + $0x68] sm:$0xff]
    %v48 = vld [vmem:[%s1 + $0x70] sm:$0xff]
    %v49 = vld [vmem:[%s1 + $0x78] sm:$0xff]
    %v50 = vld [vmem:[%s1 + $0x80] sm:$0xff]
    %v51 = vld [vmem:[%s1 + $0x88] sm:$0xff]
    %v52 = vld [vmem:[%s1 + $0x90] sm:$0xff]
    %v53 = vld [vmem:[%s1 + $0x98] sm:$0xff]
    %v54 = vld [vmem:[%s1 + $0xa0] sm:$0xff]
    %v55 = vld [vmem:[%s1 + $0xa8] sm:$0xff]
    %v56 = vld [vmem:[%s1 + $0xb0] sm:$0xff]
    %v57 = vld [vmem:[%s1 + $0xb8] sm:$0xff]
    %v58 = vld [vmem:[%s1 + $0xc0] sm:$0xff]
    %v59 = vld [vmem:[%s1 + $0xc8] sm:$0xff]
    %v60 = vld [vmem:[%s1 + $0xd0] sm:$0xff]
    %v61 = vld [vmem:[%s1 + $0xd8] sm:$0xff]
    %v62 = vld [vmem:[%s1 + $0xe0] sm:$0xff]
    %v63 = vld [vmem:[%s1 + $0xe8] sm:$0xff]
    %v64 = vld [vmem:[%s1 + $0xf0] sm:$0xff]
    %v65 = vld [vmem:[%s1 + $0xf8] sm:$0xff]
    %v66 = vld [vmem:[%s1 + $0x100] sm:$0xff]
    %v67 = vld [vmem:[%s1 + $0x108] sm:$0xff]
    %v68 = vld [vmem:[%s1 + $0x110] sm:$0xff]
    %v69 = vld [vmem:[%s1 + $0x118] sm:$0xff]
    %v70 = vld [vmem:[%s1 + $0x120] sm:$0xff]
    %v71 = vld [vmem:[%s1 + $0x128] sm:$0xff]
    %v72 = vld [vmem:[%s1 + $0x130] sm:$0xff]
    %v73 = vld [vmem:[%s1 + $0x138] sm:$0xff]
    %v74 = vld [vmem:[%s1 + $0x140] sm:$0xff]
    %v75 = vld [vmem:[%s1 + $0x148] sm:$0xff]
    %v76 = vld [vmem:[%s1 + $0x150] sm:$0xff]
    %v77 = vld [vmem:[%s1 + $0x158] sm:$0xff]
    %v78 = vld [vmem:[%s1 + $0x160] sm:$0xff]
    %v79 = vld [vmem:[%s1 + $0x168] sm:$0xff]
    %v80 = vld [vmem:[%s1 + $0x170] sm:$0xff]
    %v81 = vld [vmem:[%s1 + $0x178] sm:$0xff]
    %v82 = vld [vmem:[%s1 + $0x180] sm:$0xff]
    %v83 = vld [vmem:[%s1 + $0x188] sm:$0xff]
    %v84 = vld [vmem:[%s1 + $0x190] sm:$0xff]
    %v85 = vld [vmem:[%s1 + $0x198] sm:$0xff]
    %v86 = vld [vmem:[%s1 + $0x1a0] sm:$0xff]
    %v87 = vld [vmem:[%s1 + $0x1a8] sm:$0xff]
    %v88 = vld [vmem:[%s1 + $0x1b0] sm:$0xff]
    %v89 = vld [vmem:[%s1 + $0x1b8] sm:$0xff]
    %v90 = vld [vmem:[%s1 + $0x1c0] sm:$0xff]
    %v91 = vld [vmem:[%s1 + $0x1c8] sm:$0xff]
    %v92 = vld [vmem:[%s1 + $0x1d0] sm:$0xff]
    %v93 = vld [vmem:[%s1 + $0x1d8] sm:$0xff]
    %v94 = vld [vmem:[%s1 + $0x1e0] sm:$0xff]
    %v95 = vld [vmem:[%s1 + $0x1e8] sm:$0xff]
    %v96 = vld [vmem:[%s1 + $0x1f0] sm:$0xff]
    %v97 = vld [vmem:[%s1 + $0x1f8] sm:$0xff]
    %v98 = vld [vmem:[%s1 + $0x200] sm:$0xff]
    %v99 = vld [vmem:[%s1 + $0x208] sm:$0xff]
    %v100 = vld [vmem:[%s1 + $0x210] sm:$0xff]
    %v101 = vld [vmem:[%s1 + $0x218] sm:$0xff]
    %v102 = vld [vmem:[%s1 + $0x220] sm:$0xff]
    %v103 = vld [vmem:[%s1 + $0x228] sm:$0xff]
    %v104 = vld [vmem:[%s1 + $0x230] sm:$0xff]
    %v105 = vld [vmem:[%s1 + $0x238] sm:$0xff]
    %v106 = vld [vmem:[%s1 + $0x240] sm:$0xff]
    %v107 = vld [vmem:[%s1 + $0x248] sm:$0xff]
    %v108 = vld [vmem:[%s1 + $0x250] sm:$0xff]
    %v109 = vld [vmem:[%s1 + $0x258] sm:$0xff]
    %v110 = vld [vmem:[%s1 + $0x260] sm:$0xff]
    %v111 = vld [vmem:[%s1 + $0x268] sm:$0xff]
    %v112 = vld [vmem:[%s1 + $0x270] sm:$0xff]
    %v113 = vld [vmem:[%s1 + $0x278] sm:$0xff]
    %v114 = vld [vmem:[%s1 + $0x280] sm:$0xff]
    %v115 = vld [vmem:[%s1 + $0x288] sm:$0xff]
    %v116 = vld [vmem:[%s1 + $0x290] sm:$0xff]
    %v117 = vld [vmem:[%s1 + $0x298] sm:$0xff]
    %v118 = vld [vmem:[%s1 + $0x2a0] sm:$0xff]
    %v119 = vld [vmem:[%s1 + $0x2a8] sm:$0xff]
    %v120 = vld [vmem:[%s1 + $0x2b0] sm:$0xff]
    %v121 = vld [vmem:[%s1 + $0x2b8] sm:$0xff]
    %v122 = vld [vmem:[%s1 + $0x2c0] sm:$0xff]
    %v123 = vld [vmem:[%s1 + $0x2c8] sm:$0xff]
    %v124 = vld [vmem:[%s1 + $0x2d0] sm:$0xff]
    %v125 = vld [vmem:[%s1 + $0x2d8] sm:$0xff]
    %v126 = vld [vmem:[%s1 + $0x2e0] sm:$0xff]
    %v127 = vld [vmem:[%s1 + $0x2e8] sm:$0xff]
    %v128 = vld [vmem:[%s1 + $0x2f0] sm:$0xff]
    %v129 = vld [vmem:[%s1 + $0x2f8] sm:$0xff]
    %v130 = vld [vmem:[%s1 + $0x300] sm:$0xff]
    %v131 = vld [vmem:[%s1 + $0x308] sm:$0xff]
    %v132 = vld [vmem:[%s1 + $0x310] sm:$0xff]
    %v133 = vld [vmem:[%s1 + $0x318] sm:$0xff]
    %v134 = vld [vmem:[%s1 + $0x320] sm:$0xff]
    %v135 = vld [vmem:[%s1 + $0x328] sm:$0xff]
    %v136 = vld [vmem:[%s1 + $0x330] sm:$0xff]
    %v137 = vld [vmem:[%s1 + $0x338] sm:$0xff]
    %v138 = vld [vmem:[%s1 + $0x340] sm:$0xff]
    %v139 = vld [vmem:[%s1 + $0x348] sm:$0xff]
    %v140 = vld [vmem:[%s1 + $0x350] sm:$0xff]
    %v141 = vld [vmem:[%s1 + $0x358] sm:$0xff]
    %v142 = vld [vmem:[%s1 + $0x360] sm:$0xff]
    %v143 = vld [vmem:[%s1 + $0x368] sm:$0xff]
    %v144 = vld [vmem:[%s1 + $0x370] sm:$0xff]
    %v145 = vld [vmem:[%s1 + $0x378] sm:$0xff]
    %v146 = vld [vmem:[%s1 + $0x380] sm:$0xff]
    %v147 = vld [vmem:[%s1 + $0x388] sm:$0xff]
    %v148 = vld [vmem:[%s1 + $0x390] sm:$0xff]
    %v149 = vld [vmem:[%s1 + $0x398] sm:$0xff]
    %v150 = vld [vmem:[%s1 + $0x3a0] sm:$0xff]
    %v151 = vld [vmem:[%s1 + $0x3a8] sm:$0xff]
    %v152 = vld [vmem:[%s1 + $0x3b0] sm:$0xff]
    %v153 = vld [vmem:[%s1 + $0x3b8] sm:$0xff]
    %v154 = vld [vmem:[%s1 + $0x3c0] sm:$0xff]
    %v155 = vld [vmem:[%s1 + $0x3c8] sm:$0xff]
    %v156 = vld [vmem:[%s1 + $0x3d0] sm:$0xff]
    %v157 = vld [vmem:[%s1 + $0x3d8] sm:$0xff]
    %v158 = vld [vmem:[%s1 + $0x3e0] sm:$0xff]
    %v159 = vld [vmem:[%s1 + $0x3e8] sm:$0xff]
    %v160 = vld [vmem:[%s1 + $0x3f0] sm:$0xff]
    %v161 = vld [vmem:[%s1 + $0x3f8] sm:$0xff]
    %v162 = vld [vmem:[%s1 + $0x400] sm:$0xff]
    %v163 = vld [vmem:[%s1 + $0x408] sm:$0xff]
    %v164 = vld [vmem:[%s1 + $0x410] sm:$0xff]
    %v165 = vld [vmem:[%s1 + $0x418] sm:$0xff]
    %v166 = vld [vmem:[%s1 + $0x420] sm:$0xff]
    %v167 = vld [vmem:[%s1 + $0x428] sm:$0xff]
    %v168 = vld [vmem:[%s1 + $0x430] sm:$0xff]
    %v169 = vld [vmem:[%s1 + $0x438] sm:$0xff]
    %v170 = vld [vmem:[%s1 + $0x440] sm:$0xff]
    %v171 = vld [vmem:[%s1 + $0x448] sm:$0xff]
    %v172 = vld [vmem:[%s1 + $0x450] sm:$0xff]
    %v173 = vld [vmem:[%s1 + $0x458] sm:$0xff]
    %v174 = vld [vmem:[%s1 + $0x460] sm:$0xff]
    %v175 = vld [vmem:[%s1 + $0x468] sm:$0xff]
    %v176 = vld [vmem:[%s1 + $0x470] sm:$0xff]
    %v177 = vld [vmem:[%s1 + $0x478] sm:$0xff]
    %v178 = vld [vmem:[%s1 + $0x480] sm:$0xff]
    %v179 = vld [vmem:[%s1 + $0x488] sm:$0xff]
    %v180 = vld [vmem:[%s1 + $0x490] sm:$0xff]
    %v181 = vld [vmem:[%s1 + $0x498] sm:$0xff]
    %v182 = vld [vmem:[%s1 + $0x4a0] sm:$0xff]
    %v183 = vld [vmem:[%s1 + $0x4a8] sm:$0xff]
    %v184 = vld [vmem:[%s1 + $0x4b0] sm:$0xff]
    %v185 = vld [vmem:[%s1 + $0x4b8] sm:$0xff]
    %v186 = vld [vmem:[%s1 + $0x4c0] sm:$0xff]
    %v187 = vld [vmem:[%s1 + $0x4c8] sm:$0xff]
    %v188 = vld [vmem:[%s1 + $0x4d0] sm:$0xff]
    %v189 = vld [vmem:[%s1 + $0x4d8] sm:$0xff]
    %v190 = vld [vmem:[%s1 + $0x4e0] sm:$0xff]
    %v191 = vld [vmem:[%s1 + $0x4e8] sm:$0xff]
    %v192 = vld [vmem:[%s1 + $0x4f0] sm:$0xff]
    %v193 = vld [vmem:[%s1 + $0x4f8] sm:$0xff]
    %v194 = vld [vmem:[%s1 + $0x500] sm:$0xff]
    %v195 = vld [vmem:[%s1 + $0x508] sm:$0xff]
    %v196 = vld [vmem:[%s1 + $0x510] sm:$0xff]
    %v197 = vld [vmem:[%s1 + $0x518] sm:$0xff]
    %v198 = vld [vmem:[%s1 + $0x520] sm:$0xff]
    %v199 = vld [vmem:[%s1 + $0x528] sm:$0xff]
    %v200 = vld [vmem:[%s1 + $0x530] sm:$0xff]
    %v201 = vld [vmem:[%s1 + $0x538] sm:$0xff]
    %v202 = vld [vmem:[%s1 + $0x540] sm:$0xff]
    %v203 = vld [vmem:[%s1 + $0x548] sm:$0xff]
    %v204 = vld [vmem:[%s1 + $0x550] sm:$0xff]
    %v205 = vld [vmem:[%s1 + $0x558] sm:$0xff]
    %v206 = vld [vmem:[%s1 + $0x560] sm:$0xff]
    %v207 = vld [vmem:[%s1 + $0x568] sm:$0xff]
    %v208 = vld [vmem:[%s1 + $0x570] sm:$0xff]
    %v209 = vld [vmem:[%s1 + $0x578] sm:$0xff]
    %v210 = vld [vmem:[%s1 + $0x580] sm:$0xff]
    %v211 = vld [vmem:[%s1 + $0x588] sm:$0xff]
    %v212 = vld [vmem:[%s1 + $0x590] sm:$0xff]
    %v213 = vld [vmem:[%s1 + $0x598] sm:$0xff]
    %v214 = vld [vmem:[%s1 + $0x5a0] sm:$0xff]
    %v215 = vld [vmem:[%s1 + $0x5a8] sm:$0xff]
    %v216 = vld [vmem:[%s1 + $0x5b0] sm:$0xff]
    %v217 = vld [vmem:[%s1 + $0x5b8] sm:$0xff]
    %v218 = vld [vmem:[%s1 + $0x5c0] sm:$0xff]
    %v219 = vld [vmem:[%s1 + $0x5c8] sm:$0xff]
    %v220 = vld [vmem:[%s1 + $0x5d0] sm:$0xff]
    %v221 = vld [vmem:[%s1 + $0x5d8] sm:$0xff]
    %v222 = vld [vmem:[%s1 + $0x5e0] sm:$0xff]
    %v223 = vld [vmem:[%s1 + $0x5e8] sm:$0xff]
    %v224 = vld [vmem:[%s1 + $0x5f0] sm:$0xff]
    %v225 = vld [vmem:[%s1 + $0x5f8] sm:$0xff]
    %v226 = vld [vmem:[%s1 + $0x600] sm:$0xff]
    %v227 = vld [vmem:[%s1 + $0x608] sm:$0xff]
    %v228 = vld [vmem:[%s1 + $0x610] sm:$0xff]
    %v229 = vld [vmem:[%s1 + $0x618] sm:$0xff]
    %v230 = vld [vmem:[%s1 + $0x620] sm:$0xff]
    %v231 = vld [vmem:[%s1 + $0x628] sm:$0xff]
    %v232 = vld [vmem:[%s1 + $0x630] sm:$0xff]
    %v233 = vld [vmem:[%s1 + $0x638] sm:$0xff]
    %v234 = vld [vmem:[%s1 + $0x640] sm:$0xff]
    %v235 = vld [vmem:[%s1 + $0x648] sm:$0xff]
    %v236 = vld [vmem:[%s1 + $0x650] sm:$0xff]
    %v237 = vld [vmem:[%s1 + $0x658] sm:$0xff]
    %v238 = vld [vmem:[%s1 + $0x660] sm:$0xff]
    %v239 = vld [vmem:[%s1 + $0x668] sm:$0xff]
    %v240 = vld [vmem:[%s1 + $0x670] sm:$0xff]
    %v241 = vld [vmem:[%s1 + $0x678] sm:$0xff]
    %v242 = vld [vmem:[%s1 + $0x680] sm:$0xff]
    %v243 = vld [vmem:[%s1 + $0x688] sm:$0xff]
    %v244 = vld [vmem:[%s1 + $0x690] sm:$0xff]
    %v245 = vld [vmem:[%s1 + $0x698] sm:$0xff]
    %v246 = vld [vmem:[%s1 + $0x6a0] sm:$0xff]
    %v247 = vld [vmem:[%s1 + $0x6a8] sm:$0xff]
    %v248 = vld [vmem:[%s1 + $0x6b0] sm:$0xff]
    %v249 = vld [vmem:[%s1 + $0x6b8] sm:$0xff]
    %v250 = vld [vmem:[%s1 + $0x6c0] sm:$0xff]
    %v251 = vld [vmem:[%s1 + $0x6c8] sm:$0xff]
    %v252 = vld [vmem:[%s1 + $0x6d0] sm:$0xff]
    %v253 = vld [vmem:[%s1 + $0x6d8] sm:$0xff]
    %v254 = vld [vmem:[%s1 + $0x6e0] sm:$0xff]
    %v255 = vld [vmem:[%s1 + $0x6e8] sm:$0xff]
    %v256 = vld [vmem:[%s1 + $0x6f0] sm:$0xff]
    %v257 = vld [vmem:[%s1 + $0x6f8] sm:$0xff]
    %v258 = vld [vmem:[%s1 + $0x700] sm:$0xff]
    %v259 = vld [vmem:[%s1 + $0x708] sm:$0xff]
    %v260 = vld [vmem:[%s1 + $0x710] sm:$0xff]
    %v261 = vld [vmem:[%s1 + $0x718] sm:$0xff]
    %v262 = vld [vmem:[%s1 + $0x720] sm:$0xff]
    %v263 = vld [vmem:[%s1 + $0x728] sm:$0xff]
    %v264 = vld [vmem:[%s1 + $0x730] sm:$0xff]
    %v265 = vld [vmem:[%s1 + $0x738] sm:$0xff]
    %v266 = vld [vmem:[%s1 + $0x740] sm:$0xff]
    %v267 = vld [vmem:[%s1 + $0x748] sm:$0xff]
    %v268 = vld [vmem:[%s1 + $0x750] sm:$0xff]
    %v269 = vld [vmem:[%s1 + $0x758] sm:$0xff]
    %v270 = vld [vmem:[%s1 + $0x760] sm:$0xff]
    %v271 = vld [vmem:[%s1 + $0x768] sm:$0xff]
    %v272 = vld [vmem:[%s1 + $0x770] sm:$0xff]
    %v273 = vld [vmem:[%s1 + $0x778] sm:$0xff]
    %v274 = vld [vmem:[%s1 + $0x780] sm:$0xff]
    %v275 = vld [vmem:[%s1 + $0x788] sm:$0xff]
    %v276 = vld [vmem:[%s1 + $0x790] sm:$0xff]
    %v277 = vld [vmem:[%s1 + $0x798] sm:$0xff]
    %v278 = vld [vmem:[%s1 + $0x7a0] sm:$0xff]
    %v279 = vld [vmem:[%s1 + $0x7a8] sm:$0xff]
    %v280 = vld [vmem:[%s1 + $0x7b0] sm:$0xff]
    %v281 = vld [vmem:[%s1 + $0x7b8] sm:$0xff]
    %v282 = vld [vmem:[%s1 + $0x7c0] sm:$0xff]
    %v283 = vld [vmem:[%s1 + $0x7c8] sm:$0xff]
    %v284 = vld [vmem:[%s1 + $0x7d0] sm:$0xff]
    %v285 = vld [vmem:[%s1 + $0x7d8] sm:$0xff]
    %v286 = vld [vmem:[%s1 + $0x7e0] sm:$0xff]
    %v287 = vld [vmem:[%s1 + $0x7e8] sm:$0xff]
    %v288 = vld [vmem:[%s1 + $0x7f0] sm:$0xff]
    %v289 = vld [vmem:[%s1 + $0x7f8] sm:$0xff]
    %v290 = vld [vmem:[%s1 + $0x800] sm:$0xff]
    %v291 = vld [vmem:[%s1 + $0x808] sm:$0xff]
    %v292 = vld [vmem:[%s1 + $0x810] sm:$0xff]
    %v293 = vld [vmem:[%s1 + $0x818] sm:$0xff]
    %v294 = vld [vmem:[%s1 + $0x820] sm:$0xff]
    %v295 = vld [vmem:[%s1 + $0x828] sm:$0xff]
    %v296 = vld [vmem:[%s1 + $0x830] sm:$0xff]
    %v297 = vld [vmem:[%s1 + $0x838] sm:$0xff]
    %v298 = vld [vmem:[%s1 + $0x840] sm:$0xff]
    %v299 = vld [vmem:[%s1 + $0x848] sm:$0xff]
    %v300 = vld [vmem:[%s1 + $0x850] sm:$0xff]
    %v301 = vld [vmem:[%s1 + $0x858] sm:$0xff]
    %v302 = vld [vmem:[%s1 + $0x860] sm:$0xff]
    %v303 = vld [vmem:[%s1 + $0x868] sm:$0xff]
    %v304 = vld [vmem:[%s1 + $0x870] sm:$0xff]
    %v305 = vld [vmem:[%s1 + $0x878] sm:$0xff]
    %v306 = vld [vmem:[%s1 + $0x880] sm:$0xff]
    %v307 = vld [vmem:[%s1 + $0x888] sm:$0xff]
    %v308 = vld [vmem:[%s1 + $0x890] sm:$0xff]
    %v309 = vld [vmem:[%s1 + $0x898] sm:$0xff]
    %v310 = vld [vmem:[%s1 + $0x8a0] sm:$0xff]
    %v311 = vld [vmem:[%s1 + $0x8a8] sm:$0xff]
    %v312 = vld [vmem:[%s1 + $0x8b0] sm:$0xff]
    %v313 = vld [vmem:[%s1 + $0x8b8] sm:$0xff]
    %v314 = vld [vmem:[%s1 + $0x8c0] sm:$0xff]
    %v315 = vld [vmem:[%s1 + $0x8c8] sm:$0xff]
    %v316 = vld [vmem:[%s1 + $0x8d0] sm:$0xff]
    %v317 = vld [vmem:[%s1 + $0x8d8] sm:$0xff]
    %v318 = vld [vmem:[%s1 + $0x8e0] sm:$0xff]
    %v319 = vld [vmem:[%s1 + $0x8e8] sm:$0xff]
    %v320 = vld [vmem:[%s1 + $0x8f0] sm:$0xff]
    %v321 = vld [vmem:[%s1 + $0x8f8] sm:$0xff]
    %v322 = vld [vmem:[%s1 + $0x900] sm:$0xff]
    %v323 = vld [vmem:[%s1 + $0x908] sm:$0xff]
    %v324 = vld [vmem:[%s1 + $0x910] sm:$0xff]
    %v325 = vld [vmem:[%s1 + $0x918] sm:$0xff]
    %v326 = vld [vmem:[%s1 + $0x920] sm:$0xff]
    %v327 = vld [vmem:[%s1 + $0x928] sm:$0xff]
    %v328 = vld [vmem:[%s1 + $0x930] sm:$0xff]
    %v329 = vld [vmem:[%s1 + $0x938] sm:$0xff]
    %v330 = vld [vmem:[%s1 + $0x940] sm:$0xff]
    %v331 = vld [vmem:[%s1 + $0x948] sm:$0xff]
    %v332 = vld [vmem:[%s1 + $0x950] sm:$0xff]
    %v333 = vld [vmem:[%s1 + $0x958] sm:$0xff]
    %v334 = vld [vmem:[%s1 + $0x960] sm:$0xff]
    %v335 = vld [vmem:[%s1 + $0x968] sm:$0xff]
    %v336 = vld [vmem:[%s1 + $0x970] sm:$0xff]
    %v337 = vld [vmem:[%s1 + $0x978] sm:$0xff]
    %v338 = vld [vmem:[%s1 + $0x980] sm:$0xff]
    %v339 = vld [vmem:[%s1 + $0x988] sm:$0xff]
    %v340 = vld [vmem:[%s1 + $0x990] sm:$0xff]
    %v341 = vld [vmem:[%s1 + $0x998] sm:$0xff]
    %v342 = vld [vmem:[%s1 + $0x9a0] sm:$0xff]
    %v343 = vld [vmem:[%s1 + $0x9a8] sm:$0xff]
    %v344 = vld [vmem:[%s1 + $0x9b0] sm:$0xff]
    %v345 = vld [vmem:[%s1 + $0x9b8] sm:$0xff]
    %v346 = vld [vmem:[%s1 + $0x9c0] sm:$0xff]
    %v347 = vld [vmem:[%s1 + $0x9c8] sm:$0xff]
    %v348 = vld [vmem:[%s1 + $0x9d0] sm:$0xff]
    %v349 = vld [vmem:[%s1 + $0x9d8] sm:$0xff]
    %v350 = vld [vmem:[%s1 + $0x9e0] sm:$0xff]
    %v351 = vld [vmem:[%s1 + $0x9e8] sm:$0xff]
    %v352 = vld [vmem:[%s1 + $0x9f0] sm:$0xff]
    %v353 = vld [vmem:[%s1 + $0x9f8] sm:$0xff]
    %v354 = vld [vmem:[%s1 + $0xa00] sm:$0xff]
    %v355 = vld [vmem:[%s1 + $0xa08] sm:$0xff]
    %v356 = vld [vmem:[%s1 + $0xa10] sm:$0xff]
    %v357 = vld [vmem:[%s1 + $0xa18] sm:$0xff]
    %v358 = vld [vmem:[%s1 + $0xa20] sm:$0xff]
    %v359 = vld [vmem:[%s1 + $0xa28] sm:$0xff]
    %v360 = vld [vmem:[%s1 + $0xa30] sm:$0xff]
    %v361 = vld [vmem:[%s1 + $0xa38] sm:$0xff]
    %v362 = vld [vmem:[%s1 + $0xa40] sm:$0xff]
    %v363 = vld [vmem:[%s1 + $0xa48] sm:$0xff]
    %v364 = vld [vmem:[%s1 + $0xa50] sm:$0xff]
    %v365 = vld [vmem:[%s1 + $0xa58] sm:$0xff]
    %v366 = vld [vmem:[%s1 + $0xa60] sm:$0xff]
    %v367 = vld [vmem:[%s1 + $0xa68] sm:$0xff]
    %v368 = vld [vmem:[%s1 + $0xa70] sm:$0xff]
    %v369 = vld [vmem:[%s1 + $0xa78] sm:$0xff]
    %v370 = vld [vmem:[%s1 + $0xa80] sm:$0xff]
    %v371 = vld [vmem:[%s1 + $0xa88] sm:$0xff]
    %v372 = vld [vmem:[%s1 + $0xa90] sm:$0xff]
    %v373 = vld [vmem:[%s1 + $0xa98] sm:$0xff]
    %v374 = vld [vmem:[%s1 + $0xaa0] sm:$0xff]
    %v375 = vld [vmem:[%s1 + $0xaa8] sm:$0xff]
    %v376 = vld [vmem:[%s1 + $0xab0] sm:$0xff]
    %v377 = vld [vmem:[%s1 + $0xab8] sm:$0xff]
    %v378 = vld [vmem:[%s1 + $0xac0] sm:$0xff]
    %v379 = vld [vmem:[%s1 + $0xac8] sm:$0xff]
    %v380 = vld [vmem:[%s1 + $0xad0] sm:$0xff]
    %v381 = vld [vmem:[%s1 + $0xad8] sm:$0xff]
    %v382 = vld [vmem:[%s1 + $0xae0] sm:$0xff]
    %v383 = vld [vmem:[%s1 + $0xae8] sm:$0xff]
    %v384 = vld [vmem:[%s1 + $0xaf0] sm:$0xff]
    %v385 = vld [vmem:[%s1 + $0xaf8] sm:$0xff]
    %v386 = vld [vmem:[%s1 + $0xb00] sm:$0xff]
    %v387 = vld [vmem:[%s1 + $0xb08] sm:$0xff]
    %v388 = vld [vmem:[%s1 + $0xb10] sm:$0xff]
    %v389 = vld [vmem:[%s1 + $0xb18] sm:$0xff]
    %v390 = vld [vmem:[%s1 + $0xb20] sm:$0xff]
    %v391 = vld [vmem:[%s1 + $0xb28] sm:$0xff]
    %v392 = vld [vmem:[%s1 + $0xb30] sm:$0xff]
    %v393 = vld [vmem:[%s1 + $0xb38] sm:$0xff]
    %v394 = vld [vmem:[%s1 + $0xb40] sm:$0xff]
    %v395 = vld [vmem:[%s1 + $0xb48] sm:$0xff]
    %v396 = vld [vmem:[%s1 + $0xb50] sm:$0xff]
    %v397 = vld [vmem:[%s1 + $0xb58] sm:$0xff]
    %v398 = vld [vmem:[%s1 + $0xb60] sm:$0xff]
    %v399 = vld [vmem:[%s1 + $0xb68] sm:$0xff]
    %v400 = vld [vmem:[%s1 + $0xb70] sm:$0xff]
    %v401 = vld [vmem:[%s1 + $0xb78] sm:$0xff]
    %v402 = vld [vmem:[%s1 + $0xb80] sm:$0xff]
    %v403 = vld [vmem:[%s1 + $0xb88] sm:$0xff]
    %v404 = vld [vmem:[%s1 + $0xb90] sm:$0xff]
    %v405 = vld [vmem:[%s1 + $0xb98] sm:$0xff]
    %v406 = vld [vmem:[%s1 + $0xba0] sm:$0xff]
    %v407 = vld [vmem:[%s1 + $0xba8] sm:$0xff]
    %v408 = vld [vmem:[%s1 + $0xbb0] sm:$0xff]
    %v409 = vld [vmem:[%s1 + $0xbb8] sm:$0xff]
    %v410 = vld [vmem:[%s1 + $0xbc0] sm:$0xff]
    %v411 = vld [vmem:[%s1 + $0xbc8] sm:$0xff]
    %v412 = vld [vmem:[%s1 + $0xbd0] sm:$0xff]
    %v413 = vld [vmem:[%s1 + $0xbd8] sm:$0xff]
    %v414 = vld [vmem:[%s1 + $0xbe0] sm:$0xff]
    %v415 = vld [vmem:[%s1 + $0xbe8] sm:$0xff]
    %v416 = vld [vmem:[%s1 + $0xbf0] sm:$0xff]
    %v417 = vld [vmem:[%s1 + $0xbf8] sm:$0xff]
    %v418 = vld [vmem:[%s1 + $0xc00] sm:$0xff]
    %v419 = vld [vmem:[%s1 + $0xc08] sm:$0xff]
    %v420 = vld [vmem:[%s1 + $0xc10] sm:$0xff]
    %v421 = vld [vmem:[%s1 + $0xc18] sm:$0xff]
    %v422 = vld [vmem:[%s1 + $0xc20] sm:$0xff]
    %v423 = vld [vmem:[%s1 + $0xc28] sm:$0xff]
    %v424 = vld [vmem:[%s1 + $0xc30] sm:$0xff]
    %v425 = vld [vmem:[%s1 + $0xc38] sm:$0xff]
    %v426 = vld [vmem:[%s1 + $0xc40] sm:$0xff]
    %v427 = vld [vmem:[%s1 + $0xc48] sm:$0xff]
    %v428 = vld [vmem:[%s1 + $0xc50] sm:$0xff]
    %v429 = vld [vmem:[%s1 + $0xc58] sm:$0xff]
    %v430 = vld [vmem:[%s1 + $0xc60] sm:$0xff]
    %v431 = vld [vmem:[%s1 + $0xc68] sm:$0xff]
    %v432 = vld [vmem:[%s1 + $0xc70] sm:$0xff]
    %v433 = vld [vmem:[%s1 + $0xc78] sm:$0xff]
    %v434 = vld [vmem:[%s2] sm:$0x1]
    %v436 = vlaneseq
    %v437 = vshrl.u32 %v436, 7
    %v438 = vsub.s32 0, %v437
    %v439 = vrot.slane %v434, %v438
    %v448 = vcombine.high %v27, %v27
    %v450 = vunpack.c.l.s4 1983009808
    %v451 = vunpack.c.0.s8 %v450
    %v452 = vlaneseq
    %v453 = vshrl.u32 %v452, 7
    %v454 = vsub.s32 %v451, %v453
    %v455 = vrot.slane %v27, %v454
    %v457 = vunpack.c.l.s4 1983009808
    %v458 = vunpack.c.0.s8 %v457
    %v459 = vlaneseq
    %v460 = vshrl.u32 %v459, 7
    %v461 = vsub.s32 %v458, %v460
    %v462 = vrot.slane %v448, %v461
    %v463 = vcombine.high %v455, %v455
    %v464 = vcombine.high %v462, %v462
    %v465 = vcombine.high %v28, %v28
    %v467 = vunpack.c.l.s4 1983009808
    %v468 = vunpack.c.0.s8 %v467
    %v469 = vlaneseq
    %v470 = vshrl.u32 %v469, 7
    %v471 = vsub.s32 %v468, %v470
    %v472 = vrot.slane %v28, %v471
    %v474 = vunpack.c.l.s4 1983009808
    %v475 = vunpack.c.0.s8 %v474
    %v476 = vlaneseq
    %v477 = vshrl.u32 %v476, 7
    %v478 = vsub.s32 %v475, %v477
    %v479 = vrot.slane %v465, %v478
    %v480 = vcombine.high %v472, %v472
    %v481 = vcombine.high %v479, %v479
    %v482 = vcombine.high %v29, %v29
    %v484 = vunpack.c.l.s4 1983009808
    %v485 = vunpack.c.0.s8 %v484
    %v486 = vlaneseq
    %v487 = vshrl.u32 %v486, 7
    %v488 = vsub.s32 %v485, %v487
    %v489 = vrot.slane %v29, %v488
    %v491 = vunpack.c.l.s4 1983009808
    %v492 = vunpack.c.0.s8 %v491
    %v493 = vlaneseq
    %v494 = vshrl.u32 %v493, 7
    %v495 = vsub.s32 %v492, %v494
    %v496 = vrot.slane %v482, %v495
    %v497 = vcombine.high %v489, %v489
    %v498 = vcombine.high %v496, %v496
    %v499 = vcombine.high %v30, %v30
    %v501 = vunpack.c.l.s4 1983009808
    %v502 = vunpack.c.0.s8 %v501
    %v503 = vlaneseq
    %v504 = vshrl.u32 %v503, 7
    %v505 = vsub.s32 %v502, %v504
    %v506 = vrot.slane %v30, %v505
    %v508 = vunpack.c.l.s4 1983009808
    %v509 = vunpack.c.0.s8 %v508
    %v510 = vlaneseq
    %v511 = vshrl.u32 %v510, 7
    %v512 = vsub.s32 %v509, %v511
    %v513 = vrot.slane %v499, %v512
    %v514 = vcombine.high %v506, %v506
    %v515 = vcombine.high %v513, %v513
    %v516 = vcombine.high %v31, %v31
    %v518 = vunpack.c.l.s4 1983009808
    %v519 = vunpack.c.0.s8 %v518
    %v520 = vlaneseq
    %v521 = vshrl.u32 %v520, 7
    %v522 = vsub.s32 %v519, %v521
    %v523 = vrot.slane %v31, %v522
    %v525 = vunpack.c.l.s4 1983009808
    %v526 = vunpack.c.0.s8 %v525
    %v527 = vlaneseq
    %v528 = vshrl.u32 %v527, 7
    %v529 = vsub.s32 %v526, %v528
    %v530 = vrot.slane %v516, %v529
    %v531 = vcombine.high %v523, %v523
    %v532 = vcombine.high %v530, %v530
    %v533 = vcombine.high %v32, %v32
    %v535 = vunpack.c.l.s4 1983009808
    %v536 = vunpack.c.0.s8 %v535
    %v537 = vlaneseq
    %v538 = vshrl.u32 %v537, 7
    %v539 = vsub.s32 %v536, %v538
    %v540 = vrot.slane %v32, %v539
    %v542 = vunpack.c.l.s4 1983009808
    %v543 = vunpack.c.0.s8 %v542
    %v544 = vlaneseq
    %v545 = vshrl.u32 %v544, 7
    %v546 = vsub.s32 %v543, %v545
    %v547 = vrot.slane %v533, %v546
    %v548 = vcombine.high %v540, %v540
    %v549 = vcombine.high %v547, %v547
    %v551 = vunpack.c.l.s4 1983009808
    %v552 = vunpack.c.0.s8 %v551
    %v553 = vlaneseq
    %v554 = vshrl.u32 %v553, 7
    %v555 = vsub.s32 %v552, %v554
    %v556 = vrot.slane %v33, %v555
    %582 = vmatprep.subr.mxu0 0.0
    %583 = vmatpush1.msra.mxu0 %v34
    %584 = vmatprep.subr.mxu0 0.0
    %585 = vmatpush1.msra.mxu0 %v35
    %586 = vmatprep.subr.mxu0 0.0
    %587 = vmatpush1.msra.mxu0 %v36
    %588 = vmatprep.subr.mxu0 0.0
    %589 = vmatpush1.msra.mxu0 %v37
    %590 = vmatprep.subr.mxu0 0.0
    %591 = vmatpush1.msra.mxu0 %v38
    %592 = vmatprep.subr.mxu0 0.0
    %593 = vmatpush1.msra.mxu0 %v39
    %594 = vmatprep.subr.mxu0 0.0
    %595 = vmatpush1.msra.mxu0 %v40
    %596 = vmatprep.subr.mxu0 0.0
    %597 = vmatpush1.msra.mxu0 %v41
    %598 = vmatprep.subr.mxu0 0.0
    %599 = vmatpush1.msra.mxu0 %v42
    %600 = vmatprep.subr.mxu0 0.0
    %601 = vmatpush1.msra.mxu0 %v43
    %602 = vmatprep.subr.mxu0 0.0
    %603 = vmatpush1.msra.mxu0 %v44
    %604 = vmatprep.subr.mxu0 0.0
    %605 = vmatpush1.msra.mxu0 %v45
    %606 = vmatprep.subr.mxu0 0.0
    %607 = vmatpush1.msra.mxu0 %v46
    %608 = vmatprep.subr.mxu0 0.0
    %609 = vmatpush1.msra.mxu0 %v47
    %610 = vmatprep.subr.mxu0 0.0
    %611 = vmatpush1.msra.mxu0 %v48
    %612 = vmatprep.subr.mxu0 0.0
    %613 = vmatpush1.msra.mxu0 %v49
    %614 = vmatprep.subr.mxu0 0.0
    %615 = vmatpush1.msra.mxu0 %v50
    %616 = vmatprep.subr.mxu0 0.0
    %617 = vmatpush1.msra.mxu0 %v51
    %618 = vmatprep.subr.mxu0 0.0
    %619 = vmatpush1.msra.mxu0 %v52
    %620 = vmatprep.subr.mxu0 0.0
    %621 = vmatpush1.msra.mxu0 %v53
    %622 = vmatprep.subr.mxu0 0.0
    %623 = vmatpush1.msra.mxu0 %v54
    %624 = vmatprep.subr.mxu0 0.0
    %625 = vmatpush1.msra.mxu0 %v55
    %626 = vmatprep.subr.mxu0 0.0
    %627 = vmatpush1.msra.mxu0 %v56
    %628 = vmatprep.subr.mxu0 0.0
    %629 = vmatpush1.msra.mxu0 %v57
    %630 = vmatprep.subr.mxu0 0.0
    %631 = vmatpush1.msra.mxu0 %v58
    %632 = vmatprep.subr.mxu0 0.0
    %633 = vmatpush1.msra.mxu0 %v59
    %634 = vmatprep.subr.mxu0 0.0
    %635 = vmatpush1.msra.mxu0 %v60
    %636 = vmatprep.subr.mxu0 0.0
    %637 = vmatpush1.msra.mxu0 %v61
    %638 = vmatprep.subr.mxu0 0.0
    %639 = vmatpush1.msra.mxu0 %v62
    %640 = vmatprep.subr.mxu0 0.0
    %641 = vmatpush1.msra.mxu0 %v63
    %642 = vmatprep.subr.mxu0 0.0
    %643 = vmatpush1.msra.mxu0 %v64
    %644 = vmatprep.subr.mxu0 0.0
    %645 = vmatpush1.msra.mxu0 %v65
    %646 = vmatprep.mubr.f32.mxu0 %v463
    %647 = vmatmul.mubr.f32.gmra.mrb[0].mxu0 %v455
    %v648 = vpop.f32.mrb[0].mxu0
    %v649 = vadd.f32 %v439, %v648
    %v650 = vpop.f32.mrb[0].mxu0
    %651 = vdwg.mxu0
    %652 = vmatprep.subr.mxu0 0.0
    %653 = vmatpush1.msra.mxu0 %v66
    %654 = vmatprep.subr.mxu0 0.0
    %655 = vmatpush1.msra.mxu0 %v67
    %656 = vmatprep.subr.mxu0 0.0
    %657 = vmatpush1.msra.mxu0 %v68
    %658 = vmatprep.subr.mxu0 0.0
    %659 = vmatpush1.msra.mxu0 %v69
    %660 = vmatprep.subr.mxu0 0.0
    %661 = vmatpush1.msra.mxu0 %v70
    %662 = vmatprep.subr.mxu0 0.0
    %663 = vmatpush1.msra.mxu0 %v71
    %664 = vmatprep.subr.mxu0 0.0
    %665 = vmatpush1.msra.mxu0 %v72
    %666 = vmatprep.subr.mxu0 0.0
    %667 = vmatpush1.msra.mxu0 %v73
    %668 = vmatprep.subr.mxu0 0.0
    %669 = vmatpush1.msra.mxu0 %v74
    %670 = vmatprep.subr.mxu0 0.0
    %671 = vmatpush1.msra.mxu0 %v75
    %672 = vmatprep.subr.mxu0 0.0
    %673 = vmatpush1.msra.mxu0 %v76
    %674 = vmatprep.subr.mxu0 0.0
    %675 = vmatpush1.msra.mxu0 %v77
    %676 = vmatprep.subr.mxu0 0.0
    %677 = vmatpush1.msra.mxu0 %v78
    %678 = vmatprep.subr.mxu0 0.0
    %679 = vmatpush1.msra.mxu0 %v79
    %680 = vmatprep.subr.mxu0 0.0
    %681 = vmatpush1.msra.mxu0 %v80
    %682 = vmatprep.subr.mxu0 0.0
    %683 = vmatpush1.msra.mxu0 %v81
    %684 = vmatprep.subr.mxu0 0.0
    %685 = vmatpush1.msra.mxu0 %v82
    %686 = vmatprep.subr.mxu0 0.0
    %687 = vmatpush1.msra.mxu0 %v83
    %688 = vmatprep.subr.mxu0 0.0
    %689 = vmatpush1.msra.mxu0 %v84
    %690 = vmatprep.subr.mxu0 0.0
    %691 = vmatpush1.msra.mxu0 %v85
    %692 = vmatprep.subr.mxu0 0.0
    %693 = vmatpush1.msra.mxu0 %v86
    %694 = vmatprep.subr.mxu0 0.0
    %695 = vmatpush1.msra.mxu0 %v87
    %696 = vmatprep.subr.mxu0 0.0
    %697 = vmatpush1.msra.mxu0 %v88
    %698 = vmatprep.subr.mxu0 0.0
    %699 = vmatpush1.msra.mxu0 %v89
    %700 = vmatprep.subr.mxu0 0.0
    %701 = vmatpush1.msra.mxu0 %v90
    %702 = vmatprep.subr.mxu0 0.0
    %703 = vmatpush1.msra.mxu0 %v91
    %704 = vmatprep.subr.mxu0 0.0
    %705 = vmatpush1.msra.mxu0 %v92
    %706 = vmatprep.subr.mxu0 0.0
    %707 = vmatpush1.msra.mxu0 %v93
    %708 = vmatprep.subr.mxu0 0.0
    %709 = vmatpush1.msra.mxu0 %v94
    %710 = vmatprep.subr.mxu0 0.0
    %711 = vmatpush1.msra.mxu0 %v95
    %712 = vmatprep.subr.mxu0 0.0
    %713 = vmatpush1.msra.mxu0 %v96
    %714 = vmatprep.subr.mxu0 0.0
    %715 = vmatpush1.msra.mxu0 %v97
    %716 = vmatprep.mubr.f32.mxu0 %v464
    %717 = vmatmul.mubr.f32.gmra.mrb[0].mxu0 %v462
    %v718 = vpop.f32.mrb[0].mxu0
    %v719 = vadd.f32 %v649, %v718
    %v720 = vpop.f32.mrb[0].mxu0
    %721 = vdwg.mxu0
    %722 = vmatprep.subr.mxu0 0.0
    %723 = vmatpush1.msra.mxu0 %v98
    %724 = vmatprep.subr.mxu0 0.0
    %725 = vmatpush1.msra.mxu0 %v99
    %726 = vmatprep.subr.mxu0 0.0
    %727 = vmatpush1.msra.mxu0 %v100
    %728 = vmatprep.subr.mxu0 0.0
    %729 = vmatpush1.msra.mxu0 %v101
    %730 = vmatprep.subr.mxu0 0.0
    %731 = vmatpush1.msra.mxu0 %v102
    %732 = vmatprep.subr.mxu0 0.0
    %733 = vmatpush1.msra.mxu0 %v103
    %734 = vmatprep.subr.mxu0 0.0
    %735 = vmatpush1.msra.mxu0 %v104
    %736 = vmatprep.subr.mxu0 0.0
    %737 = vmatpush1.msra.mxu0 %v105
    %738 = vmatprep.subr.mxu0 0.0
    %739 = vmatpush1.msra.mxu0 %v106
    %740 = vmatprep.subr.mxu0 0.0
    %741 = vmatpush1.msra.mxu0 %v107
    %742 = vmatprep.subr.mxu0 0.0
    %743 = vmatpush1.msra.mxu0 %v108
    %744 = vmatprep.subr.mxu0 0.0
    %745 = vmatpush1.msra.mxu0 %v109
    %746 = vmatprep.subr.mxu0 0.0
    %747 = vmatpush1.msra.mxu0 %v110
    %748 = vmatprep.subr.mxu0 0.0
    %749 = vmatpush1.msra.mxu0 %v111
    %750 = vmatprep.subr.mxu0 0.0
    %751 = vmatpush1.msra.mxu0 %v112
    %752 = vmatprep.subr.mxu0 0.0
    %753 = vmatpush1.msra.mxu0 %v113
    %754 = vmatprep.subr.mxu0 0.0
    %755 = vmatpush1.msra.mxu0 %v114
    %756 = vmatprep.subr.mxu0 0.0
    %757 = vmatpush1.msra.mxu0 %v115
    %758 = vmatprep.subr.mxu0 0.0
    %759 = vmatpush1.msra.mxu0 %v116
    %760 = vmatprep.subr.mxu0 0.0
    %761 = vmatpush1.msra.mxu0 %v117
    %762 = vmatprep.subr.mxu0 0.0
    %763 = vmatpush1.msra.mxu0 %v118
    %764 = vmatprep.subr.mxu0 0.0
    %765 = vmatpush1.msra.mxu0 %v119
    %766 = vmatprep.subr.mxu0 0.0
    %767 = vmatpush1.msra.mxu0 %v120
    %768 = vmatprep.subr.mxu0 0.0
    %769 = vmatpush1.msra.mxu0 %v121
    %770 = vmatprep.subr.mxu0 0.0
    %771 = vmatpush1.msra.mxu0 %v122
    %772 = vmatprep.subr.mxu0 0.0
    %773 = vmatpush1.msra.mxu0 %v123
    %774 = vmatprep.subr.mxu0 0.0
    %775 = vmatpush1.msra.mxu0 %v124
    %776 = vmatprep.subr.mxu0 0.0
    %777 = vmatpush1.msra.mxu0 %v125
    %778 = vmatprep.subr.mxu0 0.0
    %779 = vmatpush1.msra.mxu0 %v126
    %780 = vmatprep.subr.mxu0 0.0
    %781 = vmatpush1.msra.mxu0 %v127
    %782 = vmatprep.subr.mxu0 0.0
    %783 = vmatpush1.msra.mxu0 %v128
    %784 = vmatprep.subr.mxu0 0.0
    %785 = vmatpush1.msra.mxu0 %v129
    %786 = vmatprep.mubr.f32.mxu0 %v480
    %787 = vmatmul.mubr.f32.gmra.mrb[0].mxu0 %v472
    %v788 = vpop.f32.mrb[0].mxu0
    %v789 = vadd.f32 %v719, %v788
    %v790 = vpop.f32.mrb[0].mxu0
    %791 = vdwg.mxu0
    %792 = vmatprep.subr.mxu0 0.0
    %793 = vmatpush1.msra.mxu0 %v130
    %794 = vmatprep.subr.mxu0 0.0
    %795 = vmatpush1.msra.mxu0 %v131
    %796 = vmatprep.subr.mxu0 0.0
    %797 = vmatpush1.msra.mxu0 %v132
    %798 = vmatprep.subr.mxu0 0.0
    %799 = vmatpush1.msra.mxu0 %v133
    %800 = vmatprep.subr.mxu0 0.0
    %801 = vmatpush1.msra.mxu0 %v134
    %802 = vmatprep.subr.mxu0 0.0
    %803 = vmatpush1.msra.mxu0 %v135
    %804 = vmatprep.subr.mxu0 0.0
    %805 = vmatpush1.msra.mxu0 %v136
    %806 = vmatprep.subr.mxu0 0.0
    %807 = vmatpush1.msra.mxu0 %v137
    %808 = vmatprep.subr.mxu0 0.0
    %809 = vmatpush1.msra.mxu0 %v138
    %810 = vmatprep.subr.mxu0 0.0
    %811 = vmatpush1.msra.mxu0 %v139
    %812 = vmatprep.subr.mxu0 0.0
    %813 = vmatpush1.msra.mxu0 %v140
    %814 = vmatprep.subr.mxu0 0.0
    %815 = vmatpush1.msra.mxu0 %v141
    %816 = vmatprep.subr.mxu0 0.0
    %817 = vmatpush1.msra.mxu0 %v142
    %818 = vmatprep.subr.mxu0 0.0
    %819 = vmatpush1.msra.mxu0 %v143
    %820 = vmatprep.subr.mxu0 0.0
    %821 = vmatpush1.msra.mxu0 %v144
    %822 = vmatprep.subr.mxu0 0.0
    %823 = vmatpush1.msra.mxu0 %v145
    %824 = vmatprep.subr.mxu0 0.0
    %825 = vmatpush1.msra.mxu0 %v146
    %826 = vmatprep.subr.mxu0 0.0
    %827 = vmatpush1.msra.mxu0 %v147
    %828 = vmatprep.subr.mxu0 0.0
    %829 = vmatpush1.msra.mxu0 %v148
    %830 = vmatprep.subr.mxu0 0.0
    %831 = vmatpush1.msra.mxu0 %v149
    %832 = vmatprep.subr.mxu0 0.0
    %833 = vmatpush1.msra.mxu0 %v150
    %834 = vmatprep.subr.mxu0 0.0
    %835 = vmatpush1.msra.mxu0 %v151
    %836 = vmatprep.subr.mxu0 0.0
    %837 = vmatpush1.msra.mxu0 %v152
    %838 = vmatprep.subr.mxu0 0.0
    %839 = vmatpush1.msra.mxu0 %v153
    %840 = vmatprep.subr.mxu0 0.0
    %841 = vmatpush1.msra.mxu0 %v154
    %842 = vmatprep.subr.mxu0 0.0
    %843 = vmatpush1.msra.mxu0 %v155
    %844 = vmatprep.subr.mxu0 0.0
    %845 = vmatpush1.msra.mxu0 %v156
    %846 = vmatprep.subr.mxu0 0.0
    %847 = vmatpush1.msra.mxu0 %v157
    %848 = vmatprep.subr.mxu0 0.0
    %849 = vmatpush1.msra.mxu0 %v158
    %850 = vmatprep.subr.mxu0 0.0
    %851 = vmatpush1.msra.mxu0 %v159
    %852 = vmatprep.subr.mxu0 0.0
    %853 = vmatpush1.msra.mxu0 %v160
    %854 = vmatprep.subr.mxu0 0.0
    %855 = vmatpush1.msra.mxu0 %v161
    %856 = vmatprep.mubr.f32.mxu0 %v481
    %857 = vmatmul.mubr.f32.gmra.mrb[0].mxu0 %v479
    %v858 = vpop.f32.mrb[0].mxu0
    %v859 = vadd.f32 %v789, %v858
    %v860 = vpop.f32.mrb[0].mxu0
    %861 = vdwg.mxu0
    %862 = vmatprep.subr.mxu0 0.0
    %863 = vmatpush1.msra.mxu0 %v162
    %864 = vmatprep.subr.mxu0 0.0
    %865 = vmatpush1.msra.mxu0 %v163
    %866 = vmatprep.subr.mxu0 0.0
    %867 = vmatpush1.msra.mxu0 %v164
    %868 = vmatprep.subr.mxu0 0.0
    %869 = vmatpush1.msra.mxu0 %v165
    %870 = vmatprep.subr.mxu0 0.0
    %871 = vmatpush1.msra.mxu0 %v166
    %872 = vmatprep.subr.mxu0 0.0
    %873 = vmatpush1.msra.mxu0 %v167
    %874 = vmatprep.subr.mxu0 0.0
    %875 = vmatpush1.msra.mxu0 %v168
    %876 = vmatprep.subr.mxu0 0.0
    %877 = vmatpush1.msra.mxu0 %v169
    %878 = vmatprep.subr.mxu0 0.0
    %879 = vmatpush1.msra.mxu0 %v170
    %880 = vmatprep.subr.mxu0 0.0
    %881 = vmatpush1.msra.mxu0 %v171
    %882 = vmatprep.subr.mxu0 0.0
    %883 = vmatpush1.msra.mxu0 %v172
    %884 = vmatprep.subr.mxu0 0.0
    %885 = vmatpush1.msra.mxu0 %v173
    %886 = vmatprep.subr.mxu0 0.0
    %887 = vmatpush1.msra.mxu0 %v174
    %888 = vmatprep.subr.mxu0 0.0
    %889 = vmatpush1.msra.mxu0 %v175
    %890 = vmatprep.subr.mxu0 0.0
    %891 = vmatpush1.msra.mxu0 %v176
    %892 = vmatprep.subr.mxu0 0.0
    %893 = vmatpush1.msra.mxu0 %v177
    %894 = vmatprep.subr.mxu0 0.0
    %895 = vmatpush1.msra.mxu0 %v178
    %896 = vmatprep.subr.mxu0 0.0
    %897 = vmatpush1.msra.mxu0 %v179
    %898 = vmatprep.subr.mxu0 0.0
    %899 = vmatpush1.msra.mxu0 %v180
    %900 = vmatprep.subr.mxu0 0.0
    %901 = vmatpush1.msra.mxu0 %v181
    %902 = vmatprep.subr.mxu0 0.0
    %903 = vmatpush1.msra.mxu0 %v182
    %904 = vmatprep.subr.mxu0 0.0
    %905 = vmatpush1.msra.mxu0 %v183
    %906 = vmatprep.subr.mxu0 0.0
    %907 = vmatpush1.msra.mxu0 %v184
    %908 = vmatprep.subr.mxu0 0.0
    %909 = vmatpush1.msra.mxu0 %v185
    %910 = vmatprep.subr.mxu0 0.0
    %911 = vmatpush1.msra.mxu0 %v186
    %912 = vmatprep.subr.mxu0 0.0
    %913 = vmatpush1.msra.mxu0 %v187
    %914 = vmatprep.subr.mxu0 0.0
    %915 = vmatpush1.msra.mxu0 %v188
    %916 = vmatprep.subr.mxu0 0.0
    %917 = vmatpush1.msra.mxu0 %v189
    %918 = vmatprep.subr.mxu0 0.0
    %919 = vmatpush1.msra.mxu0 %v190
    %920 = vmatprep.subr.mxu0 0.0
    %921 = vmatpush1.msra.mxu0 %v191
    %922 = vmatprep.subr.mxu0 0.0
    %923 = vmatpush1.msra.mxu0 %v192
    %924 = vmatprep.subr.mxu0 0.0
    %925 = vmatpush1.msra.mxu0 %v193
    %926 = vmatprep.mubr.f32.mxu0 %v497
    %927 = vmatmul.mubr.f32.gmra.mrb[0].mxu0 %v489
    %v928 = vpop.f32.mrb[0].mxu0
    %v929 = vadd.f32 %v859, %v928
    %v930 = vpop.f32.mrb[0].mxu0
    %931 = vdwg.mxu0
    %932 = vmatprep.subr.mxu0 0.0
    %933 = vmatpush1.msra.mxu0 %v194
    %934 = vmatprep.subr.mxu0 0.0
    %935 = vmatpush1.msra.mxu0 %v195
    %936 = vmatprep.subr.mxu0 0.0
    %937 = vmatpush1.msra.mxu0 %v196
    %938 = vmatprep.subr.mxu0 0.0
    %939 = vmatpush1.msra.mxu0 %v197
    %940 = vmatprep.subr.mxu0 0.0
    %941 = vmatpush1.msra.mxu0 %v198
    %942 = vmatprep.subr.mxu0 0.0
    %943 = vmatpush1.msra.mxu0 %v199
    %944 = vmatprep.subr.mxu0 0.0
    %945 = vmatpush1.msra.mxu0 %v200
    %946 = vmatprep.subr.mxu0 0.0
    %947 = vmatpush1.msra.mxu0 %v201
    %948 = vmatprep.subr.mxu0 0.0
    %949 = vmatpush1.msra.mxu0 %v202
    %950 = vmatprep.subr.mxu0 0.0
    %951 = vmatpush1.msra.mxu0 %v203
    %952 = vmatprep.subr.mxu0 0.0
    %953 = vmatpush1.msra.mxu0 %v204
    %954 = vmatprep.subr.mxu0 0.0
    %955 = vmatpush1.msra.mxu0 %v205
    %956 = vmatprep.subr.mxu0 0.0
    %957 = vmatpush1.msra.mxu0 %v206
    %958 = vmatprep.subr.mxu0 0.0
    %959 = vmatpush1.msra.mxu0 %v207
    %960 = vmatprep.subr.mxu0 0.0
    %961 = vmatpush1.msra.mxu0 %v208
    %962 = vmatprep.subr.mxu0 0.0
    %963 = vmatpush1.msra.mxu0 %v209
    %964 = vmatprep.subr.mxu0 0.0
    %965 = vmatpush1.msra.mxu0 %v210
    %966 = vmatprep.subr.mxu0 0.0
    %967 = vmatpush1.msra.mxu0 %v211
    %968 = vmatprep.subr.mxu0 0.0
    %969 = vmatpush1.msra.mxu0 %v212
    %970 = vmatprep.subr.mxu0 0.0
    %971 = vmatpush1.msra.mxu0 %v213
    %972 = vmatprep.subr.mxu0 0.0
    %973 = vmatpush1.msra.mxu0 %v214
    %974 = vmatprep.subr.mxu0 0.0
    %975 = vmatpush1.msra.mxu0 %v215
    %976 = vmatprep.subr.mxu0 0.0
    %977 = vmatpush1.msra.mxu0 %v216
    %978 = vmatprep.subr.mxu0 0.0
    %979 = vmatpush1.msra.mxu0 %v217
    %980 = vmatprep.subr.mxu0 0.0
    %981 = vmatpush1.msra.mxu0 %v218
    %982 = vmatprep.subr.mxu0 0.0
    %983 = vmatpush1.msra.mxu0 %v219
    %984 = vmatprep.subr.mxu0 0.0
    %985 = vmatpush1.msra.mxu0 %v220
    %986 = vmatprep.subr.mxu0 0.0
    %987 = vmatpush1.msra.mxu0 %v221
    %988 = vmatprep.subr.mxu0 0.0
    %989 = vmatpush1.msra.mxu0 %v222
    %990 = vmatprep.subr.mxu0 0.0
    %991 = vmatpush1.msra.mxu0 %v223
    %992 = vmatprep.subr.mxu0 0.0
    %993 = vmatpush1.msra.mxu0 %v224
    %994 = vmatprep.subr.mxu0 0.0
    %995 = vmatpush1.msra.mxu0 %v225
    %996 = vmatprep.mubr.f32.mxu0 %v498
    %997 = vmatmul.mubr.f32.gmra.mrb[0].mxu0 %v496
    %v998 = vpop.f32.mrb[0].mxu0
    %v999 = vadd.f32 %v929, %v998
    %v1000 = vpop.f32.mrb[0].mxu0
    %1001 = vdwg.mxu0
    %1002 = vmatprep.subr.mxu0 0.0
    %1003 = vmatpush1.msra.mxu0 %v226
    %1004 = vmatprep.subr.mxu0 0.0
    %1005 = vmatpush1.msra.mxu0 %v227
    %1006 = vmatprep.subr.mxu0 0.0
    %1007 = vmatpush1.msra.mxu0 %v228
    %1008 = vmatprep.subr.mxu0 0.0
    %1009 = vmatpush1.msra.mxu0 %v229
    %1010 = vmatprep.subr.mxu0 0.0
    %1011 = vmatpush1.msra.mxu0 %v230
    %1012 = vmatprep.subr.mxu0 0.0
    %1013 = vmatpush1.msra.mxu0 %v231
    %1014 = vmatprep.subr.mxu0 0.0
    %1015 = vmatpush1.msra.mxu0 %v232
    %1016 = vmatprep.subr.mxu0 0.0
    %1017 = vmatpush1.msra.mxu0 %v233
    %1018 = vmatprep.subr.mxu0 0.0
    %1019 = vmatpush1.msra.mxu0 %v234
    %1020 = vmatprep.subr.mxu0 0.0
    %1021 = vmatpush1.msra.mxu0 %v235
    %1022 = vmatprep.subr.mxu0 0.0
    %1023 = vmatpush1.msra.mxu0 %v236
    %1024 = vmatprep.subr.mxu0 0.0
    %1025 = vmatpush1.msra.mxu0 %v237
    %1026 = vmatprep.subr.mxu0 0.0
    %1027 = vmatpush1.msra.mxu0 %v238
    %1028 = vmatprep.subr.mxu0 0.0
    %1029 = vmatpush1.msra.mxu0 %v239
    %1030 = vmatprep.subr.mxu0 0.0
    %1031 = vmatpush1.msra.mxu0 %v240
    %1032 = vmatprep.subr.mxu0 0.0
    %1033 = vmatpush1.msra.mxu0 %v241
    %1034 = vmatprep.subr.mxu0 0.0
    %1035 = vmatpush1.msra.mxu0 %v242
    %1036 = vmatprep.subr.mxu0 0.0
    %1037 = vmatpush1.msra.mxu0 %v243
    %1038 = vmatprep.subr.mxu0 0.0
    %1039 = vmatpush1.msra.mxu0 %v244
    %1040 = vmatprep.subr.mxu0 0.0
    %1041 = vmatpush1.msra.mxu0 %v245
    %1042 = vmatprep.subr.mxu0 0.0
    %1043 = vmatpush1.msra.mxu0 %v246
    %1044 = vmatprep.subr.mxu0 0.0
    %1045 = vmatpush1.msra.mxu0 %v247
    %1046 = vmatprep.subr.mxu0 0.0
    %1047 = vmatpush1.msra.mxu0 %v248
    %1048 = vmatprep.subr.mxu0 0.0
    %1049 = vmatpush1.msra.mxu0 %v249
    %1050 = vmatprep.subr.mxu0 0.0
    %1051 = vmatpush1.msra.mxu0 %v250
    %1052 = vmatprep.subr.mxu0 0.0
    %1053 = vmatpush1.msra.mxu0 %v251
    %1054 = vmatprep.subr.mxu0 0.0
    %1055 = vmatpush1.msra.mxu0 %v252
    %1056 = vmatprep.subr.mxu0 0.0
    %1057 = vmatpush1.msra.mxu0 %v253
    %1058 = vmatprep.subr.mxu0 0.0
    %1059 = vmatpush1.msra.mxu0 %v254
    %1060 = vmatprep.subr.mxu0 0.0
    %1061 = vmatpush1.msra.mxu0 %v255
    %1062 = vmatprep.subr.mxu0 0.0
    %1063 = vmatpush1.msra.mxu0 %v256
    %1064 = vmatprep.subr.mxu0 0.0
    %1065 = vmatpush1.msra.mxu0 %v257
    %1066 = vmatprep.mubr.f32.mxu0 %v514
    %1067 = vmatmul.mubr.f32.gmra.mrb[0].mxu0 %v506
    %v1068 = vpop.f32.mrb[0].mxu0
    %v1069 = vadd.f32 %v999, %v1068
    %v1070 = vpop.f32.mrb[0].mxu0
    %1071 = vdwg.mxu0
    %1072 = vmatprep.subr.mxu0 0.0
    %1073 = vmatpush1.msra.mxu0 %v258
    %1074 = vmatprep.subr.mxu0 0.0
    %1075 = vmatpush1.msra.mxu0 %v259
    %1076 = vmatprep.subr.mxu0 0.0
    %1077 = vmatpush1.msra.mxu0 %v260
    %1078 = vmatprep.subr.mxu0 0.0
    %1079 = vmatpush1.msra.mxu0 %v261
    %1080 = vmatprep.subr.mxu0 0.0
    %1081 = vmatpush1.msra.mxu0 %v262
    %1082 = vmatprep.subr.mxu0 0.0
    %1083 = vmatpush1.msra.mxu0 %v263
    %1084 = vmatprep.subr.mxu0 0.0
    %1085 = vmatpush1.msra.mxu0 %v264
    %1086 = vmatprep.subr.mxu0 0.0
    %1087 = vmatpush1.msra.mxu0 %v265
    %1088 = vmatprep.subr.mxu0 0.0
    %1089 = vmatpush1.msra.mxu0 %v266
    %1090 = vmatprep.subr.mxu0 0.0
    %1091 = vmatpush1.msra.mxu0 %v267
    %1092 = vmatprep.subr.mxu0 0.0
    %1093 = vmatpush1.msra.mxu0 %v268
    %1094 = vmatprep.subr.mxu0 0.0
    %1095 = vmatpush1.msra.mxu0 %v269
    %1096 = vmatprep.subr.mxu0 0.0
    %1097 = vmatpush1.msra.mxu0 %v270
    %1098 = vmatprep.subr.mxu0 0.0
    %1099 = vmatpush1.msra.mxu0 %v271
    %1100 = vmatprep.subr.mxu0 0.0
    %1101 = vmatpush1.msra.mxu0 %v272
    %1102 = vmatprep.subr.mxu0 0.0
    %1103 = vmatpush1.msra.mxu0 %v273
    %1104 = vmatprep.subr.mxu0 0.0
    %1105 = vmatpush1.msra.mxu0 %v274
    %1106 = vmatprep.subr.mxu0 0.0
    %1107 = vmatpush1.msra.mxu0 %v275
    %1108 = vmatprep.subr.mxu0 0.0
    %1109 = vmatpush1.msra.mxu0 %v276
    %1110 = vmatprep.subr.mxu0 0.0
    %1111 = vmatpush1.msra.mxu0 %v277
    %1112 = vmatprep.subr.mxu0 0.0
    %1113 = vmatpush1.msra.mxu0 %v278
    %1114 = vmatprep.subr.mxu0 0.0
    %1115 = vmatpush1.msra.mxu0 %v279
    %1116 = vmatprep.subr.mxu0 0.0
    %1117 = vmatpush1.msra.mxu0 %v280
    %1118 = vmatprep.subr.mxu0 0.0
    %1119 = vmatpush1.msra.mxu0 %v281
    %1120 = vmatprep.subr.mxu0 0.0
    %1121 = vmatpush1.msra.mxu0 %v282
    %1122 = vmatprep.subr.mxu0 0.0
    %1123 = vmatpush1.msra.mxu0 %v283
    %1124 = vmatprep.subr.mxu0 0.0
    %1125 = vmatpush1.msra.mxu0 %v284
    %1126 = vmatprep.subr.mxu0 0.0
    %1127 = vmatpush1.msra.mxu0 %v285
    %1128 = vmatprep.subr.mxu0 0.0
    %1129 = vmatpush1.msra.mxu0 %v286
    %1130 = vmatprep.subr.mxu0 0.0
    %1131 = vmatpush1.msra.mxu0 %v287
    %1132 = vmatprep.subr.mxu0 0.0
    %1133 = vmatpush1.msra.mxu0 %v288
    %1134 = vmatprep.subr.mxu0 0.0
    %1135 = vmatpush1.msra.mxu0 %v289
    %1136 = vmatprep.mubr.f32.mxu0 %v515
    %1137 = vmatmul.mubr.f32.gmra.mrb[0].mxu0 %v513
    %v1138 = vpop.f32.mrb[0].mxu0
    %v1139 = vadd.f32 %v1069, %v1138
    %v1140 = vpop.f32.mrb[0].mxu0
    %1141 = vdwg.mxu0
    %1142 = vmatprep.subr.mxu0 0.0
    %1143 = vmatpush1.msra.mxu0 %v290
    %1144 = vmatprep.subr.mxu0 0.0
    %1145 = vmatpush1.msra.mxu0 %v291
    %1146 = vmatprep.subr.mxu0 0.0
    %1147 = vmatpush1.msra.mxu0 %v292
    %1148 = vmatprep.subr.mxu0 0.0
    %1149 = vmatpush1.msra.mxu0 %v293
    %1150 = vmatprep.subr.mxu0 0.0
    %1151 = vmatpush1.msra.mxu0 %v294
    %1152 = vmatprep.subr.mxu0 0.0
    %1153 = vmatpush1.msra.mxu0 %v295
    %1154 = vmatprep.subr.mxu0 0.0
    %1155 = vmatpush1.msra.mxu0 %v296
    %1156 = vmatprep.subr.mxu0 0.0
    %1157 = vmatpush1.msra.mxu0 %v297
    %1158 = vmatprep.subr.mxu0 0.0
    %1159 = vmatpush1.msra.mxu0 %v298
    %1160 = vmatprep.subr.mxu0 0.0
    %1161 = vmatpush1.msra.mxu0 %v299
    %1162 = vmatprep.subr.mxu0 0.0
    %1163 = vmatpush1.msra.mxu0 %v300
    %1164 = vmatprep.subr.mxu0 0.0
    %1165 = vmatpush1.msra.mxu0 %v301
    %1166 = vmatprep.subr.mxu0 0.0
    %1167 = vmatpush1.msra.mxu0 %v302
    %1168 = vmatprep.subr.mxu0 0.0
    %1169 = vmatpush1.msra.mxu0 %v303
    %1170 = vmatprep.subr.mxu0 0.0
    %1171 = vmatpush1.msra.mxu0 %v304
    %1172 = vmatprep.subr.mxu0 0.0
    %1173 = vmatpush1.msra.mxu0 %v305
    %1174 = vmatprep.subr.mxu0 0.0
    %1175 = vmatpush1.msra.mxu0 %v306
    %1176 = vmatprep.subr.mxu0 0.0
    %1177 = vmatpush1.msra.mxu0 %v307
    %1178 = vmatprep.subr.mxu0 0.0
    %1179 = vmatpush1.msra.mxu0 %v308
    %1180 = vmatprep.subr.mxu0 0.0
    %1181 = vmatpush1.msra.mxu0 %v309
    %1182 = vmatprep.subr.mxu0 0.0
    %1183 = vmatpush1.msra.mxu0 %v310
    %1184 = vmatprep.subr.mxu0 0.0
    %1185 = vmatpush1.msra.mxu0 %v311
    %1186 = vmatprep.subr.mxu0 0.0
    %1187 = vmatpush1.msra.mxu0 %v312
    %1188 = vmatprep.subr.mxu0 0.0
    %1189 = vmatpush1.msra.mxu0 %v313
    %1190 = vmatprep.subr.mxu0 0.0
    %1191 = vmatpush1.msra.mxu0 %v314
    %1192 = vmatprep.subr.mxu0 0.0
    %1193 = vmatpush1.msra.mxu0 %v315
    %1194 = vmatprep.subr.mxu0 0.0
    %1195 = vmatpush1.msra.mxu0 %v316
    %1196 = vmatprep.subr.mxu0 0.0
    %1197 = vmatpush1.msra.mxu0 %v317
    %1198 = vmatprep.subr.mxu0 0.0
    %1199 = vmatpush1.msra.mxu0 %v318
    %1200 = vmatprep.subr.mxu0 0.0
    %1201 = vmatpush1.msra.mxu0 %v319
    %1202 = vmatprep.subr.mxu0 0.0
    %1203 = vmatpush1.msra.mxu0 %v320
    %1204 = vmatprep.subr.mxu0 0.0
    %1205 = vmatpush1.msra.mxu0 %v321
    %1206 = vmatprep.mubr.f32.mxu0 %v531
    %1207 = vmatmul.mubr.f32.gmra.mrb[0].mxu0 %v523
    %v1208 = vpop.f32.mrb[0].mxu0
    %v1209 = vadd.f32 %v1139, %v1208
    %v1210 = vpop.f32.mrb[0].mxu0
    %1211 = vdwg.mxu0
    %1212 = vmatprep.subr.mxu0 0.0
    %1213 = vmatpush1.msra.mxu0 %v322
    %1214 = vmatprep.subr.mxu0 0.0
    %1215 = vmatpush1.msra.mxu0 %v323
    %1216 = vmatprep.subr.mxu0 0.0
    %1217 = vmatpush1.msra.mxu0 %v324
    %1218 = vmatprep.subr.mxu0 0.0
    %1219 = vmatpush1.msra.mxu0 %v325
    %1220 = vmatprep.subr.mxu0 0.0
    %1221 = vmatpush1.msra.mxu0 %v326
    %1222 = vmatprep.subr.mxu0 0.0
    %1223 = vmatpush1.msra.mxu0 %v327
    %1224 = vmatprep.subr.mxu0 0.0
    %1225 = vmatpush1.msra.mxu0 %v328
    %1226 = vmatprep.subr.mxu0 0.0
    %1227 = vmatpush1.msra.mxu0 %v329
    %1228 = vmatprep.subr.mxu0 0.0
    %1229 = vmatpush1.msra.mxu0 %v330
    %1230 = vmatprep.subr.mxu0 0.0
    %1231 = vmatpush1.msra.mxu0 %v331
    %1232 = vmatprep.subr.mxu0 0.0
    %1233 = vmatpush1.msra.mxu0 %v332
    %1234 = vmatprep.subr.mxu0 0.0
    %1235 = vmatpush1.msra.mxu0 %v333
    %1236 = vmatprep.subr.mxu0 0.0
    %1237 = vmatpush1.msra.mxu0 %v334
    %1238 = vmatprep.subr.mxu0 0.0
    %1239 = vmatpush1.msra.mxu0 %v335
    %1240 = vmatprep.subr.mxu0 0.0
    %1241 = vmatpush1.msra.mxu0 %v336
    %1242 = vmatprep.subr.mxu0 0.0
    %1243 = vmatpush1.msra.mxu0 %v337
    %1244 = vmatprep.subr.mxu0 0.0
    %1245 = vmatpush1.msra.mxu0 %v338
    %1246 = vmatprep.subr.mxu0 0.0
    %1247 = vmatpush1.msra.mxu0 %v339
    %1248 = vmatprep.subr.mxu0 0.0
    %1249 = vmatpush1.msra.mxu0 %v340
    %1250 = vmatprep.subr.mxu0 0.0
    %1251 = vmatpush1.msra.mxu0 %v341
    %1252 = vmatprep.subr.mxu0 0.0
    %1253 = vmatpush1.msra.mxu0 %v342
    %1254 = vmatprep.subr.mxu0 0.0
    %1255 = vmatpush1.msra.mxu0 %v343
    %1256 = vmatprep.subr.mxu0 0.0
    %1257 = vmatpush1.msra.mxu0 %v344
    %1258 = vmatprep.subr.mxu0 0.0
    %1259 = vmatpush1.msra.mxu0 %v345
    %1260 = vmatprep.subr.mxu0 0.0
    %1261 = vmatpush1.msra.mxu0 %v346
    %1262 = vmatprep.subr.mxu0 0.0
    %1263 = vmatpush1.msra.mxu0 %v347
    %1264 = vmatprep.subr.mxu0 0.0
    %1265 = vmatpush1.msra.mxu0 %v348
    %1266 = vmatprep.subr.mxu0 0.0
    %1267 = vmatpush1.msra.mxu0 %v349
    %1268 = vmatprep.subr.mxu0 0.0
    %1269 = vmatpush1.msra.mxu0 %v350
    %1270 = vmatprep.subr.mxu0 0.0
    %1271 = vmatpush1.msra.mxu0 %v351
    %1272 = vmatprep.subr.mxu0 0.0
    %1273 = vmatpush1.msra.mxu0 %v352
    %1274 = vmatprep.subr.mxu0 0.0
    %1275 = vmatpush1.msra.mxu0 %v353
    %1276 = vmatprep.mubr.f32.mxu0 %v532
    %1277 = vmatmul.mubr.f32.gmra.mrb[0].mxu0 %v530
    %v1278 = vpop.f32.mrb[0].mxu0
    %v1279 = vadd.f32 %v1209, %v1278
    %v1280 = vpop.f32.mrb[0].mxu0
    %1281 = vdwg.mxu0
    %1282 = vmatprep.subr.mxu0 0.0
    %1283 = vmatpush1.msra.mxu0 %v354
    %1284 = vmatprep.subr.mxu0 0.0
    %1285 = vmatpush1.msra.mxu0 %v355
    %1286 = vmatprep.subr.mxu0 0.0
    %1287 = vmatpush1.msra.mxu0 %v356
    %1288 = vmatprep.subr.mxu0 0.0
    %1289 = vmatpush1.msra.mxu0 %v357
    %1290 = vmatprep.subr.mxu0 0.0
    %1291 = vmatpush1.msra.mxu0 %v358
    %1292 = vmatprep.subr.mxu0 0.0
    %1293 = vmatpush1.msra.mxu0 %v359
    %1294 = vmatprep.subr.mxu0 0.0
    %1295 = vmatpush1.msra.mxu0 %v360
    %1296 = vmatprep.subr.mxu0 0.0
    %1297 = vmatpush1.msra.mxu0 %v361
    %1298 = vmatprep.subr.mxu0 0.0
    %1299 = vmatpush1.msra.mxu0 %v362
    %1300 = vmatprep.subr.mxu0 0.0
    %1301 = vmatpush1.msra.mxu0 %v363
    %1302 = vmatprep.subr.mxu0 0.0
    %1303 = vmatpush1.msra.mxu0 %v364
    %1304 = vmatprep.subr.mxu0 0.0
    %1305 = vmatpush1.msra.mxu0 %v365
    %1306 = vmatprep.subr.mxu0 0.0
    %1307 = vmatpush1.msra.mxu0 %v366
    %1308 = vmatprep.subr.mxu0 0.0
    %1309 = vmatpush1.msra.mxu0 %v367
    %1310 = vmatprep.subr.mxu0 0.0
    %1311 = vmatpush1.msra.mxu0 %v368
    %1312 = vmatprep.subr.mxu0 0.0
    %1313 = vmatpush1.msra.mxu0 %v369
    %1314 = vmatprep.subr.mxu0 0.0
    %1315 = vmatpush1.msra.mxu0 %v370
    %1316 = vmatprep.subr.mxu0 0.0
    %1317 = vmatpush1.msra.mxu0 %v371
    %1318 = vmatprep.subr.mxu0 0.0
    %1319 = vmatpush1.msra.mxu0 %v372
    %1320 = vmatprep.subr.mxu0 0.0
    %1321 = vmatpush1.msra.mxu0 %v373
    %1322 = vmatprep.subr.mxu0 0.0
    %1323 = vmatpush1.msra.mxu0 %v374
    %1324 = vmatprep.subr.mxu0 0.0
    %1325 = vmatpush1.msra.mxu0 %v375
    %1326 = vmatprep.subr.mxu0 0.0
    %1327 = vmatpush1.msra.mxu0 %v376
    %1328 = vmatprep.subr.mxu0 0.0
    %1329 = vmatpush1.msra.mxu0 %v377
    %1330 = vmatprep.subr.mxu0 0.0
    %1331 = vmatpush1.msra.mxu0 %v378
    %1332 = vmatprep.subr.mxu0 0.0
    %1333 = vmatpush1.msra.mxu0 %v379
    %1334 = vmatprep.subr.mxu0 0.0
    %1335 = vmatpush1.msra.mxu0 %v380
    %1336 = vmatprep.subr.mxu0 0.0
    %1337 = vmatpush1.msra.mxu0 %v381
    %1338 = vmatprep.subr.mxu0 0.0
    %1339 = vmatpush1.msra.mxu0 %v382
    %1340 = vmatprep.subr.mxu0 0.0
    %1341 = vmatpush1.msra.mxu0 %v383
    %1342 = vmatprep.subr.mxu0 0.0
    %1343 = vmatpush1.msra.mxu0 %v384
    %1344 = vmatprep.subr.mxu0 0.0
    %1345 = vmatpush1.msra.mxu0 %v385
    %1346 = vmatprep.mubr.f32.mxu0 %v548
    %1347 = vmatmul.mubr.f32.gmra.mrb[0].mxu0 %v540
    %v1348 = vpop.f32.mrb[0].mxu0
    %v1349 = vadd.f32 %v1279, %v1348
    %v1350 = vpop.f32.mrb[0].mxu0
    %1351 = vdwg.mxu0
    %1352 = vmatprep.subr.mxu0 0.0
    %1353 = vmatpush1.msra.mxu0 %v386
    %1354 = vmatprep.subr.mxu0 0.0
    %1355 = vmatpush1.msra.mxu0 %v387
    %1356 = vmatprep.subr.mxu0 0.0
    %1357 = vmatpush1.msra.mxu0 %v388
    %1358 = vmatprep.subr.mxu0 0.0
    %1359 = vmatpush1.msra.mxu0 %v389
    %1360 = vmatprep.subr.mxu0 0.0
    %1361 = vmatpush1.msra.mxu0 %v390
    %1362 = vmatprep.subr.mxu0 0.0
    %1363 = vmatpush1.msra.mxu0 %v391
    %1364 = vmatprep.subr.mxu0 0.0
    %1365 = vmatpush1.msra.mxu0 %v392
    %1366 = vmatprep.subr.mxu0 0.0
    %1367 = vmatpush1.msra.mxu0 %v393
    %1368 = vmatprep.subr.mxu0 0.0
    %1369 = vmatpush1.msra.mxu0 %v394
    %1370 = vmatprep.subr.mxu0 0.0
    %1371 = vmatpush1.msra.mxu0 %v395
    %1372 = vmatprep.subr.mxu0 0.0
    %1373 = vmatpush1.msra.mxu0 %v396
    %1374 = vmatprep.subr.mxu0 0.0
    %1375 = vmatpush1.msra.mxu0 %v397
    %1376 = vmatprep.subr.mxu0 0.0
    %1377 = vmatpush1.msra.mxu0 %v398
    %1378 = vmatprep.subr.mxu0 0.0
    %1379 = vmatpush1.msra.mxu0 %v399
    %1380 = vmatprep.subr.mxu0 0.0
    %1381 = vmatpush1.msra.mxu0 %v400
    %1382 = vmatprep.subr.mxu0 0.0
    %1383 = vmatpush1.msra.mxu0 %v401
    %1384 = vmatprep.subr.mxu0 0.0
    %1385 = vmatpush1.msra.mxu0 %v402
    %1386 = vmatprep.subr.mxu0 0.0
    %1387 = vmatpush1.msra.mxu0 %v403
    %1388 = vmatprep.subr.mxu0 0.0
    %1389 = vmatpush1.msra.mxu0 %v404
    %1390 = vmatprep.subr.mxu0 0.0
    %1391 = vmatpush1.msra.mxu0 %v405
    %1392 = vmatprep.subr.mxu0 0.0
    %1393 = vmatpush1.msra.mxu0 %v406
    %1394 = vmatprep.subr.mxu0 0.0
    %1395 = vmatpush1.msra.mxu0 %v407
    %1396 = vmatprep.subr.mxu0 0.0
    %1397 = vmatpush1.msra.mxu0 %v408
    %1398 = vmatprep.subr.mxu0 0.0
    %1399 = vmatpush1.msra.mxu0 %v409
    %1400 = vmatprep.subr.mxu0 0.0
    %1401 = vmatpush1.msra.mxu0 %v410
    %1402 = vmatprep.subr.mxu0 0.0
    %1403 = vmatpush1.msra.mxu0 %v411
    %1404 = vmatprep.subr.mxu0 0.0
    %1405 = vmatpush1.msra.mxu0 %v412
    %1406 = vmatprep.subr.mxu0 0.0
    %1407 = vmatpush1.msra.mxu0 %v413
    %1408 = vmatprep.subr.mxu0 0.0
    %1409 = vmatpush1.msra.mxu0 %v414
    %1410 = vmatprep.subr.mxu0 0.0
    %1411 = vmatpush1.msra.mxu0 %v415
    %1412 = vmatprep.subr.mxu0 0.0
    %1413 = vmatpush1.msra.mxu0 %v416
    %1414 = vmatprep.subr.mxu0 0.0
    %1415 = vmatpush1.msra.mxu0 %v417
    %1416 = vmatprep.mubr.f32.mxu0 %v549
    %1417 = vmatmul.mubr.f32.gmra.mrb[0].mxu0 %v547
    %v1418 = vpop.f32.mrb[0].mxu0
    %v1419 = vadd.f32 %v1349, %v1418
    %v1420 = vpop.f32.mrb[0].mxu0
    %1421 = vdwg.mxu0
    %1422 = vmatprep.subr.mxu0 0.0
    %1423 = vmatpush1.msra.mxu0 %v418
    %1424 = vmatprep.subr.mxu0 0.0
    %1425 = vmatpush1.msra.mxu0 %v419
    %1426 = vmatprep.subr.mxu0 0.0
    %1427 = vmatpush1.msra.mxu0 %v420
    %1428 = vmatprep.subr.mxu0 0.0
    %1429 = vmatpush1.msra.mxu0 %v421
    %1430 = vmatprep.subr.mxu0 0.0
    %1431 = vmatpush1.msra.mxu0 %v422
    %1432 = vmatprep.subr.mxu0 0.0
    %1433 = vmatpush1.msra.mxu0 %v423
    %1434 = vmatprep.subr.mxu0 0.0
    %1435 = vmatpush1.msra.mxu0 %v424
    %1436 = vmatprep.subr.mxu0 0.0
    %1437 = vmatpush1.msra.mxu0 %v425
    %1438 = vmatprep.subr.mxu0 0.0
    %1439 = vmatpush1.msra.mxu0 %v426
    %1440 = vmatprep.subr.mxu0 0.0
    %1441 = vmatpush1.msra.mxu0 %v427
    %1442 = vmatprep.subr.mxu0 0.0
    %1443 = vmatpush1.msra.mxu0 %v428
    %1444 = vmatprep.subr.mxu0 0.0
    %1445 = vmatpush1.msra.mxu0 %v429
    %1446 = vmatprep.subr.mxu0 0.0
    %1447 = vmatpush1.msra.mxu0 %v430
    %1448 = vmatprep.subr.mxu0 0.0
    %1449 = vmatpush1.msra.mxu0 %v431
    %1450 = vmatprep.subr.mxu0 0.0
    %1451 = vmatpush1.msra.mxu0 %v432
    %1452 = vmatprep.subr.mxu0 0.0
    %1453 = vmatpush1.msra.mxu0 %v433
    %1454 = vmatprep.subr.mxu0 0.0
    %1455 = vmatpush1.msra.mxu0 0.0
    %1456 = vmatprep.subr.mxu0 0.0
    %1457 = vmatpush1.msra.mxu0 0.0
    %1458 = vmatprep.subr.mxu0 0.0
    %1459 = vmatpush1.msra.mxu0 0.0
    %1460 = vmatprep.subr.mxu0 0.0
    %1461 = vmatpush1.msra.mxu0 0.0
    %1462 = vmatprep.subr.mxu0 0.0
    %1463 = vmatpush1.msra.mxu0 0.0
    %1464 = vmatprep.subr.mxu0 0.0
    %1465 = vmatpush1.msra.mxu0 0.0
    %1466 = vmatprep.subr.mxu0 0.0
    %1467 = vmatpush1.msra.mxu0 0.0
    %1468 = vmatprep.subr.mxu0 0.0
    %1469 = vmatpush1.msra.mxu0 0.0
    %1470 = vmatprep.subr.mxu0 0.0
    %1471 = vmatpush1.msra.mxu0 0.0
    %1472 = vmatprep.subr.mxu0 0.0
    %1473 = vmatpush1.msra.mxu0 0.0
    %1474 = vmatprep.subr.mxu0 0.0
    %1475 = vmatpush1.msra.mxu0 0.0
    %1476 = vmatprep.subr.mxu0 0.0
    %1477 = vmatpush1.msra.mxu0 0.0
    %1478 = vmatprep.subr.mxu0 0.0
    %1479 = vmatpush1.msra.mxu0 0.0
    %1480 = vmatprep.subr.mxu0 0.0
    %1481 = vmatpush1.msra.mxu0 0.0
    %1482 = vmatprep.subr.mxu0 0.0
    %1483 = vmatpush1.msra.mxu0 0.0
    %1484 = vmatprep.subr.mxu0 0.0
    %1485 = vmatpush1.msra.mxu0 0.0
    %1486 = vmatprep.mubr.f32.mxu0 0.0
    %1487 = vmatmul.mubr.f32.gmra.mrb[0].mxu0 %v556
    %v1488 = vpop.f32.mrb[0].mxu0
    %v1489 = vadd.f32 %v1419, %v1488
    %v1490 = vpop.f32.mrb[0].mxu0
    %1491 = vdwg.mxu0
    %v1492 = vmax.f32 %v1489, 0.0
    %v1493 = vld [vmem:[%s3] sm:$0xff]
    %v1494 = vld [vmem:[%s3 + $0x8] sm:$0xff]
    %v1495 = vld [vmem:[%s3 + $0x10] sm:$0xff]
    %v1496 = vld [vmem:[%s3 + $0x18] sm:$0xff]
    %v1497 = vld [vmem:[%s3 + $0x20] sm:$0xff]
    %v1498 = vld [vmem:[%s3 + $0x28] sm:$0xff]
    %v1499 = vld [vmem:[%s3 + $0x30] sm:$0xff]
    %v1500 = vld [vmem:[%s3 + $0x38] sm:$0xff]
    %v1501 = vld [vmem:[%s3 + $0x40] sm:$0xff]
    %v1502 = vld [vmem:[%s3 + $0x48] sm:$0xff]
    %v1503 = vld [vmem:[%s3 + $0x50] sm:$0xff]
    %v1504 = vld [vmem:[%s3 + $0x58] sm:$0xff]
    %v1505 = vld [vmem:[%s3 + $0x60] sm:$0xff]
    %v1506 = vld [vmem:[%s3 + $0x68] sm:$0xff]
    %v1507 = vld [vmem:[%s3 + $0x70] sm:$0xff]
    %v1508 = vld [vmem:[%s3 + $0x78] sm:$0xff]
    %v1509 = vld [vmem:[%s4] sm:$0x1]
    %v1511 = vlaneseq
    %v1512 = vshrl.u32 %v1511, 7
    %v1513 = vsub.s32 0, %v1512
    %v1514 = vrot.slane %v1509, %v1513
    %1516 = vmatprep.subr.mxu0 0.0
    %1517 = vmatpush1.msra.mxu0 %v1493
    %1518 = vmatprep.subr.mxu0 0.0
    %1519 = vmatpush1.msra.mxu0 %v1494
    %1520 = vmatprep.subr.mxu0 0.0
    %1521 = vmatpush1.msra.mxu0 %v1495
    %1522 = vmatprep.subr.mxu0 0.0
    %1523 = vmatpush1.msra.mxu0 %v1496
    %1524 = vmatprep.subr.mxu0 0.0
    %1525 = vmatpush1.msra.mxu0 %v1497
    %1526 = vmatprep.subr.mxu0 0.0
    %1527 = vmatpush1.msra.mxu0 %v1498
    %1528 = vmatprep.subr.mxu0 0.0
    %1529 = vmatpush1.msra.mxu0 %v1499
    %1530 = vmatprep.subr.mxu0 0.0
    %1531 = vmatpush1.msra.mxu0 %v1500
    %1532 = vmatprep.subr.mxu0 0.0
    %1533 = vmatpush1.msra.mxu0 %v1501
    %1534 = vmatprep.subr.mxu0 0.0
    %1535 = vmatpush1.msra.mxu0 %v1502
    %1536 = vmatprep.subr.mxu0 0.0
    %1537 = vmatpush1.msra.mxu0 %v1503
    %1538 = vmatprep.subr.mxu0 0.0
    %1539 = vmatpush1.msra.mxu0 %v1504
    %1540 = vmatprep.subr.mxu0 0.0
    %1541 = vmatpush1.msra.mxu0 %v1505
    %1542 = vmatprep.subr.mxu0 0.0
    %1543 = vmatpush1.msra.mxu0 %v1506
    %1544 = vmatprep.subr.mxu0 0.0
    %1545 = vmatpush1.msra.mxu0 %v1507
    %1546 = vmatprep.subr.mxu0 0.0
    %1547 = vmatpush1.msra.mxu0 %v1508
    %1548 = vmatprep.subr.mxu0 0.0
    %1549 = vmatpush1.msra.mxu0 0.0
    %1550 = vmatprep.subr.mxu0 0.0
    %1551 = vmatpush1.msra.mxu0 0.0
    %1552 = vmatprep.subr.mxu0 0.0
    %1553 = vmatpush1.msra.mxu0 0.0
    %1554 = vmatprep.subr.mxu0 0.0
    %1555 = vmatpush1.msra.mxu0 0.0
    %1556 = vmatprep.subr.mxu0 0.0
    %1557 = vmatpush1.msra.mxu0 0.0
    %1558 = vmatprep.subr.mxu0 0.0
    %1559 = vmatpush1.msra.mxu0 0.0
    %1560 = vmatprep.subr.mxu0 0.0
    %1561 = vmatpush1.msra.mxu0 0.0
    %1562 = vmatprep.subr.mxu0 0.0
    %1563 = vmatpush1.msra.mxu0 0.0
    %1564 = vmatprep.subr.mxu0 0.0
    %1565 = vmatpush1.msra.mxu0 0.0
    %1566 = vmatprep.subr.mxu0 0.0
    %1567 = vmatpush1.msra.mxu0 0.0
    %1568 = vmatprep.subr.mxu0 0.0
    %1569 = vmatpush1.msra.mxu0 0.0
    %1570 = vmatprep.subr.mxu0 0.0
    %1571 = vmatpush1.msra.mxu0 0.0
    %1572 = vmatprep.subr.mxu0 0.0
    %1573 = vmatpush1.msra.mxu0 0.0
    %1574 = vmatprep.subr.mxu0 0.0
    %1575 = vmatpush1.msra.mxu0 0.0
    %1576 = vmatprep.subr.mxu0 0.0
    %1577 = vmatpush1.msra.mxu0 0.0
    %1578 = vmatprep.subr.mxu0 0.0
    %1579 = vmatpush1.msra.mxu0 0.0
    %1580 = vmatprep.mubr.f32.mxu0 0.0
    %1581 = vmatmul.mubr.f32.gmra.mrb[0].mxu0 %v1492
    %v1582 = vpop.f32.mrb[0].mxu0
    %v1583 = vadd.f32 %v1514, %v1582
    %v1584 = vpop.f32.mrb[0].mxu0
    %1585 = vdwg.mxu0
    %v1586 = vmax.f32 %v1583, 0.0
    %v1587 = vld [vmem:[%s5] sm:$0xff]
    %v1588 = vld [vmem:[%s5 + $0x8] sm:$0xff]
    %v1589 = vld [vmem:[%s5 + $0x10] sm:$0xff]
    %v1590 = vld [vmem:[%s5 + $0x18] sm:$0xff]
    %v1591 = vld [vmem:[%s5 + $0x20] sm:$0xff]
    %v1592 = vld [vmem:[%s5 + $0x28] sm:$0xff]
    %v1593 = vld [vmem:[%s5 + $0x30] sm:$0xff]
    %v1594 = vld [vmem:[%s5 + $0x38] sm:$0xff]
    %v1595 = vld [vmem:[%s5 + $0x40] sm:$0xff]
    %v1596 = vld [vmem:[%s5 + $0x48] sm:$0xff]
    %v1597 = vld [vmem:[%s5 + $0x50] sm:$0xff]
    %v1598 = vld [vmem:[%s5 + $0x58] sm:$0xff]
    %v1599 = vld [vmem:[%s5 + $0x60] sm:$0xff]
    %v1600 = vld [vmem:[%s5 + $0x68] sm:$0xff]
    %v1601 = vld [vmem:[%s5 + $0x70] sm:$0xff]
    %v1602 = vld [vmem:[%s5 + $0x78] sm:$0xff]
    %v1603 = vld [vmem:[%s6] sm:$0x1]
    %v1605 = vlaneseq
    %v1606 = vshrl.u32 %v1605, 7
    %v1607 = vsub.s32 0, %v1606
    %v1608 = vrot.slane %v1603, %v1607
    %1610 = vmatprep.subr.mxu0 0.0
    %1611 = vmatpush1.msra.mxu0 %v1587
    %1612 = vmatprep.subr.mxu0 0.0
    %1613 = vmatpush1.msra.mxu0 %v1588
    %1614 = vmatprep.subr.mxu0 0.0
    %1615 = vmatpush1.msra.mxu0 %v1589
    %1616 = vmatprep.subr.mxu0 0.0
    %1617 = vmatpush1.msra.mxu0 %v1590
    %1618 = vmatprep.subr.mxu0 0.0
    %1619 = vmatpush1.msra.mxu0 %v1591
    %1620 = vmatprep.subr.mxu0 0.0
    %1621 = vmatpush1.msra.mxu0 %v1592
    %1622 = vmatprep.subr.mxu0 0.0
    %1623 = vmatpush1.msra.mxu0 %v1593
    %1624 = vmatprep.subr.mxu0 0.0
    %1625 = vmatpush1.msra.mxu0 %v1594
    %1626 = vmatprep.subr.mxu0 0.0
    %1627 = vmatpush1.msra.mxu0 %v1595
    %1628 = vmatprep.subr.mxu0 0.0
    %1629 = vmatpush1.msra.mxu0 %v1596
    %1630 = vmatprep.subr.mxu0 0.0
    %1631 = vmatpush1.msra.mxu0 %v1597
    %1632 = vmatprep.subr.mxu0 0.0
    %1633 = vmatpush1.msra.mxu0 %v1598
    %1634 = vmatprep.subr.mxu0 0.0
    %1635 = vmatpush1.msra.mxu0 %v1599
    %1636 = vmatprep.subr.mxu0 0.0
    %1637 = vmatpush1.msra.mxu0 %v1600
    %1638 = vmatprep.subr.mxu0 0.0
    %1639 = vmatpush1.msra.mxu0 %v1601
    %1640 = vmatprep.subr.mxu0 0.0
    %1641 = vmatpush1.msra.mxu0 %v1602
    %1642 = vmatprep.subr.mxu0 0.0
    %1643 = vmatpush1.msra.mxu0 0.0
    %1644 = vmatprep.subr.mxu0 0.0
    %1645 = vmatpush1.msra.mxu0 0.0
    %1646 = vmatprep.subr.mxu0 0.0
    %1647 = vmatpush1.msra.mxu0 0.0
    %1648 = vmatprep.subr.mxu0 0.0
    %1649 = vmatpush1.msra.mxu0 0.0
    %1650 = vmatprep.subr.mxu0 0.0
    %1651 = vmatpush1.msra.mxu0 0.0
    %1652 = vmatprep.subr.mxu0 0.0
    %1653 = vmatpush1.msra.mxu0 0.0
    %1654 = vmatprep.subr.mxu0 0.0
    %1655 = vmatpush1.msra.mxu0 0.0
    %1656 = vmatprep.subr.mxu0 0.0
    %1657 = vmatpush1.msra.mxu0 0.0
    %1658 = vmatprep.subr.mxu0 0.0
    %1659 = vmatpush1.msra.mxu0 0.0
    %1660 = vmatprep.subr.mxu0 0.0
    %1661 = vmatpush1.msra.mxu0 0.0
    %1662 = vmatprep.subr.mxu0 0.0
    %1663 = vmatpush1.msra.mxu0 0.0
    %1664 = vmatprep.subr.mxu0 0.0
    %1665 = vmatpush1.msra.mxu0 0.0
    %1666 = vmatprep.subr.mxu0 0.0
    %1667 = vmatpush1.msra.mxu0 0.0
    %1668 = vmatprep.subr.mxu0 0.0
    %1669 = vmatpush1.msra.mxu0 0.0
    %1670 = vmatprep.subr.mxu0 0.0
    %1671 = vmatpush1.msra.mxu0 0.0
    %1672 = vmatprep.subr.mxu0 0.0
    %1673 = vmatpush1.msra.mxu0 0.0
    %1674 = vmatprep.mubr.f32.mxu0 0.0
    %1675 = vmatmul.mubr.f32.gmra.mrb[0].mxu0 %v1586
    %v1676 = vpop.f32.mrb[0].mxu0
    %v1677 = vadd.f32 %v1608, %v1676
    %v1678 = vpop.f32.mrb[0].mxu0
    %1679 = vdwg.mxu0
    %vm1680 = vcmask 74752
    %1681 = vst.msk [vmem:[#allocation2] sm:$0x3] %vm1680, %v1677
    // Predicated region
    $region30: #{model_forward.5} parent=1 // pred_check
      _
    $region31: #{model_forward.5} parent=1 // pred_check_branch
      %1683 = sbr.rel (0) target = $region33
    $region32: #{model_forward.5} parent=1 // pred_region
      %s1685 = ssub.s32 32, 32
      %1686 = vsyncadd [#allocation3], %s1685
      %s1688 = sshll.u32 [#allocation2], 4
      %s1689 = int_to_ptr.vmem [resolvable:$true] %s1688
      %1691 = dma.vmem_to_hbm [thread:$0]  %s1689, 32, %s7, [#allocation3]
    $region33: #{model_forward.5} parent=1 // pred_fallthru
      _
    // Predicated region
    $region34: #{model_forward.5} parent=1 // pred_check
      _
    $region35: #{model_forward.5} parent=1 // pred_check_branch
      %1693 = sbr.rel (0) target = $region37
    $region36: #{model_forward.5} parent=1 // pred_region
      %1694 = dma.done [#allocation3], 32
    $region37: #{model_forward.5} parent=1 // pred_fallthru
      _
    %1695 = vsyncpa [#allocation3], 1

</llo_original>
